<compile_context>
chip_gen: v7x
topology: tpu7x:2x2x1
jax: 0.10.0
libtpu: 0.0.40
codegen_flags: <defaults>
</compile_context>

<pallas_src>
from functools import lru_cache

import numpy as np
import jax
import jax.numpy as jnp
from jax.experimental import pallas as pl
from jax.experimental.pallas import tpu as pltpu


# ----------------------------------------------------------------------------
# Host-side operator construction (cached as numpy; converted at trace time so
# jit constant-folds them onto the correct device).
# ----------------------------------------------------------------------------
def _avgpool_matrix(n, k):
    """(n//k, n) matrix implementing AvgPool1d(k, k) (floor behaviour like torch)."""
    m = np.zeros((n // k, n), dtype=np.float32)
    for i in range(n // k):
        m[i, i * k:(i + 1) * k] = 1.0 / k
    return m


def _conv3_replicate_matrix(taps, n):
    """(n, n) matrix: 3-tap cross-correlation with replicate (edge) padding."""
    m = np.zeros((n, n), dtype=np.float32)
    for i in range(n):
        for t, kt in enumerate(taps):
            j = min(max(i + t - 1, 0), n - 1)
            m[i, j] += float(kt)
    return m


@lru_cache(maxsize=None)
def _build_operators(H, W, start_scale, num_scales):
    """Separable operators: width ops applied first (batched), height ops second.

    Returns numpy arrays:
      Lg  (2*sum(Hs), H) : per scale [Sh@Ah ; Dh@Ah]           (height grad ops)
      Ls  (sum(Hs),  H)  : per scale (Fh@Ah > 0)               (height NaN RF)
      RgT (W, 2*sum(Ws)) : per scale [(Dw@Aw/8).T | (Sw@Aw/8).T]  (width grad ops)
      RsT (W, sum(Ws))   : per scale ((Fw@Aw) > 0).T           (width NaN RF)
      meta : per-scale static sizes/offsets + fuse flag.
    """
    lg_rows, ls_rows, rg_cols, rs_cols, meta = [], [], [], [], []
    l_off = n_off = g_off = c_off = 0
    for s in range(num_scales):
        k = start_scale * 2 ** s
        Hs, Ws = H // k, W // k
        assert Hs >= 1 and Ws >= 1, (
            f"scale {s}: pooling kernel {k} does not fit input ({H}x{W})")
        Ah, Aw = _avgpool_matrix(H, k), _avgpool_matrix(W, k)
        Sh = _conv3_replicate_matrix([1.0, 2.0, 1.0], Hs)
        Dh = _conv3_replicate_matrix([-1.0, 0.0, 1.0], Hs)
        Sw = _conv3_replicate_matrix([1.0, 2.0, 1.0], Ws)
        Dw = _conv3_replicate_matrix([-1.0, 0.0, 1.0], Ws)
        Fh = _conv3_replicate_matrix([1.0, 1.0, 1.0], Hs)   # structural 3x3 RF
        Fw = _conv3_replicate_matrix([1.0, 1.0, 1.0], Ws)

        lg_rows += [Sh @ Ah, Dh @ Ah]                             # (Hs, H) each
        ls_rows += [(Fh @ Ah > 0).astype(np.float32)]             # (Hs, H)
        rg_cols += [((Dw @ Aw) / 8.0).T, ((Sw @ Aw) / 8.0).T]     # (W, Ws) each
        rs_cols += [((Fw @ Aw) > 0).astype(np.float32).T]         # (W, Ws)
        meta.append(dict(Hs=Hs, Ws=Ws, l=l_off, n=n_off, g=g_off, c=c_off,
                         fuse=(2 * Hs <= 256 and 2 * Ws <= 256)))
        l_off += 2 * Hs
        n_off += Hs
        g_off += 2 * Ws
        c_off += Ws

    Lg = np.concatenate(lg_rows, axis=0)
    Ls = np.concatenate(ls_rows, axis=0)
    RgT = np.concatenate(rg_cols, axis=1)
    RsT = np.concatenate(rs_cols, axis=1)
    return Lg, Ls, RgT, RsT, meta


def _pick_batch(N, H, W, itemsize, max_nb=8):
    """Images per grid step: large enough to amortise per-step overhead, small
    enough that the double-buffered input blocks stay <= ~8 MiB, and keeping
    >= 2 grid steps so both v7x TensorCores get work."""
    budget = 8 << 20
    cap = min(max_nb, N, max(1, budget // (2 * 2 * H * W * itemsize)))
    divisors = [d for d in range(1, cap + 1) if N % d == 0]
    good = [d for d in divisors if N // d >= 2]
    return max(good) if good else max(divisors)


# ----------------------------------------------------------------------------
# Pallas kernel: Nb images per grid step, all scales fused, NaN path gated.
# ----------------------------------------------------------------------------
def _make_kernel(meta, Nb, H, W):
    def kernel(pred_ref, tgt_ref, lg_ref, ls_ref, rg_ref, rs_ref, sum_ref, cnt_ref):
        # fp32 cast in VMEM: inputs stream from HBM at their source dtype.
        x = pred_ref[...].astype(jnp.float32)          # (Nb, H, W)
        y = tgt_ref[...].astype(jnp.float32)
        d = x - y
        nan = jnp.isnan(d)
        d = jnp.where(nan, 0.0, d)                      # zero invalid pixels

        dstk = d.reshape(Nb * H, W)                     # sublane-stacked batch (free)
        nstk = nan.astype(jnp.float32).reshape(Nb * H, W)
        has_nan = jnp.sum(nstk) > 0.0

        # Stage 1 (always): width operators of every scale & both directions,
        # batched over the Nb images in one MXU matmul.
        tg = jnp.dot(dstk, rg_ref[...],
                     preferred_element_type=jnp.float32)        # (Nb*H, 2*sumWs)
        lg = lg_ref[...]                                        # (2*sumHs, H)

        # Stage 2: height operators, per image / per scale (static slices).
        # The |dx|+|dy| maps are needed by both the clean and the NaN branch.
        amaps = []
        for m in meta:
            Hs, Ws, l0, g0 = m["Hs"], m["Ws"], m["l"], m["g"]
            per_img = []
            for i in range(Nb):
                rows = slice(i * H, (i + 1) * H)
                if m["fuse"]:
                    # One (2Hs,H)@(H,2Ws) matmul computes dx & dy together.
                    g2 = jnp.dot(lg[l0:l0 + 2 * Hs, :],
                                 tg[rows, g0:g0 + 2 * Ws],
                                 preferred_element_type=jnp.float32)
                    gx = g2[:Hs, :Ws]
                    gy = g2[Hs:, Ws:]
                else:
                    gx = jnp.dot(lg[l0:l0 + Hs, :], tg[rows, g0:g0 + Ws],
                                 preferred_element_type=jnp.float32)
                    gy = jnp.dot(lg[l0 + Hs:l0 + 2 * Hs, :],
                                 tg[rows, g0 + Ws:g0 + 2 * Ws],
                                 preferred_element_type=jnp.float32)
                per_img.append(jnp.abs(gx) + jnp.abs(gy))       # (Hs, Ws)
            amaps.append(per_img)

        # Clean path (common case): unmasked sums, static counts.  Skips every
        # NaN-structural matmul (~1/3 of the MXU work).
        @pl.when(jnp.logical_not(has_nan))
        def _clean():
            for si, m in enumerate(meta):
                tot = 0.0
                for i in range(Nb):
                    tot = tot + jnp.sum(amaps[si][i])
                sum_ref[si:si + 1, :] = jnp.full((1, 128), tot, dtype=jnp.float32)
                cnt_ref[si:si + 1, :] = jnp.full(
                    (1, 128), 2 * Nb * m["Hs"] * m["Ws"], dtype=jnp.int32)

        # NaN path: structural receptive-field matmuls on the NaN indicator
        # decide which gradient outputs are excluded from the masked sum and
        # the exact (int32) non-NaN count — matches torch conv semantics.
        @pl.when(has_nan)
        def _with_nan():
            tn = jnp.dot(nstk, rs_ref[...],
                         preferred_element_type=jnp.float32)    # (Nb*H, sumWs)
            ls = ls_ref[...]                                    # (sumHs, H)
            for si, m in enumerate(meta):
                Hs, Ws, n0, c0 = m["Hs"], m["Ws"], m["n"], m["c"]
                tot = 0.0
                cnt = 0
                for i in range(Nb):
                    rows = slice(i * H, (i + 1) * H)
                    mn = jnp.dot(ls[n0:n0 + Hs, :], tn[rows, c0:c0 + Ws],
                                 preferred_element_type=jnp.float32)
                    valid = mn < 0.5          # no NaN anywhere in the 2-D RF
                    tot = tot + jnp.sum(jnp.where(valid, amaps[si][i], 0.0))
                    cnt = cnt + 2 * jnp.sum(valid.astype(jnp.int32))
                sum_ref[si:si + 1, :] = jnp.full((1, 128), tot, dtype=jnp.float32)
                cnt_ref[si:si + 1, :] = jnp.full((1, 128), cnt, dtype=jnp.int32)

    return kernel


# ----------------------------------------------------------------------------
# Wrapper: reproduces MultiScaleGradient.forward(prediction, target)
# ----------------------------------------------------------------------------
def multi_scale_gradient_loss(prediction, target, start_scale=1, num_scales=4):
    B, C, H, W = target.shape
    N = B * C
    pred = prediction.reshape(N, H, W)     # no wrapper-side fp32 cast (done in-kernel)
    tgt = target.reshape(N, H, W)

    Lg_np, Ls_np, RgT_np, RsT_np, meta = _build_operators(H, W, start_scale, num_scales)
    Lg, Ls, RgT, RsT = (jnp.asarray(a) for a in (Lg_np, Ls_np, RgT_np, RsT_np))

    itemsize = max(jnp.dtype(pred.dtype).itemsize, jnp.dtype(tgt.dtype).itemsize)
    Nb = _pick_batch(N, H, W, itemsize)
    G = N // Nb
    stat_rows = max(8, ((num_scales + 7) // 8) * 8)
    kernel = _make_kernel(meta, Nb, H, W)

    def _op_spec(arr):
        # Constant operators: same block every grid step -> single-buffer them.
        return pl.BlockSpec(arr.shape, lambda g: (0, 0), pipeline_mode=pl.Buffered(1))

    # VMEM budget from the actual footprint, clamped to 48 MiB (v7x: 64 MiB/TC
    # physical; the 128 MiB generations simply get more slack).
    op_bytes = 4 * (Lg_np.size + Ls_np.size + RgT_np.size + RsT_np.size)
    io_bytes = 2 * 2 * Nb * H * W * itemsize            # double-buffered inputs
    interm_bytes = 4 * Nb * H * W * 12                  # d, nan, tg, tn, |grad| maps
    vmem_limit = int(min(48 << 20, max(32 << 20, 2 * (op_bytes + io_bytes + interm_bytes))))

    sums, cnts = pl.pallas_call(
        kernel,
        out_shape=(jax.ShapeDtypeStruct((G * stat_rows, 128), jnp.float32),
                   jax.ShapeDtypeStruct((G * stat_rows, 128), jnp.int32)),
        grid_spec=pltpu.PrefetchScalarGridSpec(
            num_scalar_prefetch=0,
            grid=(G,),
            in_specs=[pl.BlockSpec((Nb, H, W), lambda g: (g, 0, 0)),
                      pl.BlockSpec((Nb, H, W), lambda g: (g, 0, 0)),
                      _op_spec(Lg), _op_spec(Ls),
                      _op_spec(RgT), _op_spec(RsT)],
            out_specs=[pl.BlockSpec((stat_rows, 128), lambda g: (g, 0)),
                       pl.BlockSpec((stat_rows, 128), lambda g: (g, 0))],
        ),
        compiler_params=pltpu.CompilerParams(
            dimension_semantics=("parallel",),
            vmem_limit_bytes=vmem_limit),
    )(pred, tgt, Lg, Ls, RgT, RsT)

    sums = sums.reshape(G, stat_rows, 128)[:, :num_scales, 0]      # (G, S)
    cnts = cnts.reshape(G, stat_rows, 128)[:, :num_scales, 0]      # (G, S) int32
    per_scale_sum = sums.sum(axis=0)
    per_scale_cnt = cnts.sum(axis=0).astype(jnp.float32)
    # torch: loss += |grad|[~nan].sum() / (~nan).sum() * B * 2 ; final /= num_scales.
    # (A scale with zero valid pixels divides by zero -> NaN, same as torch.)
    return jnp.sum(per_scale_sum / per_scale_cnt) * (B * 2.0) / num_scales


# ----------------------------------------------------------------------------
# Independent pure-JAX reference (NaN-aware, torch-conv semantics: 0*NaN=NaN)
# ----------------------------------------------------------------------------
def _reference_loss(prediction, target, start_scale=1, num_scales=4):
    B, C, H, W = target.shape
    diff = prediction - target
    loss = jnp.float32(0.0)
    for scale in range(num_scales):
        k = start_scale * 2 ** scale
        Hs, Ws = H // k, W // k
        pooled = diff[:, :, :Hs * k, :Ws * k].reshape(B, C, Hs, k, Ws, k).mean(axis=(3, 5))
        P = jnp.pad(pooled, ((0, 0), (0, 0), (1, 1), (1, 1)), mode="edge")

        def win(di, dj):
            return P[:, :, di:di + Hs, dj:dj + Ws]

        # zero-tap terms kept so NaNs propagate exactly like torch's conv2d.
        dx = (-win(0, 0) + 0 * win(0, 1) + win(0, 2)
              - 2 * win(1, 0) + 0 * win(1, 1) + 2 * win(1, 2)
              - win(2, 0) + 0 * win(2, 1) + win(2, 2)) / 8.0
        dy = (-win(0, 0) - 2 * win(0, 1) - win(0, 2)
              + 0 * win(1, 0) + 0 * win(1, 1) + 0 * win(1, 2)
              + win(2, 0) + 2 * win(2, 1) + win(2, 2)) / 8.0
        g = jnp.stack([dx, dy], axis=2)            # (B, C, 2, Hs, Ws)
        is_nan = jnp.isnan(g)
        s = jnp.where(is_nan, 0.0, jnp.abs(g)).sum()
        c = (~is_nan).sum()
        loss = loss + s / c * B * 2.0
    return loss / num_scales


if __name__ == "__main__":
    key = jax.random.PRNGKey(0)
    k1, k2 = jax.random.split(key)
    B, C, H, W = 2, 4, 16, 16
    prediction = jax.random.normal(k1, (B, C, H, W), dtype=jnp.float32)
    target = jax.random.normal(k2, (B, C, H, W), dtype=jnp.float32)

    msg_loss = jax.jit(multi_scale_gradient_loss)

    # Clean (NaN-free) case — exercises the gated fast path.
    loss = jax.block_until_ready(msg_loss(prediction, target))
    ref = jax.block_until_ready(_reference_loss(prediction, target))
    np.testing.assert_allclose(float(loss), float(ref), rtol=1e-4, atol=1e-5)
    assert np.isfinite(float(loss))

    # Invalid-pixel case — exercises the NaN-structural path (masked sum / count).
    target_nan = target.at[0, 1, 3, 5].set(jnp.nan).at[1, 0, 10, 12].set(jnp.nan)
    loss_nan = jax.block_until_ready(msg_loss(prediction, target_nan))
    ref_nan = jax.block_until_ready(_reference_loss(prediction, target_nan))
    np.testing.assert_allclose(float(loss_nan), float(ref_nan), rtol=1e-4, atol=1e-5)
    assert np.isfinite(float(loss_nan))

    print("KERNEL_OK")
</pallas_src>

<mosaic_0001>
module attributes {stable_mosaic.version = 11 : i64} {
  func.func @kernel(%arg0: i32, %arg1: memref<4x16x16xf32, #tpu.memory_space<vmem>>, %arg2: memref<4x16x16xf32, #tpu.memory_space<vmem>>, %arg3: memref<60x16xf32, #tpu.memory_space<vmem>>, %arg4: memref<30x16xf32, #tpu.memory_space<vmem>>, %arg5: memref<16x60xf32, #tpu.memory_space<vmem>>, %arg6: memref<16x30xf32, #tpu.memory_space<vmem>>, %arg7: memref<8x128xf32, #tpu.memory_space<vmem>>, %arg8: memref<8x128xi32, #tpu.memory_space<vmem>>) attributes {dimension_semantics = [#tpu.dimension_semantics<parallel>], iteration_bounds = array<i64: 2>, scalar_prefetch = 0 : i64, scratch_operands = 0 : i64, tpu.core_type = #tpu.core_type<tc>, window_params = [{transform_indices = @transform_0, window_bounds = array<i64: 4, 16, 16>}, {transform_indices = @transform_1, window_bounds = array<i64: 4, 16, 16>}, {pipeline_mode = #tpu.pipeline_mode<synchronous>, transform_indices = @transform_2, window_bounds = array<i64: 60, 16>}, {pipeline_mode = #tpu.pipeline_mode<synchronous>, transform_indices = @transform_3, window_bounds = array<i64: 30, 16>}, {pipeline_mode = #tpu.pipeline_mode<synchronous>, transform_indices = @transform_4, window_bounds = array<i64: 16, 60>}, {pipeline_mode = #tpu.pipeline_mode<synchronous>, transform_indices = @transform_5, window_bounds = array<i64: 16, 30>}, {transform_indices = @transform_6, window_bounds = array<i64: 8, 128>}, {transform_indices = @transform_7, window_bounds = array<i64: 8, 128>}]} {
    %c0 = arith.constant 0 : index
    %c0_0 = arith.constant 0 : index
    %c0_1 = arith.constant 0 : index
    %0 = vector.load %arg1[%c0, %c0_0, %c0_1] : memref<4x16x16xf32, #tpu.memory_space<vmem>>, vector<4x16x16xf32>
    %c0_2 = arith.constant 0 : index
    %c0_3 = arith.constant 0 : index
    %c0_4 = arith.constant 0 : index
    %1 = vector.load %arg2[%c0_2, %c0_3, %c0_4] : memref<4x16x16xf32, #tpu.memory_space<vmem>>, vector<4x16x16xf32>
    %2 = arith.subf %0, %1 : vector<4x16x16xf32>
    %3 = arith.cmpf one, %2, %2 : vector<4x16x16xf32>
    %cst = arith.constant 0.000000e+00 : f32
    %4 = vector.broadcast %cst : f32 to vector<4x16x16xf32>
    %5 = arith.select %3, %4, %2 : vector<4x16x16xi1>, vector<4x16x16xf32>
    %6 = vector.shape_cast %5 : vector<4x16x16xf32> to vector<64x16xf32>
    %7 = arith.extui %3 : vector<4x16x16xi1> to vector<4x16x16xi32>
    %8 = arith.sitofp %7 : vector<4x16x16xi32> to vector<4x16x16xf32>
    %9 = vector.shape_cast %8 : vector<4x16x16xf32> to vector<64x16xf32>
    %10 = vector.shape_cast %9 : vector<64x16xf32> to vector<1x64x16xf32>
    %cst_5 = arith.constant dense<0.000000e+00> : vector<1xf32>
    %11 = vector.multi_reduction <add>, %10, %cst_5 [1, 2] : vector<1x64x16xf32> to vector<1xf32>
    %12 = vector.shape_cast %11 : vector<1xf32> to vector<1x1x1xf32>
    %13 = vector.extract %12[0, 0, 0] : f32 from vector<1x1x1xf32>
    %cst_6 = arith.constant 0.000000e+00 : f32
    %14 = arith.cmpf ogt, %13, %cst_6 : f32
    %c0_7 = arith.constant 0 : index
    %c0_8 = arith.constant 0 : index
    %15 = vector.load %arg5[%c0_7, %c0_8] : memref<16x60xf32, #tpu.memory_space<vmem>>, vector<16x60xf32>
    %cst_9 = arith.constant dense<0.000000e+00> : vector<64x60xf32>
    %16 = tpu.matmul %6, %15, %cst_9 {dimension_numbers = #tpu.dot_dimension_numbers<[1], [0], [0], [1], [0, 0, 1, 1], [], []>} : vector<64x16xf32>, vector<16x60xf32>, vector<64x60xf32> -> vector<64x60xf32>
    %c0_10 = arith.constant 0 : index
    %c0_11 = arith.constant 0 : index
    %17 = vector.load %arg3[%c0_10, %c0_11] : memref<60x16xf32, #tpu.memory_space<vmem>>, vector<60x16xf32>
    %18 = vector.extract_strided_slice %17 {offsets = [0, 0], sizes = [32, 16], strides = [1, 1]} : vector<60x16xf32> to vector<32x16xf32>
    %19 = vector.extract_strided_slice %16 {offsets = [0, 0], sizes = [16, 32], strides = [1, 1]} : vector<64x60xf32> to vector<16x32xf32>
    %cst_12 = arith.constant dense<0.000000e+00> : vector<32x32xf32>
    %20 = tpu.matmul %18, %19, %cst_12 {dimension_numbers = #tpu.dot_dimension_numbers<[1], [0], [0], [1], [0, 0, 1, 1], [], []>} : vector<32x16xf32>, vector<16x32xf32>, vector<32x32xf32> -> vector<32x32xf32>
    %21 = vector.extract_strided_slice %20 {offsets = [0, 0], sizes = [16, 16], strides = [1, 1]} : vector<32x32xf32> to vector<16x16xf32>
    %22 = vector.extract_strided_slice %20 {offsets = [16, 16], sizes = [16, 16], strides = [1, 1]} : vector<32x32xf32> to vector<16x16xf32>
    %23 = math.absf %21 : vector<16x16xf32>
    %24 = math.absf %22 : vector<16x16xf32>
    %25 = arith.addf %23, %24 : vector<16x16xf32>
    %26 = vector.extract_strided_slice %17 {offsets = [0, 0], sizes = [32, 16], strides = [1, 1]} : vector<60x16xf32> to vector<32x16xf32>
    %27 = vector.extract_strided_slice %16 {offsets = [16, 0], sizes = [16, 32], strides = [1, 1]} : vector<64x60xf32> to vector<16x32xf32>
    %cst_13 = arith.constant dense<0.000000e+00> : vector<32x32xf32>
    %28 = tpu.matmul %26, %27, %cst_13 {dimension_numbers = #tpu.dot_dimension_numbers<[1], [0], [0], [1], [0, 0, 1, 1], [], []>} : vector<32x16xf32>, vector<16x32xf32>, vector<32x32xf32> -> vector<32x32xf32>
    %29 = vector.extract_strided_slice %28 {offsets = [0, 0], sizes = [16, 16], strides = [1, 1]} : vector<32x32xf32> to vector<16x16xf32>
    %30 = vector.extract_strided_slice %28 {offsets = [16, 16], sizes = [16, 16], strides = [1, 1]} : vector<32x32xf32> to vector<16x16xf32>
    %31 = math.absf %29 : vector<16x16xf32>
    %32 = math.absf %30 : vector<16x16xf32>
    %33 = arith.addf %31, %32 : vector<16x16xf32>
    %34 = vector.extract_strided_slice %17 {offsets = [0, 0], sizes = [32, 16], strides = [1, 1]} : vector<60x16xf32> to vector<32x16xf32>
    %35 = vector.extract_strided_slice %16 {offsets = [32, 0], sizes = [16, 32], strides = [1, 1]} : vector<64x60xf32> to vector<16x32xf32>
    %cst_14 = arith.constant dense<0.000000e+00> : vector<32x32xf32>
    %36 = tpu.matmul %34, %35, %cst_14 {dimension_numbers = #tpu.dot_dimension_numbers<[1], [0], [0], [1], [0, 0, 1, 1], [], []>} : vector<32x16xf32>, vector<16x32xf32>, vector<32x32xf32> -> vector<32x32xf32>
    %37 = vector.extract_strided_slice %36 {offsets = [0, 0], sizes = [16, 16], strides = [1, 1]} : vector<32x32xf32> to vector<16x16xf32>
    %38 = vector.extract_strided_slice %36 {offsets = [16, 16], sizes = [16, 16], strides = [1, 1]} : vector<32x32xf32> to vector<16x16xf32>
    %39 = math.absf %37 : vector<16x16xf32>
    %40 = math.absf %38 : vector<16x16xf32>
    %41 = arith.addf %39, %40 : vector<16x16xf32>
    %42 = vector.extract_strided_slice %17 {offsets = [0, 0], sizes = [32, 16], strides = [1, 1]} : vector<60x16xf32> to vector<32x16xf32>
    %43 = vector.extract_strided_slice %16 {offsets = [48, 0], sizes = [16, 32], strides = [1, 1]} : vector<64x60xf32> to vector<16x32xf32>
    %cst_15 = arith.constant dense<0.000000e+00> : vector<32x32xf32>
    %44 = tpu.matmul %42, %43, %cst_15 {dimension_numbers = #tpu.dot_dimension_numbers<[1], [0], [0], [1], [0, 0, 1, 1], [], []>} : vector<32x16xf32>, vector<16x32xf32>, vector<32x32xf32> -> vector<32x32xf32>
    %45 = vector.extract_strided_slice %44 {offsets = [0, 0], sizes = [16, 16], strides = [1, 1]} : vector<32x32xf32> to vector<16x16xf32>
    %46 = vector.extract_strided_slice %44 {offsets = [16, 16], sizes = [16, 16], strides = [1, 1]} : vector<32x32xf32> to vector<16x16xf32>
    %47 = math.absf %45 : vector<16x16xf32>
    %48 = math.absf %46 : vector<16x16xf32>
    %49 = arith.addf %47, %48 : vector<16x16xf32>
    %50 = vector.extract_strided_slice %17 {offsets = [32, 0], sizes = [16, 16], strides = [1, 1]} : vector<60x16xf32> to vector<16x16xf32>
    %51 = vector.extract_strided_slice %16 {offsets = [0, 32], sizes = [16, 16], strides = [1, 1]} : vector<64x60xf32> to vector<16x16xf32>
    %cst_16 = arith.constant dense<0.000000e+00> : vector<16x16xf32>
    %52 = tpu.matmul %50, %51, %cst_16 {dimension_numbers = #tpu.dot_dimension_numbers<[1], [0], [0], [1], [0, 0, 1, 1], [], []>} : vector<16x16xf32>, vector<16x16xf32>, vector<16x16xf32> -> vector<16x16xf32>
    %53 = vector.extract_strided_slice %52 {offsets = [0, 0], sizes = [8, 8], strides = [1, 1]} : vector<16x16xf32> to vector<8x8xf32>
    %54 = vector.extract_strided_slice %52 {offsets = [8, 8], sizes = [8, 8], strides = [1, 1]} : vector<16x16xf32> to vector<8x8xf32>
    %55 = math.absf %53 : vector<8x8xf32>
    %56 = math.absf %54 : vector<8x8xf32>
    %57 = arith.addf %55, %56 : vector<8x8xf32>
    %58 = vector.extract_strided_slice %17 {offsets = [32, 0], sizes = [16, 16], strides = [1, 1]} : vector<60x16xf32> to vector<16x16xf32>
    %59 = vector.extract_strided_slice %16 {offsets = [16, 32], sizes = [16, 16], strides = [1, 1]} : vector<64x60xf32> to vector<16x16xf32>
    %cst_17 = arith.constant dense<0.000000e+00> : vector<16x16xf32>
    %60 = tpu.matmul %58, %59, %cst_17 {dimension_numbers = #tpu.dot_dimension_numbers<[1], [0], [0], [1], [0, 0, 1, 1], [], []>} : vector<16x16xf32>, vector<16x16xf32>, vector<16x16xf32> -> vector<16x16xf32>
    %61 = vector.extract_strided_slice %60 {offsets = [0, 0], sizes = [8, 8], strides = [1, 1]} : vector<16x16xf32> to vector<8x8xf32>
    %62 = vector.extract_strided_slice %60 {offsets = [8, 8], sizes = [8, 8], strides = [1, 1]} : vector<16x16xf32> to vector<8x8xf32>
    %63 = math.absf %61 : vector<8x8xf32>
    %64 = math.absf %62 : vector<8x8xf32>
    %65 = arith.addf %63, %64 : vector<8x8xf32>
    %66 = vector.extract_strided_slice %17 {offsets = [32, 0], sizes = [16, 16], strides = [1, 1]} : vector<60x16xf32> to vector<16x16xf32>
    %67 = vector.extract_strided_slice %16 {offsets = [32, 32], sizes = [16, 16], strides = [1, 1]} : vector<64x60xf32> to vector<16x16xf32>
    %cst_18 = arith.constant dense<0.000000e+00> : vector<16x16xf32>
    %68 = tpu.matmul %66, %67, %cst_18 {dimension_numbers = #tpu.dot_dimension_numbers<[1], [0], [0], [1], [0, 0, 1, 1], [], []>} : vector<16x16xf32>, vector<16x16xf32>, vector<16x16xf32> -> vector<16x16xf32>
    %69 = vector.extract_strided_slice %68 {offsets = [0, 0], sizes = [8, 8], strides = [1, 1]} : vector<16x16xf32> to vector<8x8xf32>
    %70 = vector.extract_strided_slice %68 {offsets = [8, 8], sizes = [8, 8], strides = [1, 1]} : vector<16x16xf32> to vector<8x8xf32>
    %71 = math.absf %69 : vector<8x8xf32>
    %72 = math.absf %70 : vector<8x8xf32>
    %73 = arith.addf %71, %72 : vector<8x8xf32>
    %74 = vector.extract_strided_slice %17 {offsets = [32, 0], sizes = [16, 16], strides = [1, 1]} : vector<60x16xf32> to vector<16x16xf32>
    %75 = vector.extract_strided_slice %16 {offsets = [48, 32], sizes = [16, 16], strides = [1, 1]} : vector<64x60xf32> to vector<16x16xf32>
    %cst_19 = arith.constant dense<0.000000e+00> : vector<16x16xf32>
    %76 = tpu.matmul %74, %75, %cst_19 {dimension_numbers = #tpu.dot_dimension_numbers<[1], [0], [0], [1], [0, 0, 1, 1], [], []>} : vector<16x16xf32>, vector<16x16xf32>, vector<16x16xf32> -> vector<16x16xf32>
    %77 = vector.extract_strided_slice %76 {offsets = [0, 0], sizes = [8, 8], strides = [1, 1]} : vector<16x16xf32> to vector<8x8xf32>
    %78 = vector.extract_strided_slice %76 {offsets = [8, 8], sizes = [8, 8], strides = [1, 1]} : vector<16x16xf32> to vector<8x8xf32>
    %79 = math.absf %77 : vector<8x8xf32>
    %80 = math.absf %78 : vector<8x8xf32>
    %81 = arith.addf %79, %80 : vector<8x8xf32>
    %82 = vector.extract_strided_slice %17 {offsets = [48, 0], sizes = [8, 16], strides = [1, 1]} : vector<60x16xf32> to vector<8x16xf32>
    %83 = vector.extract_strided_slice %16 {offsets = [0, 48], sizes = [16, 8], strides = [1, 1]} : vector<64x60xf32> to vector<16x8xf32>
    %cst_20 = arith.constant dense<0.000000e+00> : vector<8x8xf32>
    %84 = tpu.matmul %82, %83, %cst_20 {dimension_numbers = #tpu.dot_dimension_numbers<[1], [0], [0], [1], [0, 0, 1, 1], [], []>} : vector<8x16xf32>, vector<16x8xf32>, vector<8x8xf32> -> vector<8x8xf32>
    %85 = vector.extract_strided_slice %84 {offsets = [0, 0], sizes = [4, 4], strides = [1, 1]} : vector<8x8xf32> to vector<4x4xf32>
    %86 = vector.extract_strided_slice %84 {offsets = [4, 4], sizes = [4, 4], strides = [1, 1]} : vector<8x8xf32> to vector<4x4xf32>
    %87 = math.absf %85 : vector<4x4xf32>
    %88 = math.absf %86 : vector<4x4xf32>
    %89 = arith.addf %87, %88 : vector<4x4xf32>
    %90 = vector.extract_strided_slice %17 {offsets = [48, 0], sizes = [8, 16], strides = [1, 1]} : vector<60x16xf32> to vector<8x16xf32>
    %91 = vector.extract_strided_slice %16 {offsets = [16, 48], sizes = [16, 8], strides = [1, 1]} : vector<64x60xf32> to vector<16x8xf32>
    %cst_21 = arith.constant dense<0.000000e+00> : vector<8x8xf32>
    %92 = tpu.matmul %90, %91, %cst_21 {dimension_numbers = #tpu.dot_dimension_numbers<[1], [0], [0], [1], [0, 0, 1, 1], [], []>} : vector<8x16xf32>, vector<16x8xf32>, vector<8x8xf32> -> vector<8x8xf32>
    %93 = vector.extract_strided_slice %92 {offsets = [0, 0], sizes = [4, 4], strides = [1, 1]} : vector<8x8xf32> to vector<4x4xf32>
    %94 = vector.extract_strided_slice %92 {offsets = [4, 4], sizes = [4, 4], strides = [1, 1]} : vector<8x8xf32> to vector<4x4xf32>
    %95 = math.absf %93 : vector<4x4xf32>
    %96 = math.absf %94 : vector<4x4xf32>
    %97 = arith.addf %95, %96 : vector<4x4xf32>
    %98 = vector.extract_strided_slice %17 {offsets = [48, 0], sizes = [8, 16], strides = [1, 1]} : vector<60x16xf32> to vector<8x16xf32>
    %99 = vector.extract_strided_slice %16 {offsets = [32, 48], sizes = [16, 8], strides = [1, 1]} : vector<64x60xf32> to vector<16x8xf32>
    %cst_22 = arith.constant dense<0.000000e+00> : vector<8x8xf32>
    %100 = tpu.matmul %98, %99, %cst_22 {dimension_numbers = #tpu.dot_dimension_numbers<[1], [0], [0], [1], [0, 0, 1, 1], [], []>} : vector<8x16xf32>, vector<16x8xf32>, vector<8x8xf32> -> vector<8x8xf32>
    %101 = vector.extract_strided_slice %100 {offsets = [0, 0], sizes = [4, 4], strides = [1, 1]} : vector<8x8xf32> to vector<4x4xf32>
    %102 = vector.extract_strided_slice %100 {offsets = [4, 4], sizes = [4, 4], strides = [1, 1]} : vector<8x8xf32> to vector<4x4xf32>
    %103 = math.absf %101 : vector<4x4xf32>
    %104 = math.absf %102 : vector<4x4xf32>
    %105 = arith.addf %103, %104 : vector<4x4xf32>
    %106 = vector.extract_strided_slice %17 {offsets = [48, 0], sizes = [8, 16], strides = [1, 1]} : vector<60x16xf32> to vector<8x16xf32>
    %107 = vector.extract_strided_slice %16 {offsets = [48, 48], sizes = [16, 8], strides = [1, 1]} : vector<64x60xf32> to vector<16x8xf32>
    %cst_23 = arith.constant dense<0.000000e+00> : vector<8x8xf32>
    %108 = tpu.matmul %106, %107, %cst_23 {dimension_numbers = #tpu.dot_dimension_numbers<[1], [0], [0], [1], [0, 0, 1, 1], [], []>} : vector<8x16xf32>, vector<16x8xf32>, vector<8x8xf32> -> vector<8x8xf32>
    %109 = vector.extract_strided_slice %108 {offsets = [0, 0], sizes = [4, 4], strides = [1, 1]} : vector<8x8xf32> to vector<4x4xf32>
    %110 = vector.extract_strided_slice %108 {offsets = [4, 4], sizes = [4, 4], strides = [1, 1]} : vector<8x8xf32> to vector<4x4xf32>
    %111 = math.absf %109 : vector<4x4xf32>
    %112 = math.absf %110 : vector<4x4xf32>
    %113 = arith.addf %111, %112 : vector<4x4xf32>
    %114 = vector.extract_strided_slice %17 {offsets = [56, 0], sizes = [4, 16], strides = [1, 1]} : vector<60x16xf32> to vector<4x16xf32>
    %115 = vector.extract_strided_slice %16 {offsets = [0, 56], sizes = [16, 4], strides = [1, 1]} : vector<64x60xf32> to vector<16x4xf32>
    %cst_24 = arith.constant dense<0.000000e+00> : vector<4x4xf32>
    %116 = tpu.matmul %114, %115, %cst_24 {dimension_numbers = #tpu.dot_dimension_numbers<[1], [0], [0], [1], [0, 0, 1, 1], [], []>} : vector<4x16xf32>, vector<16x4xf32>, vector<4x4xf32> -> vector<4x4xf32>
    %117 = vector.extract_strided_slice %116 {offsets = [0, 0], sizes = [2, 2], strides = [1, 1]} : vector<4x4xf32> to vector<2x2xf32>
    %118 = vector.extract_strided_slice %116 {offsets = [2, 2], sizes = [2, 2], strides = [1, 1]} : vector<4x4xf32> to vector<2x2xf32>
    %119 = math.absf %117 : vector<2x2xf32>
    %120 = math.absf %118 : vector<2x2xf32>
    %121 = arith.addf %119, %120 : vector<2x2xf32>
    %122 = vector.extract_strided_slice %17 {offsets = [56, 0], sizes = [4, 16], strides = [1, 1]} : vector<60x16xf32> to vector<4x16xf32>
    %123 = vector.extract_strided_slice %16 {offsets = [16, 56], sizes = [16, 4], strides = [1, 1]} : vector<64x60xf32> to vector<16x4xf32>
    %cst_25 = arith.constant dense<0.000000e+00> : vector<4x4xf32>
    %124 = tpu.matmul %122, %123, %cst_25 {dimension_numbers = #tpu.dot_dimension_numbers<[1], [0], [0], [1], [0, 0, 1, 1], [], []>} : vector<4x16xf32>, vector<16x4xf32>, vector<4x4xf32> -> vector<4x4xf32>
    %125 = vector.extract_strided_slice %124 {offsets = [0, 0], sizes = [2, 2], strides = [1, 1]} : vector<4x4xf32> to vector<2x2xf32>
    %126 = vector.extract_strided_slice %124 {offsets = [2, 2], sizes = [2, 2], strides = [1, 1]} : vector<4x4xf32> to vector<2x2xf32>
    %127 = math.absf %125 : vector<2x2xf32>
    %128 = math.absf %126 : vector<2x2xf32>
    %129 = arith.addf %127, %128 : vector<2x2xf32>
    %130 = vector.extract_strided_slice %17 {offsets = [56, 0], sizes = [4, 16], strides = [1, 1]} : vector<60x16xf32> to vector<4x16xf32>
    %131 = vector.extract_strided_slice %16 {offsets = [32, 56], sizes = [16, 4], strides = [1, 1]} : vector<64x60xf32> to vector<16x4xf32>
    %cst_26 = arith.constant dense<0.000000e+00> : vector<4x4xf32>
    %132 = tpu.matmul %130, %131, %cst_26 {dimension_numbers = #tpu.dot_dimension_numbers<[1], [0], [0], [1], [0, 0, 1, 1], [], []>} : vector<4x16xf32>, vector<16x4xf32>, vector<4x4xf32> -> vector<4x4xf32>
    %133 = vector.extract_strided_slice %132 {offsets = [0, 0], sizes = [2, 2], strides = [1, 1]} : vector<4x4xf32> to vector<2x2xf32>
    %134 = vector.extract_strided_slice %132 {offsets = [2, 2], sizes = [2, 2], strides = [1, 1]} : vector<4x4xf32> to vector<2x2xf32>
    %135 = math.absf %133 : vector<2x2xf32>
    %136 = math.absf %134 : vector<2x2xf32>
    %137 = arith.addf %135, %136 : vector<2x2xf32>
    %138 = vector.extract_strided_slice %17 {offsets = [56, 0], sizes = [4, 16], strides = [1, 1]} : vector<60x16xf32> to vector<4x16xf32>
    %139 = vector.extract_strided_slice %16 {offsets = [48, 56], sizes = [16, 4], strides = [1, 1]} : vector<64x60xf32> to vector<16x4xf32>
    %cst_27 = arith.constant dense<0.000000e+00> : vector<4x4xf32>
    %140 = tpu.matmul %138, %139, %cst_27 {dimension_numbers = #tpu.dot_dimension_numbers<[1], [0], [0], [1], [0, 0, 1, 1], [], []>} : vector<4x16xf32>, vector<16x4xf32>, vector<4x4xf32> -> vector<4x4xf32>
    %141 = vector.extract_strided_slice %140 {offsets = [0, 0], sizes = [2, 2], strides = [1, 1]} : vector<4x4xf32> to vector<2x2xf32>
    %142 = vector.extract_strided_slice %140 {offsets = [2, 2], sizes = [2, 2], strides = [1, 1]} : vector<4x4xf32> to vector<2x2xf32>
    %143 = math.absf %141 : vector<2x2xf32>
    %144 = math.absf %142 : vector<2x2xf32>
    %145 = arith.addf %143, %144 : vector<2x2xf32>
    %true = arith.constant true
    %146 = arith.xori %14, %true : i1
    %147 = arith.extui %146 : i1 to i32
    %c0_i32 = arith.constant 0 : i32
    %148 = arith.cmpi ne, %147, %c0_i32 : i32
    scf.if %148 {
      %151 = vector.shape_cast %25 : vector<16x16xf32> to vector<1x16x16xf32>
      %cst_29 = arith.constant dense<0.000000e+00> : vector<1xf32>
      %152 = vector.multi_reduction <add>, %151, %cst_29 [1, 2] : vector<1x16x16xf32> to vector<1xf32>
      %153 = vector.shape_cast %152 : vector<1xf32> to vector<1x1x1xf32>
      %154 = vector.extract %153[0, 0, 0] : f32 from vector<1x1x1xf32>
      %cst_30 = arith.constant 0.000000e+00 : f32
      %155 = arith.addf %cst_30, %154 : f32
      %156 = vector.shape_cast %33 : vector<16x16xf32> to vector<1x16x16xf32>
      %cst_31 = arith.constant dense<0.000000e+00> : vector<1xf32>
      %157 = vector.multi_reduction <add>, %156, %cst_31 [1, 2] : vector<1x16x16xf32> to vector<1xf32>
      %158 = vector.shape_cast %157 : vector<1xf32> to vector<1x1x1xf32>
      %159 = vector.extract %158[0, 0, 0] : f32 from vector<1x1x1xf32>
      %160 = arith.addf %155, %159 : f32
      %161 = vector.shape_cast %41 : vector<16x16xf32> to vector<1x16x16xf32>
      %cst_32 = arith.constant dense<0.000000e+00> : vector<1xf32>
      %162 = vector.multi_reduction <add>, %161, %cst_32 [1, 2] : vector<1x16x16xf32> to vector<1xf32>
      %163 = vector.shape_cast %162 : vector<1xf32> to vector<1x1x1xf32>
      %164 = vector.extract %163[0, 0, 0] : f32 from vector<1x1x1xf32>
      %165 = arith.addf %160, %164 : f32
      %166 = vector.shape_cast %49 : vector<16x16xf32> to vector<1x16x16xf32>
      %cst_33 = arith.constant dense<0.000000e+00> : vector<1xf32>
      %167 = vector.multi_reduction <add>, %166, %cst_33 [1, 2] : vector<1x16x16xf32> to vector<1xf32>
      %168 = vector.shape_cast %167 : vector<1xf32> to vector<1x1x1xf32>
      %169 = vector.extract %168[0, 0, 0] : f32 from vector<1x1x1xf32>
      %170 = arith.addf %165, %169 : f32
      %171 = vector.broadcast %170 : f32 to vector<1x128xf32>
      %c0_34 = arith.constant 0 : index
      %c0_35 = arith.constant 0 : index
      %172 = vector.load %arg7[%c0_34, %c0_35] : memref<8x128xf32, #tpu.memory_space<vmem>>, vector<1x128xf32>
      tpu.vector_store %arg7[%c0_34, %c0_35], %171 {strides = array<i32>} : memref<8x128xf32, #tpu.memory_space<vmem>>, vector<1x128xf32>,
      %c2048_i32 = arith.constant 2048 : i32
      %173 = vector.broadcast %c2048_i32 : i32 to vector<1x128xi32>
      %c0_36 = arith.constant 0 : index
      %c0_37 = arith.constant 0 : index
      %174 = vector.load %arg8[%c0_36, %c0_37] : memref<8x128xi32, #tpu.memory_space<vmem>>, vector<1x128xi32>
      tpu.vector_store %arg8[%c0_36, %c0_37], %173 {strides = array<i32>} : memref<8x128xi32, #tpu.memory_space<vmem>>, vector<1x128xi32>,
      %175 = vector.shape_cast %57 : vector<8x8xf32> to vector<1x8x8xf32>
      %cst_38 = arith.constant dense<0.000000e+00> : vector<1xf32>
      %176 = vector.multi_reduction <add>, %175, %cst_38 [1, 2] : vector<1x8x8xf32> to vector<1xf32>
      %177 = vector.shape_cast %176 : vector<1xf32> to vector<1x1x1xf32>
      %178 = vector.extract %177[0, 0, 0] : f32 from vector<1x1x1xf32>
      %cst_39 = arith.constant 0.000000e+00 : f32
      %179 = arith.addf %cst_39, %178 : f32
      %180 = vector.shape_cast %65 : vector<8x8xf32> to vector<1x8x8xf32>
      %cst_40 = arith.constant dense<0.000000e+00> : vector<1xf32>
      %181 = vector.multi_reduction <add>, %180, %cst_40 [1, 2] : vector<1x8x8xf32> to vector<1xf32>
      %182 = vector.shape_cast %181 : vector<1xf32> to vector<1x1x1xf32>
      %183 = vector.extract %182[0, 0, 0] : f32 from vector<1x1x1xf32>
      %184 = arith.addf %179, %183 : f32
      %185 = vector.shape_cast %73 : vector<8x8xf32> to vector<1x8x8xf32>
      %cst_41 = arith.constant dense<0.000000e+00> : vector<1xf32>
      %186 = vector.multi_reduction <add>, %185, %cst_41 [1, 2] : vector<1x8x8xf32> to vector<1xf32>
      %187 = vector.shape_cast %186 : vector<1xf32> to vector<1x1x1xf32>
      %188 = vector.extract %187[0, 0, 0] : f32 from vector<1x1x1xf32>
      %189 = arith.addf %184, %188 : f32
      %190 = vector.shape_cast %81 : vector<8x8xf32> to vector<1x8x8xf32>
      %cst_42 = arith.constant dense<0.000000e+00> : vector<1xf32>
      %191 = vector.multi_reduction <add>, %190, %cst_42 [1, 2] : vector<1x8x8xf32> to vector<1xf32>
      %192 = vector.shape_cast %191 : vector<1xf32> to vector<1x1x1xf32>
      %193 = vector.extract %192[0, 0, 0] : f32 from vector<1x1x1xf32>
      %194 = arith.addf %189, %193 : f32
      %195 = vector.broadcast %194 : f32 to vector<1x128xf32>
      %c1 = arith.constant 1 : index
      %c0_43 = arith.constant 0 : index
      %196 = vector.load %arg7[%c1, %c0_43] : memref<8x128xf32, #tpu.memory_space<vmem>>, vector<1x128xf32>
      tpu.vector_store %arg7[%c1, %c0_43], %195 {strides = array<i32>} : memref<8x128xf32, #tpu.memory_space<vmem>>, vector<1x128xf32>,
      %c512_i32 = arith.constant 512 : i32
      %197 = vector.broadcast %c512_i32 : i32 to vector<1x128xi32>
      %c1_44 = arith.constant 1 : index
      %c0_45 = arith.constant 0 : index
      %198 = vector.load %arg8[%c1_44, %c0_45] : memref<8x128xi32, #tpu.memory_space<vmem>>, vector<1x128xi32>
      tpu.vector_store %arg8[%c1_44, %c0_45], %197 {strides = array<i32>} : memref<8x128xi32, #tpu.memory_space<vmem>>, vector<1x128xi32>,
      %199 = vector.shape_cast %89 : vector<4x4xf32> to vector<1x4x4xf32>
      %cst_46 = arith.constant dense<0.000000e+00> : vector<1xf32>
      %200 = vector.multi_reduction <add>, %199, %cst_46 [1, 2] : vector<1x4x4xf32> to vector<1xf32>
      %201 = vector.shape_cast %200 : vector<1xf32> to vector<1x1x1xf32>
      %202 = vector.extract %201[0, 0, 0] : f32 from vector<1x1x1xf32>
      %cst_47 = arith.constant 0.000000e+00 : f32
      %203 = arith.addf %cst_47, %202 : f32
      %204 = vector.shape_cast %97 : vector<4x4xf32> to vector<1x4x4xf32>
      %cst_48 = arith.constant dense<0.000000e+00> : vector<1xf32>
      %205 = vector.multi_reduction <add>, %204, %cst_48 [1, 2] : vector<1x4x4xf32> to vector<1xf32>
      %206 = vector.shape_cast %205 : vector<1xf32> to vector<1x1x1xf32>
      %207 = vector.extract %206[0, 0, 0] : f32 from vector<1x1x1xf32>
      %208 = arith.addf %203, %207 : f32
      %209 = vector.shape_cast %105 : vector<4x4xf32> to vector<1x4x4xf32>
      %cst_49 = arith.constant dense<0.000000e+00> : vector<1xf32>
      %210 = vector.multi_reduction <add>, %209, %cst_49 [1, 2] : vector<1x4x4xf32> to vector<1xf32>
      %211 = vector.shape_cast %210 : vector<1xf32> to vector<1x1x1xf32>
      %212 = vector.extract %211[0, 0, 0] : f32 from vector<1x1x1xf32>
      %213 = arith.addf %208, %212 : f32
      %214 = vector.shape_cast %113 : vector<4x4xf32> to vector<1x4x4xf32>
      %cst_50 = arith.constant dense<0.000000e+00> : vector<1xf32>
      %215 = vector.multi_reduction <add>, %214, %cst_50 [1, 2] : vector<1x4x4xf32> to vector<1xf32>
      %216 = vector.shape_cast %215 : vector<1xf32> to vector<1x1x1xf32>
      %217 = vector.extract %216[0, 0, 0] : f32 from vector<1x1x1xf32>
      %218 = arith.addf %213, %217 : f32
      %219 = vector.broadcast %218 : f32 to vector<1x128xf32>
      %c2 = arith.constant 2 : index
      %c0_51 = arith.constant 0 : index
      %220 = vector.load %arg7[%c2, %c0_51] : memref<8x128xf32, #tpu.memory_space<vmem>>, vector<1x128xf32>
      tpu.vector_store %arg7[%c2, %c0_51], %219 {strides = array<i32>} : memref<8x128xf32, #tpu.memory_space<vmem>>, vector<1x128xf32>,
      %c128_i32 = arith.constant 128 : i32
      %221 = vector.broadcast %c128_i32 : i32 to vector<1x128xi32>
      %c2_52 = arith.constant 2 : index
      %c0_53 = arith.constant 0 : index
      %222 = vector.load %arg8[%c2_52, %c0_53] : memref<8x128xi32, #tpu.memory_space<vmem>>, vector<1x128xi32>
      tpu.vector_store %arg8[%c2_52, %c0_53], %221 {strides = array<i32>} : memref<8x128xi32, #tpu.memory_space<vmem>>, vector<1x128xi32>,
      %223 = vector.shape_cast %121 : vector<2x2xf32> to vector<1x2x2xf32>
      %cst_54 = arith.constant dense<0.000000e+00> : vector<1xf32>
      %224 = vector.multi_reduction <add>, %223, %cst_54 [1, 2] : vector<1x2x2xf32> to vector<1xf32>
      %225 = vector.shape_cast %224 : vector<1xf32> to vector<1x1x1xf32>
      %226 = vector.extract %225[0, 0, 0] : f32 from vector<1x1x1xf32>
      %cst_55 = arith.constant 0.000000e+00 : f32
      %227 = arith.addf %cst_55, %226 : f32
      %228 = vector.shape_cast %129 : vector<2x2xf32> to vector<1x2x2xf32>
      %cst_56 = arith.constant dense<0.000000e+00> : vector<1xf32>
      %229 = vector.multi_reduction <add>, %228, %cst_56 [1, 2] : vector<1x2x2xf32> to vector<1xf32>
      %230 = vector.shape_cast %229 : vector<1xf32> to vector<1x1x1xf32>
      %231 = vector.extract %230[0, 0, 0] : f32 from vector<1x1x1xf32>
      %232 = arith.addf %227, %231 : f32
      %233 = vector.shape_cast %137 : vector<2x2xf32> to vector<1x2x2xf32>
      %cst_57 = arith.constant dense<0.000000e+00> : vector<1xf32>
      %234 = vector.multi_reduction <add>, %233, %cst_57 [1, 2] : vector<1x2x2xf32> to vector<1xf32>
      %235 = vector.shape_cast %234 : vector<1xf32> to vector<1x1x1xf32>
      %236 = vector.extract %235[0, 0, 0] : f32 from vector<1x1x1xf32>
      %237 = arith.addf %232, %236 : f32
      %238 = vector.shape_cast %145 : vector<2x2xf32> to vector<1x2x2xf32>
      %cst_58 = arith.constant dense<0.000000e+00> : vector<1xf32>
      %239 = vector.multi_reduction <add>, %238, %cst_58 [1, 2] : vector<1x2x2xf32> to vector<1xf32>
      %240 = vector.shape_cast %239 : vector<1xf32> to vector<1x1x1xf32>
      %241 = vector.extract %240[0, 0, 0] : f32 from vector<1x1x1xf32>
      %242 = arith.addf %237, %241 : f32
      %243 = vector.broadcast %242 : f32 to vector<1x128xf32>
      %c3 = arith.constant 3 : index
      %c0_59 = arith.constant 0 : index
      %244 = vector.load %arg7[%c3, %c0_59] : memref<8x128xf32, #tpu.memory_space<vmem>>, vector<1x128xf32>
      tpu.vector_store %arg7[%c3, %c0_59], %243 {strides = array<i32>} : memref<8x128xf32, #tpu.memory_space<vmem>>, vector<1x128xf32>,
      %c32_i32 = arith.constant 32 : i32
      %245 = vector.broadcast %c32_i32 : i32 to vector<1x128xi32>
      %c3_60 = arith.constant 3 : index
      %c0_61 = arith.constant 0 : index
      %246 = vector.load %arg8[%c3_60, %c0_61] : memref<8x128xi32, #tpu.memory_space<vmem>>, vector<1x128xi32>
      tpu.vector_store %arg8[%c3_60, %c0_61], %245 {strides = array<i32>} : memref<8x128xi32, #tpu.memory_space<vmem>>, vector<1x128xi32>,
    } else {
    }
    %149 = arith.extui %14 : i1 to i32
    %c0_i32_28 = arith.constant 0 : i32
    %150 = arith.cmpi ne, %149, %c0_i32_28 : i32
    scf.if %150 {
      %c0_29 = arith.constant 0 : index
      %c0_30 = arith.constant 0 : index
      %151 = vector.load %arg6[%c0_29, %c0_30] : memref<16x30xf32, #tpu.memory_space<vmem>>, vector<16x30xf32>
      %cst_31 = arith.constant dense<0.000000e+00> : vector<64x30xf32>
      %152 = tpu.matmul %9, %151, %cst_31 {dimension_numbers = #tpu.dot_dimension_numbers<[1], [0], [0], [1], [0, 0, 1, 1], [], []>} : vector<64x16xf32>, vector<16x30xf32>, vector<64x30xf32> -> vector<64x30xf32>
      %c0_32 = arith.constant 0 : index
      %c0_33 = arith.constant 0 : index
      %153 = vector.load %arg4[%c0_32, %c0_33] : memref<30x16xf32, #tpu.memory_space<vmem>>, vector<30x16xf32>
      %154 = vector.extract_strided_slice %153 {offsets = [0, 0], sizes = [16, 16], strides = [1, 1]} : vector<30x16xf32> to vector<16x16xf32>
      %155 = vector.extract_strided_slice %152 {offsets = [0, 0], sizes = [16, 16], strides = [1, 1]} : vector<64x30xf32> to vector<16x16xf32>
      %cst_34 = arith.constant dense<0.000000e+00> : vector<16x16xf32>
      %156 = tpu.matmul %154, %155, %cst_34 {dimension_numbers = #tpu.dot_dimension_numbers<[1], [0], [0], [1], [0, 0, 1, 1], [], []>} : vector<16x16xf32>, vector<16x16xf32>, vector<16x16xf32> -> vector<16x16xf32>
      %cst_35 = arith.constant 5.000000e-01 : f32
      %157 = vector.broadcast %cst_35 : f32 to vector<16x16xf32>
      %158 = arith.cmpf olt, %156, %157 : vector<16x16xf32>
      %cst_36 = arith.constant 0.000000e+00 : f32
      %159 = vector.broadcast %cst_36 : f32 to vector<16x16xf32>
      %160 = arith.select %158, %25, %159 : vector<16x16xi1>, vector<16x16xf32>
      %161 = vector.shape_cast %160 : vector<16x16xf32> to vector<1x16x16xf32>
      %cst_37 = arith.constant dense<0.000000e+00> : vector<1xf32>
      %162 = vector.multi_reduction <add>, %161, %cst_37 [1, 2] : vector<1x16x16xf32> to vector<1xf32>
      %163 = vector.shape_cast %162 : vector<1xf32> to vector<1x1x1xf32>
      %164 = vector.extract %163[0, 0, 0] : f32 from vector<1x1x1xf32>
      %cst_38 = arith.constant 0.000000e+00 : f32
      %165 = arith.addf %cst_38, %164 : f32
      %166 = arith.extui %158 : vector<16x16xi1> to vector<16x16xi32>
      %167 = vector.shape_cast %166 : vector<16x16xi32> to vector<1x16x16xi32>
      %cst_39 = arith.constant dense<0> : vector<1xi32>
      %168 = vector.multi_reduction <add>, %167, %cst_39 [1, 2] : vector<1x16x16xi32> to vector<1xi32>
      %169 = vector.shape_cast %168 : vector<1xi32> to vector<1x1x1xi32>
      %170 = vector.extract %169[0, 0, 0] : i32 from vector<1x1x1xi32>
      %c2_i32 = arith.constant 2 : i32
      %171 = arith.muli %c2_i32, %170 : i32
      %c0_i32_40 = arith.constant 0 : i32
      %172 = arith.addi %c0_i32_40, %171 : i32
      %173 = vector.extract_strided_slice %153 {offsets = [0, 0], sizes = [16, 16], strides = [1, 1]} : vector<30x16xf32> to vector<16x16xf32>
      %174 = vector.extract_strided_slice %152 {offsets = [16, 0], sizes = [16, 16], strides = [1, 1]} : vector<64x30xf32> to vector<16x16xf32>
      %cst_41 = arith.constant dense<0.000000e+00> : vector<16x16xf32>
      %175 = tpu.matmul %173, %174, %cst_41 {dimension_numbers = #tpu.dot_dimension_numbers<[1], [0], [0], [1], [0, 0, 1, 1], [], []>} : vector<16x16xf32>, vector<16x16xf32>, vector<16x16xf32> -> vector<16x16xf32>
      %cst_42 = arith.constant 5.000000e-01 : f32
      %176 = vector.broadcast %cst_42 : f32 to vector<16x16xf32>
      %177 = arith.cmpf olt, %175, %176 : vector<16x16xf32>
      %cst_43 = arith.constant 0.000000e+00 : f32
      %178 = vector.broadcast %cst_43 : f32 to vector<16x16xf32>
      %179 = arith.select %177, %33, %178 : vector<16x16xi1>, vector<16x16xf32>
      %180 = vector.shape_cast %179 : vector<16x16xf32> to vector<1x16x16xf32>
      %cst_44 = arith.constant dense<0.000000e+00> : vector<1xf32>
      %181 = vector.multi_reduction <add>, %180, %cst_44 [1, 2] : vector<1x16x16xf32> to vector<1xf32>
      %182 = vector.shape_cast %181 : vector<1xf32> to vector<1x1x1xf32>
      %183 = vector.extract %182[0, 0, 0] : f32 from vector<1x1x1xf32>
      %184 = arith.addf %165, %183 : f32
      %185 = arith.extui %177 : vector<16x16xi1> to vector<16x16xi32>
      %186 = vector.shape_cast %185 : vector<16x16xi32> to vector<1x16x16xi32>
      %cst_45 = arith.constant dense<0> : vector<1xi32>
      %187 = vector.multi_reduction <add>, %186, %cst_45 [1, 2] : vector<1x16x16xi32> to vector<1xi32>
      %188 = vector.shape_cast %187 : vector<1xi32> to vector<1x1x1xi32>
      %189 = vector.extract %188[0, 0, 0] : i32 from vector<1x1x1xi32>
      %c2_i32_46 = arith.constant 2 : i32
      %190 = arith.muli %c2_i32_46, %189 : i32
      %191 = arith.addi %172, %190 : i32
      %192 = vector.extract_strided_slice %153 {offsets = [0, 0], sizes = [16, 16], strides = [1, 1]} : vector<30x16xf32> to vector<16x16xf32>
      %193 = vector.extract_strided_slice %152 {offsets = [32, 0], sizes = [16, 16], strides = [1, 1]} : vector<64x30xf32> to vector<16x16xf32>
      %cst_47 = arith.constant dense<0.000000e+00> : vector<16x16xf32>
      %194 = tpu.matmul %192, %193, %cst_47 {dimension_numbers = #tpu.dot_dimension_numbers<[1], [0], [0], [1], [0, 0, 1, 1], [], []>} : vector<16x16xf32>, vector<16x16xf32>, vector<16x16xf32> -> vector<16x16xf32>
      %cst_48 = arith.constant 5.000000e-01 : f32
      %195 = vector.broadcast %cst_48 : f32 to vector<16x16xf32>
      %196 = arith.cmpf olt, %194, %195 : vector<16x16xf32>
      %cst_49 = arith.constant 0.000000e+00 : f32
      %197 = vector.broadcast %cst_49 : f32 to vector<16x16xf32>
      %198 = arith.select %196, %41, %197 : vector<16x16xi1>, vector<16x16xf32>
      %199 = vector.shape_cast %198 : vector<16x16xf32> to vector<1x16x16xf32>
      %cst_50 = arith.constant dense<0.000000e+00> : vector<1xf32>
      %200 = vector.multi_reduction <add>, %199, %cst_50 [1, 2] : vector<1x16x16xf32> to vector<1xf32>
      %201 = vector.shape_cast %200 : vector<1xf32> to vector<1x1x1xf32>
      %202 = vector.extract %201[0, 0, 0] : f32 from vector<1x1x1xf32>
      %203 = arith.addf %184, %202 : f32
      %204 = arith.extui %196 : vector<16x16xi1> to vector<16x16xi32>
      %205 = vector.shape_cast %204 : vector<16x16xi32> to vector<1x16x16xi32>
      %cst_51 = arith.constant dense<0> : vector<1xi32>
      %206 = vector.multi_reduction <add>, %205, %cst_51 [1, 2] : vector<1x16x16xi32> to vector<1xi32>
      %207 = vector.shape_cast %206 : vector<1xi32> to vector<1x1x1xi32>
      %208 = vector.extract %207[0, 0, 0] : i32 from vector<1x1x1xi32>
      %c2_i32_52 = arith.constant 2 : i32
      %209 = arith.muli %c2_i32_52, %208 : i32
      %210 = arith.addi %191, %209 : i32
      %211 = vector.extract_strided_slice %153 {offsets = [0, 0], sizes = [16, 16], strides = [1, 1]} : vector<30x16xf32> to vector<16x16xf32>
      %212 = vector.extract_strided_slice %152 {offsets = [48, 0], sizes = [16, 16], strides = [1, 1]} : vector<64x30xf32> to vector<16x16xf32>
      %cst_53 = arith.constant dense<0.000000e+00> : vector<16x16xf32>
      %213 = tpu.matmul %211, %212, %cst_53 {dimension_numbers = #tpu.dot_dimension_numbers<[1], [0], [0], [1], [0, 0, 1, 1], [], []>} : vector<16x16xf32>, vector<16x16xf32>, vector<16x16xf32> -> vector<16x16xf32>
      %cst_54 = arith.constant 5.000000e-01 : f32
      %214 = vector.broadcast %cst_54 : f32 to vector<16x16xf32>
      %215 = arith.cmpf olt, %213, %214 : vector<16x16xf32>
      %cst_55 = arith.constant 0.000000e+00 : f32
      %216 = vector.broadcast %cst_55 : f32 to vector<16x16xf32>
      %217 = arith.select %215, %49, %216 : vector<16x16xi1>, vector<16x16xf32>
      %218 = vector.shape_cast %217 : vector<16x16xf32> to vector<1x16x16xf32>
      %cst_56 = arith.constant dense<0.000000e+00> : vector<1xf32>
      %219 = vector.multi_reduction <add>, %218, %cst_56 [1, 2] : vector<1x16x16xf32> to vector<1xf32>
      %220 = vector.shape_cast %219 : vector<1xf32> to vector<1x1x1xf32>
      %221 = vector.extract %220[0, 0, 0] : f32 from vector<1x1x1xf32>
      %222 = arith.addf %203, %221 : f32
      %223 = arith.extui %215 : vector<16x16xi1> to vector<16x16xi32>
      %224 = vector.shape_cast %223 : vector<16x16xi32> to vector<1x16x16xi32>
      %cst_57 = arith.constant dense<0> : vector<1xi32>
      %225 = vector.multi_reduction <add>, %224, %cst_57 [1, 2] : vector<1x16x16xi32> to vector<1xi32>
      %226 = vector.shape_cast %225 : vector<1xi32> to vector<1x1x1xi32>
      %227 = vector.extract %226[0, 0, 0] : i32 from vector<1x1x1xi32>
      %c2_i32_58 = arith.constant 2 : i32
      %228 = arith.muli %c2_i32_58, %227 : i32
      %229 = arith.addi %210, %228 : i32
      %230 = vector.broadcast %222 : f32 to vector<1x128xf32>
      %c0_59 = arith.constant 0 : index
      %c0_60 = arith.constant 0 : index
      %231 = vector.load %arg7[%c0_59, %c0_60] : memref<8x128xf32, #tpu.memory_space<vmem>>, vector<1x128xf32>
      tpu.vector_store %arg7[%c0_59, %c0_60], %230 {strides = array<i32>} : memref<8x128xf32, #tpu.memory_space<vmem>>, vector<1x128xf32>,
      %232 = vector.broadcast %229 : i32 to vector<1x128xi32>
      %c0_61 = arith.constant 0 : index
      %c0_62 = arith.constant 0 : index
      %233 = vector.load %arg8[%c0_61, %c0_62] : memref<8x128xi32, #tpu.memory_space<vmem>>, vector<1x128xi32>
      tpu.vector_store %arg8[%c0_61, %c0_62], %232 {strides = array<i32>} : memref<8x128xi32, #tpu.memory_space<vmem>>, vector<1x128xi32>,
      %234 = vector.extract_strided_slice %153 {offsets = [16, 0], sizes = [8, 16], strides = [1, 1]} : vector<30x16xf32> to vector<8x16xf32>
      %235 = vector.extract_strided_slice %152 {offsets = [0, 16], sizes = [16, 8], strides = [1, 1]} : vector<64x30xf32> to vector<16x8xf32>
      %cst_63 = arith.constant dense<0.000000e+00> : vector<8x8xf32>
      %236 = tpu.matmul %234, %235, %cst_63 {dimension_numbers = #tpu.dot_dimension_numbers<[1], [0], [0], [1], [0, 0, 1, 1], [], []>} : vector<8x16xf32>, vector<16x8xf32>, vector<8x8xf32> -> vector<8x8xf32>
      %cst_64 = arith.constant 5.000000e-01 : f32
      %237 = vector.broadcast %cst_64 : f32 to vector<8x8xf32>
      %238 = arith.cmpf olt, %236, %237 : vector<8x8xf32>
      %cst_65 = arith.constant 0.000000e+00 : f32
      %239 = vector.broadcast %cst_65 : f32 to vector<8x8xf32>
      %240 = arith.select %238, %57, %239 : vector<8x8xi1>, vector<8x8xf32>
      %241 = vector.shape_cast %240 : vector<8x8xf32> to vector<1x8x8xf32>
      %cst_66 = arith.constant dense<0.000000e+00> : vector<1xf32>
      %242 = vector.multi_reduction <add>, %241, %cst_66 [1, 2] : vector<1x8x8xf32> to vector<1xf32>
      %243 = vector.shape_cast %242 : vector<1xf32> to vector<1x1x1xf32>
      %244 = vector.extract %243[0, 0, 0] : f32 from vector<1x1x1xf32>
      %cst_67 = arith.constant 0.000000e+00 : f32
      %245 = arith.addf %cst_67, %244 : f32
      %246 = arith.extui %238 : vector<8x8xi1> to vector<8x8xi32>
      %247 = vector.shape_cast %246 : vector<8x8xi32> to vector<1x8x8xi32>
      %cst_68 = arith.constant dense<0> : vector<1xi32>
      %248 = vector.multi_reduction <add>, %247, %cst_68 [1, 2] : vector<1x8x8xi32> to vector<1xi32>
      %249 = vector.shape_cast %248 : vector<1xi32> to vector<1x1x1xi32>
      %250 = vector.extract %249[0, 0, 0] : i32 from vector<1x1x1xi32>
      %c2_i32_69 = arith.constant 2 : i32
      %251 = arith.muli %c2_i32_69, %250 : i32
      %c0_i32_70 = arith.constant 0 : i32
      %252 = arith.addi %c0_i32_70, %251 : i32
      %253 = vector.extract_strided_slice %153 {offsets = [16, 0], sizes = [8, 16], strides = [1, 1]} : vector<30x16xf32> to vector<8x16xf32>
      %254 = vector.extract_strided_slice %152 {offsets = [16, 16], sizes = [16, 8], strides = [1, 1]} : vector<64x30xf32> to vector<16x8xf32>
      %cst_71 = arith.constant dense<0.000000e+00> : vector<8x8xf32>
      %255 = tpu.matmul %253, %254, %cst_71 {dimension_numbers = #tpu.dot_dimension_numbers<[1], [0], [0], [1], [0, 0, 1, 1], [], []>} : vector<8x16xf32>, vector<16x8xf32>, vector<8x8xf32> -> vector<8x8xf32>
      %cst_72 = arith.constant 5.000000e-01 : f32
      %256 = vector.broadcast %cst_72 : f32 to vector<8x8xf32>
      %257 = arith.cmpf olt, %255, %256 : vector<8x8xf32>
      %cst_73 = arith.constant 0.000000e+00 : f32
      %258 = vector.broadcast %cst_73 : f32 to vector<8x8xf32>
      %259 = arith.select %257, %65, %258 : vector<8x8xi1>, vector<8x8xf32>
      %260 = vector.shape_cast %259 : vector<8x8xf32> to vector<1x8x8xf32>
      %cst_74 = arith.constant dense<0.000000e+00> : vector<1xf32>
      %261 = vector.multi_reduction <add>, %260, %cst_74 [1, 2] : vector<1x8x8xf32> to vector<1xf32>
      %262 = vector.shape_cast %261 : vector<1xf32> to vector<1x1x1xf32>
      %263 = vector.extract %262[0, 0, 0] : f32 from vector<1x1x1xf32>
      %264 = arith.addf %245, %263 : f32
      %265 = arith.extui %257 : vector<8x8xi1> to vector<8x8xi32>
      %266 = vector.shape_cast %265 : vector<8x8xi32> to vector<1x8x8xi32>
      %cst_75 = arith.constant dense<0> : vector<1xi32>
      %267 = vector.multi_reduction <add>, %266, %cst_75 [1, 2] : vector<1x8x8xi32> to vector<1xi32>
      %268 = vector.shape_cast %267 : vector<1xi32> to vector<1x1x1xi32>
      %269 = vector.extract %268[0, 0, 0] : i32 from vector<1x1x1xi32>
      %c2_i32_76 = arith.constant 2 : i32
      %270 = arith.muli %c2_i32_76, %269 : i32
      %271 = arith.addi %252, %270 : i32
      %272 = vector.extract_strided_slice %153 {offsets = [16, 0], sizes = [8, 16], strides = [1, 1]} : vector<30x16xf32> to vector<8x16xf32>
      %273 = vector.extract_strided_slice %152 {offsets = [32, 16], sizes = [16, 8], strides = [1, 1]} : vector<64x30xf32> to vector<16x8xf32>
      %cst_77 = arith.constant dense<0.000000e+00> : vector<8x8xf32>
      %274 = tpu.matmul %272, %273, %cst_77 {dimension_numbers = #tpu.dot_dimension_numbers<[1], [0], [0], [1], [0, 0, 1, 1], [], []>} : vector<8x16xf32>, vector<16x8xf32>, vector<8x8xf32> -> vector<8x8xf32>
      %cst_78 = arith.constant 5.000000e-01 : f32
      %275 = vector.broadcast %cst_78 : f32 to vector<8x8xf32>
      %276 = arith.cmpf olt, %274, %275 : vector<8x8xf32>
      %cst_79 = arith.constant 0.000000e+00 : f32
      %277 = vector.broadcast %cst_79 : f32 to vector<8x8xf32>
      %278 = arith.select %276, %73, %277 : vector<8x8xi1>, vector<8x8xf32>
      %279 = vector.shape_cast %278 : vector<8x8xf32> to vector<1x8x8xf32>
      %cst_80 = arith.constant dense<0.000000e+00> : vector<1xf32>
      %280 = vector.multi_reduction <add>, %279, %cst_80 [1, 2] : vector<1x8x8xf32> to vector<1xf32>
      %281 = vector.shape_cast %280 : vector<1xf32> to vector<1x1x1xf32>
      %282 = vector.extract %281[0, 0, 0] : f32 from vector<1x1x1xf32>
      %283 = arith.addf %264, %282 : f32
      %284 = arith.extui %276 : vector<8x8xi1> to vector<8x8xi32>
      %285 = vector.shape_cast %284 : vector<8x8xi32> to vector<1x8x8xi32>
      %cst_81 = arith.constant dense<0> : vector<1xi32>
      %286 = vector.multi_reduction <add>, %285, %cst_81 [1, 2] : vector<1x8x8xi32> to vector<1xi32>
      %287 = vector.shape_cast %286 : vector<1xi32> to vector<1x1x1xi32>
      %288 = vector.extract %287[0, 0, 0] : i32 from vector<1x1x1xi32>
      %c2_i32_82 = arith.constant 2 : i32
      %289 = arith.muli %c2_i32_82, %288 : i32
      %290 = arith.addi %271, %289 : i32
      %291 = vector.extract_strided_slice %153 {offsets = [16, 0], sizes = [8, 16], strides = [1, 1]} : vector<30x16xf32> to vector<8x16xf32>
      %292 = vector.extract_strided_slice %152 {offsets = [48, 16], sizes = [16, 8], strides = [1, 1]} : vector<64x30xf32> to vector<16x8xf32>
      %cst_83 = arith.constant dense<0.000000e+00> : vector<8x8xf32>
      %293 = tpu.matmul %291, %292, %cst_83 {dimension_numbers = #tpu.dot_dimension_numbers<[1], [0], [0], [1], [0, 0, 1, 1], [], []>} : vector<8x16xf32>, vector<16x8xf32>, vector<8x8xf32> -> vector<8x8xf32>
      %cst_84 = arith.constant 5.000000e-01 : f32
      %294 = vector.broadcast %cst_84 : f32 to vector<8x8xf32>
      %295 = arith.cmpf olt, %293, %294 : vector<8x8xf32>
      %cst_85 = arith.constant 0.000000e+00 : f32
      %296 = vector.broadcast %cst_85 : f32 to vector<8x8xf32>
      %297 = arith.select %295, %81, %296 : vector<8x8xi1>, vector<8x8xf32>
      %298 = vector.shape_cast %297 : vector<8x8xf32> to vector<1x8x8xf32>
      %cst_86 = arith.constant dense<0.000000e+00> : vector<1xf32>
      %299 = vector.multi_reduction <add>, %298, %cst_86 [1, 2] : vector<1x8x8xf32> to vector<1xf32>
      %300 = vector.shape_cast %299 : vector<1xf32> to vector<1x1x1xf32>
      %301 = vector.extract %300[0, 0, 0] : f32 from vector<1x1x1xf32>
      %302 = arith.addf %283, %301 : f32
      %303 = arith.extui %295 : vector<8x8xi1> to vector<8x8xi32>
      %304 = vector.shape_cast %303 : vector<8x8xi32> to vector<1x8x8xi32>
      %cst_87 = arith.constant dense<0> : vector<1xi32>
      %305 = vector.multi_reduction <add>, %304, %cst_87 [1, 2] : vector<1x8x8xi32> to vector<1xi32>
      %306 = vector.shape_cast %305 : vector<1xi32> to vector<1x1x1xi32>
      %307 = vector.extract %306[0, 0, 0] : i32 from vector<1x1x1xi32>
      %c2_i32_88 = arith.constant 2 : i32
      %308 = arith.muli %c2_i32_88, %307 : i32
      %309 = arith.addi %290, %308 : i32
      %310 = vector.broadcast %302 : f32 to vector<1x128xf32>
      %c1 = arith.constant 1 : index
      %c0_89 = arith.constant 0 : index
      %311 = vector.load %arg7[%c1, %c0_89] : memref<8x128xf32, #tpu.memory_space<vmem>>, vector<1x128xf32>
      tpu.vector_store %arg7[%c1, %c0_89], %310 {strides = array<i32>} : memref<8x128xf32, #tpu.memory_space<vmem>>, vector<1x128xf32>,
      %312 = vector.broadcast %309 : i32 to vector<1x128xi32>
      %c1_90 = arith.constant 1 : index
      %c0_91 = arith.constant 0 : index
      %313 = vector.load %arg8[%c1_90, %c0_91] : memref<8x128xi32, #tpu.memory_space<vmem>>, vector<1x128xi32>
      tpu.vector_store %arg8[%c1_90, %c0_91], %312 {strides = array<i32>} : memref<8x128xi32, #tpu.memory_space<vmem>>, vector<1x128xi32>,
      %314 = vector.extract_strided_slice %153 {offsets = [24, 0], sizes = [4, 16], strides = [1, 1]} : vector<30x16xf32> to vector<4x16xf32>
      %315 = vector.extract_strided_slice %152 {offsets = [0, 24], sizes = [16, 4], strides = [1, 1]} : vector<64x30xf32> to vector<16x4xf32>
      %cst_92 = arith.constant dense<0.000000e+00> : vector<4x4xf32>
      %316 = tpu.matmul %314, %315, %cst_92 {dimension_numbers = #tpu.dot_dimension_numbers<[1], [0], [0], [1], [0, 0, 1, 1], [], []>} : vector<4x16xf32>, vector<16x4xf32>, vector<4x4xf32> -> vector<4x4xf32>
      %cst_93 = arith.constant 5.000000e-01 : f32
      %317 = vector.broadcast %cst_93 : f32 to vector<4x4xf32>
      %318 = arith.cmpf olt, %316, %317 : vector<4x4xf32>
      %cst_94 = arith.constant 0.000000e+00 : f32
      %319 = vector.broadcast %cst_94 : f32 to vector<4x4xf32>
      %320 = arith.select %318, %89, %319 : vector<4x4xi1>, vector<4x4xf32>
      %321 = vector.shape_cast %320 : vector<4x4xf32> to vector<1x4x4xf32>
      %cst_95 = arith.constant dense<0.000000e+00> : vector<1xf32>
      %322 = vector.multi_reduction <add>, %321, %cst_95 [1, 2] : vector<1x4x4xf32> to vector<1xf32>
      %323 = vector.shape_cast %322 : vector<1xf32> to vector<1x1x1xf32>
      %324 = vector.extract %323[0, 0, 0] : f32 from vector<1x1x1xf32>
      %cst_96 = arith.constant 0.000000e+00 : f32
      %325 = arith.addf %cst_96, %324 : f32
      %326 = arith.extui %318 : vector<4x4xi1> to vector<4x4xi32>
      %327 = vector.shape_cast %326 : vector<4x4xi32> to vector<1x4x4xi32>
      %cst_97 = arith.constant dense<0> : vector<1xi32>
      %328 = vector.multi_reduction <add>, %327, %cst_97 [1, 2] : vector<1x4x4xi32> to vector<1xi32>
      %329 = vector.shape_cast %328 : vector<1xi32> to vector<1x1x1xi32>
      %330 = vector.extract %329[0, 0, 0] : i32 from vector<1x1x1xi32>
      %c2_i32_98 = arith.constant 2 : i32
      %331 = arith.muli %c2_i32_98, %330 : i32
      %c0_i32_99 = arith.constant 0 : i32
      %332 = arith.addi %c0_i32_99, %331 : i32
      %333 = vector.extract_strided_slice %153 {offsets = [24, 0], sizes = [4, 16], strides = [1, 1]} : vector<30x16xf32> to vector<4x16xf32>
      %334 = vector.extract_strided_slice %152 {offsets = [16, 24], sizes = [16, 4], strides = [1, 1]} : vector<64x30xf32> to vector<16x4xf32>
      %cst_100 = arith.constant dense<0.000000e+00> : vector<4x4xf32>
      %335 = tpu.matmul %333, %334, %cst_100 {dimension_numbers = #tpu.dot_dimension_numbers<[1], [0], [0], [1], [0, 0, 1, 1], [], []>} : vector<4x16xf32>, vector<16x4xf32>, vector<4x4xf32> -> vector<4x4xf32>
      %cst_101 = arith.constant 5.000000e-01 : f32
      %336 = vector.broadcast %cst_101 : f32 to vector<4x4xf32>
      %337 = arith.cmpf olt, %335, %336 : vector<4x4xf32>
      %cst_102 = arith.constant 0.000000e+00 : f32
      %338 = vector.broadcast %cst_102 : f32 to vector<4x4xf32>
      %339 = arith.select %337, %97, %338 : vector<4x4xi1>, vector<4x4xf32>
      %340 = vector.shape_cast %339 : vector<4x4xf32> to vector<1x4x4xf32>
      %cst_103 = arith.constant dense<0.000000e+00> : vector<1xf32>
      %341 = vector.multi_reduction <add>, %340, %cst_103 [1, 2] : vector<1x4x4xf32> to vector<1xf32>
      %342 = vector.shape_cast %341 : vector<1xf32> to vector<1x1x1xf32>
      %343 = vector.extract %342[0, 0, 0] : f32 from vector<1x1x1xf32>
      %344 = arith.addf %325, %343 : f32
      %345 = arith.extui %337 : vector<4x4xi1> to vector<4x4xi32>
      %346 = vector.shape_cast %345 : vector<4x4xi32> to vector<1x4x4xi32>
      %cst_104 = arith.constant dense<0> : vector<1xi32>
      %347 = vector.multi_reduction <add>, %346, %cst_104 [1, 2] : vector<1x4x4xi32> to vector<1xi32>
      %348 = vector.shape_cast %347 : vector<1xi32> to vector<1x1x1xi32>
      %349 = vector.extract %348[0, 0, 0] : i32 from vector<1x1x1xi32>
      %c2_i32_105 = arith.constant 2 : i32
      %350 = arith.muli %c2_i32_105, %349 : i32
      %351 = arith.addi %332, %350 : i32
      %352 = vector.extract_strided_slice %153 {offsets = [24, 0], sizes = [4, 16], strides = [1, 1]} : vector<30x16xf32> to vector<4x16xf32>
      %353 = vector.extract_strided_slice %152 {offsets = [32, 24], sizes = [16, 4], strides = [1, 1]} : vector<64x30xf32> to vector<16x4xf32>
      %cst_106 = arith.constant dense<0.000000e+00> : vector<4x4xf32>
      %354 = tpu.matmul %352, %353, %cst_106 {dimension_numbers = #tpu.dot_dimension_numbers<[1], [0], [0], [1], [0, 0, 1, 1], [], []>} : vector<4x16xf32>, vector<16x4xf32>, vector<4x4xf32> -> vector<4x4xf32>
      %cst_107 = arith.constant 5.000000e-01 : f32
      %355 = vector.broadcast %cst_107 : f32 to vector<4x4xf32>
      %356 = arith.cmpf olt, %354, %355 : vector<4x4xf32>
      %cst_108 = arith.constant 0.000000e+00 : f32
      %357 = vector.broadcast %cst_108 : f32 to vector<4x4xf32>
      %358 = arith.select %356, %105, %357 : vector<4x4xi1>, vector<4x4xf32>
      %359 = vector.shape_cast %358 : vector<4x4xf32> to vector<1x4x4xf32>
      %cst_109 = arith.constant dense<0.000000e+00> : vector<1xf32>
      %360 = vector.multi_reduction <add>, %359, %cst_109 [1, 2] : vector<1x4x4xf32> to vector<1xf32>
      %361 = vector.shape_cast %360 : vector<1xf32> to vector<1x1x1xf32>
      %362 = vector.extract %361[0, 0, 0] : f32 from vector<1x1x1xf32>
      %363 = arith.addf %344, %362 : f32
      %364 = arith.extui %356 : vector<4x4xi1> to vector<4x4xi32>
      %365 = vector.shape_cast %364 : vector<4x4xi32> to vector<1x4x4xi32>
      %cst_110 = arith.constant dense<0> : vector<1xi32>
      %366 = vector.multi_reduction <add>, %365, %cst_110 [1, 2] : vector<1x4x4xi32> to vector<1xi32>
      %367 = vector.shape_cast %366 : vector<1xi32> to vector<1x1x1xi32>
      %368 = vector.extract %367[0, 0, 0] : i32 from vector<1x1x1xi32>
      %c2_i32_111 = arith.constant 2 : i32
      %369 = arith.muli %c2_i32_111, %368 : i32
      %370 = arith.addi %351, %369 : i32
      %371 = vector.extract_strided_slice %153 {offsets = [24, 0], sizes = [4, 16], strides = [1, 1]} : vector<30x16xf32> to vector<4x16xf32>
      %372 = vector.extract_strided_slice %152 {offsets = [48, 24], sizes = [16, 4], strides = [1, 1]} : vector<64x30xf32> to vector<16x4xf32>
      %cst_112 = arith.constant dense<0.000000e+00> : vector<4x4xf32>
      %373 = tpu.matmul %371, %372, %cst_112 {dimension_numbers = #tpu.dot_dimension_numbers<[1], [0], [0], [1], [0, 0, 1, 1], [], []>} : vector<4x16xf32>, vector<16x4xf32>, vector<4x4xf32> -> vector<4x4xf32>
      %cst_113 = arith.constant 5.000000e-01 : f32
      %374 = vector.broadcast %cst_113 : f32 to vector<4x4xf32>
      %375 = arith.cmpf olt, %373, %374 : vector<4x4xf32>
      %cst_114 = arith.constant 0.000000e+00 : f32
      %376 = vector.broadcast %cst_114 : f32 to vector<4x4xf32>
      %377 = arith.select %375, %113, %376 : vector<4x4xi1>, vector<4x4xf32>
      %378 = vector.shape_cast %377 : vector<4x4xf32> to vector<1x4x4xf32>
      %cst_115 = arith.constant dense<0.000000e+00> : vector<1xf32>
      %379 = vector.multi_reduction <add>, %378, %cst_115 [1, 2] : vector<1x4x4xf32> to vector<1xf32>
      %380 = vector.shape_cast %379 : vector<1xf32> to vector<1x1x1xf32>
      %381 = vector.extract %380[0, 0, 0] : f32 from vector<1x1x1xf32>
      %382 = arith.addf %363, %381 : f32
      %383 = arith.extui %375 : vector<4x4xi1> to vector<4x4xi32>
      %384 = vector.shape_cast %383 : vector<4x4xi32> to vector<1x4x4xi32>
      %cst_116 = arith.constant dense<0> : vector<1xi32>
      %385 = vector.multi_reduction <add>, %384, %cst_116 [1, 2] : vector<1x4x4xi32> to vector<1xi32>
      %386 = vector.shape_cast %385 : vector<1xi32> to vector<1x1x1xi32>
      %387 = vector.extract %386[0, 0, 0] : i32 from vector<1x1x1xi32>
      %c2_i32_117 = arith.constant 2 : i32
      %388 = arith.muli %c2_i32_117, %387 : i32
      %389 = arith.addi %370, %388 : i32
      %390 = vector.broadcast %382 : f32 to vector<1x128xf32>
      %c2 = arith.constant 2 : index
      %c0_118 = arith.constant 0 : index
      %391 = vector.load %arg7[%c2, %c0_118] : memref<8x128xf32, #tpu.memory_space<vmem>>, vector<1x128xf32>
      tpu.vector_store %arg7[%c2, %c0_118], %390 {strides = array<i32>} : memref<8x128xf32, #tpu.memory_space<vmem>>, vector<1x128xf32>,
      %392 = vector.broadcast %389 : i32 to vector<1x128xi32>
      %c2_119 = arith.constant 2 : index
      %c0_120 = arith.constant 0 : index
      %393 = vector.load %arg8[%c2_119, %c0_120] : memref<8x128xi32, #tpu.memory_space<vmem>>, vector<1x128xi32>
      tpu.vector_store %arg8[%c2_119, %c0_120], %392 {strides = array<i32>} : memref<8x128xi32, #tpu.memory_space<vmem>>, vector<1x128xi32>,
      %394 = vector.extract_strided_slice %153 {offsets = [28, 0], sizes = [2, 16], strides = [1, 1]} : vector<30x16xf32> to vector<2x16xf32>
      %395 = vector.extract_strided_slice %152 {offsets = [0, 28], sizes = [16, 2], strides = [1, 1]} : vector<64x30xf32> to vector<16x2xf32>
      %cst_121 = arith.constant dense<0.000000e+00> : vector<2x2xf32>
      %396 = tpu.matmul %394, %395, %cst_121 {dimension_numbers = #tpu.dot_dimension_numbers<[1], [0], [0], [1], [0, 0, 1, 1], [], []>} : vector<2x16xf32>, vector<16x2xf32>, vector<2x2xf32> -> vector<2x2xf32>
      %cst_122 = arith.constant 5.000000e-01 : f32
      %397 = vector.broadcast %cst_122 : f32 to vector<2x2xf32>
      %398 = arith.cmpf olt, %396, %397 : vector<2x2xf32>
      %cst_123 = arith.constant 0.000000e+00 : f32
      %399 = vector.broadcast %cst_123 : f32 to vector<2x2xf32>
      %400 = arith.select %398, %121, %399 : vector<2x2xi1>, vector<2x2xf32>
      %401 = vector.shape_cast %400 : vector<2x2xf32> to vector<1x2x2xf32>
      %cst_124 = arith.constant dense<0.000000e+00> : vector<1xf32>
      %402 = vector.multi_reduction <add>, %401, %cst_124 [1, 2] : vector<1x2x2xf32> to vector<1xf32>
      %403 = vector.shape_cast %402 : vector<1xf32> to vector<1x1x1xf32>
      %404 = vector.extract %403[0, 0, 0] : f32 from vector<1x1x1xf32>
      %cst_125 = arith.constant 0.000000e+00 : f32
      %405 = arith.addf %cst_125, %404 : f32
      %406 = arith.extui %398 : vector<2x2xi1> to vector<2x2xi32>
      %407 = vector.shape_cast %406 : vector<2x2xi32> to vector<1x2x2xi32>
      %cst_126 = arith.constant dense<0> : vector<1xi32>
      %408 = vector.multi_reduction <add>, %407, %cst_126 [1, 2] : vector<1x2x2xi32> to vector<1xi32>
      %409 = vector.shape_cast %408 : vector<1xi32> to vector<1x1x1xi32>
      %410 = vector.extract %409[0, 0, 0] : i32 from vector<1x1x1xi32>
      %c2_i32_127 = arith.constant 2 : i32
      %411 = arith.muli %c2_i32_127, %410 : i32
      %c0_i32_128 = arith.constant 0 : i32
      %412 = arith.addi %c0_i32_128, %411 : i32
      %413 = vector.extract_strided_slice %153 {offsets = [28, 0], sizes = [2, 16], strides = [1, 1]} : vector<30x16xf32> to vector<2x16xf32>
      %414 = vector.extract_strided_slice %152 {offsets = [16, 28], sizes = [16, 2], strides = [1, 1]} : vector<64x30xf32> to vector<16x2xf32>
      %cst_129 = arith.constant dense<0.000000e+00> : vector<2x2xf32>
      %415 = tpu.matmul %413, %414, %cst_129 {dimension_numbers = #tpu.dot_dimension_numbers<[1], [0], [0], [1], [0, 0, 1, 1], [], []>} : vector<2x16xf32>, vector<16x2xf32>, vector<2x2xf32> -> vector<2x2xf32>
      %cst_130 = arith.constant 5.000000e-01 : f32
      %416 = vector.broadcast %cst_130 : f32 to vector<2x2xf32>
      %417 = arith.cmpf olt, %415, %416 : vector<2x2xf32>
      %cst_131 = arith.constant 0.000000e+00 : f32
      %418 = vector.broadcast %cst_131 : f32 to vector<2x2xf32>
      %419 = arith.select %417, %129, %418 : vector<2x2xi1>, vector<2x2xf32>
      %420 = vector.shape_cast %419 : vector<2x2xf32> to vector<1x2x2xf32>
      %cst_132 = arith.constant dense<0.000000e+00> : vector<1xf32>
      %421 = vector.multi_reduction <add>, %420, %cst_132 [1, 2] : vector<1x2x2xf32> to vector<1xf32>
      %422 = vector.shape_cast %421 : vector<1xf32> to vector<1x1x1xf32>
      %423 = vector.extract %422[0, 0, 0] : f32 from vector<1x1x1xf32>
      %424 = arith.addf %405, %423 : f32
      %425 = arith.extui %417 : vector<2x2xi1> to vector<2x2xi32>
      %426 = vector.shape_cast %425 : vector<2x2xi32> to vector<1x2x2xi32>
      %cst_133 = arith.constant dense<0> : vector<1xi32>
      %427 = vector.multi_reduction <add>, %426, %cst_133 [1, 2] : vector<1x2x2xi32> to vector<1xi32>
      %428 = vector.shape_cast %427 : vector<1xi32> to vector<1x1x1xi32>
      %429 = vector.extract %428[0, 0, 0] : i32 from vector<1x1x1xi32>
      %c2_i32_134 = arith.constant 2 : i32
      %430 = arith.muli %c2_i32_134, %429 : i32
      %431 = arith.addi %412, %430 : i32
      %432 = vector.extract_strided_slice %153 {offsets = [28, 0], sizes = [2, 16], strides = [1, 1]} : vector<30x16xf32> to vector<2x16xf32>
      %433 = vector.extract_strided_slice %152 {offsets = [32, 28], sizes = [16, 2], strides = [1, 1]} : vector<64x30xf32> to vector<16x2xf32>
      %cst_135 = arith.constant dense<0.000000e+00> : vector<2x2xf32>
      %434 = tpu.matmul %432, %433, %cst_135 {dimension_numbers = #tpu.dot_dimension_numbers<[1], [0], [0], [1], [0, 0, 1, 1], [], []>} : vector<2x16xf32>, vector<16x2xf32>, vector<2x2xf32> -> vector<2x2xf32>
      %cst_136 = arith.constant 5.000000e-01 : f32
      %435 = vector.broadcast %cst_136 : f32 to vector<2x2xf32>
      %436 = arith.cmpf olt, %434, %435 : vector<2x2xf32>
      %cst_137 = arith.constant 0.000000e+00 : f32
      %437 = vector.broadcast %cst_137 : f32 to vector<2x2xf32>
      %438 = arith.select %436, %137, %437 : vector<2x2xi1>, vector<2x2xf32>
      %439 = vector.shape_cast %438 : vector<2x2xf32> to vector<1x2x2xf32>
      %cst_138 = arith.constant dense<0.000000e+00> : vector<1xf32>
      %440 = vector.multi_reduction <add>, %439, %cst_138 [1, 2] : vector<1x2x2xf32> to vector<1xf32>
      %441 = vector.shape_cast %440 : vector<1xf32> to vector<1x1x1xf32>
      %442 = vector.extract %441[0, 0, 0] : f32 from vector<1x1x1xf32>
      %443 = arith.addf %424, %442 : f32
      %444 = arith.extui %436 : vector<2x2xi1> to vector<2x2xi32>
      %445 = vector.shape_cast %444 : vector<2x2xi32> to vector<1x2x2xi32>
      %cst_139 = arith.constant dense<0> : vector<1xi32>
      %446 = vector.multi_reduction <add>, %445, %cst_139 [1, 2] : vector<1x2x2xi32> to vector<1xi32>
      %447 = vector.shape_cast %446 : vector<1xi32> to vector<1x1x1xi32>
      %448 = vector.extract %447[0, 0, 0] : i32 from vector<1x1x1xi32>
      %c2_i32_140 = arith.constant 2 : i32
      %449 = arith.muli %c2_i32_140, %448 : i32
      %450 = arith.addi %431, %449 : i32
      %451 = vector.extract_strided_slice %153 {offsets = [28, 0], sizes = [2, 16], strides = [1, 1]} : vector<30x16xf32> to vector<2x16xf32>
      %452 = vector.extract_strided_slice %152 {offsets = [48, 28], sizes = [16, 2], strides = [1, 1]} : vector<64x30xf32> to vector<16x2xf32>
      %cst_141 = arith.constant dense<0.000000e+00> : vector<2x2xf32>
      %453 = tpu.matmul %451, %452, %cst_141 {dimension_numbers = #tpu.dot_dimension_numbers<[1], [0], [0], [1], [0, 0, 1, 1], [], []>} : vector<2x16xf32>, vector<16x2xf32>, vector<2x2xf32> -> vector<2x2xf32>
      %cst_142 = arith.constant 5.000000e-01 : f32
      %454 = vector.broadcast %cst_142 : f32 to vector<2x2xf32>
      %455 = arith.cmpf olt, %453, %454 : vector<2x2xf32>
      %cst_143 = arith.constant 0.000000e+00 : f32
      %456 = vector.broadcast %cst_143 : f32 to vector<2x2xf32>
      %457 = arith.select %455, %145, %456 : vector<2x2xi1>, vector<2x2xf32>
      %458 = vector.shape_cast %457 : vector<2x2xf32> to vector<1x2x2xf32>
      %cst_144 = arith.constant dense<0.000000e+00> : vector<1xf32>
      %459 = vector.multi_reduction <add>, %458, %cst_144 [1, 2] : vector<1x2x2xf32> to vector<1xf32>
      %460 = vector.shape_cast %459 : vector<1xf32> to vector<1x1x1xf32>
      %461 = vector.extract %460[0, 0, 0] : f32 from vector<1x1x1xf32>
      %462 = arith.addf %443, %461 : f32
      %463 = arith.extui %455 : vector<2x2xi1> to vector<2x2xi32>
      %464 = vector.shape_cast %463 : vector<2x2xi32> to vector<1x2x2xi32>
      %cst_145 = arith.constant dense<0> : vector<1xi32>
      %465 = vector.multi_reduction <add>, %464, %cst_145 [1, 2] : vector<1x2x2xi32> to vector<1xi32>
      %466 = vector.shape_cast %465 : vector<1xi32> to vector<1x1x1xi32>
      %467 = vector.extract %466[0, 0, 0] : i32 from vector<1x1x1xi32>
      %c2_i32_146 = arith.constant 2 : i32
      %468 = arith.muli %c2_i32_146, %467 : i32
      %469 = arith.addi %450, %468 : i32
      %470 = vector.broadcast %462 : f32 to vector<1x128xf32>
      %c3 = arith.constant 3 : index
      %c0_147 = arith.constant 0 : index
      %471 = vector.load %arg7[%c3, %c0_147] : memref<8x128xf32, #tpu.memory_space<vmem>>, vector<1x128xf32>
      tpu.vector_store %arg7[%c3, %c0_147], %470 {strides = array<i32>} : memref<8x128xf32, #tpu.memory_space<vmem>>, vector<1x128xf32>,
      %472 = vector.broadcast %469 : i32 to vector<1x128xi32>
      %c3_148 = arith.constant 3 : index
      %c0_149 = arith.constant 0 : index
      %473 = vector.load %arg8[%c3_148, %c0_149] : memref<8x128xi32, #tpu.memory_space<vmem>>, vector<1x128xi32>
      tpu.vector_store %arg8[%c3_148, %c0_149], %472 {strides = array<i32>} : memref<8x128xi32, #tpu.memory_space<vmem>>, vector<1x128xi32>,
    } else {
    }
    return
  }
  func.func @transform_0(%arg0: i32) -> (i32, i32, i32) {
    %c0_i32 = arith.constant 0 : i32
    %c0_i32_0 = arith.constant 0 : i32
    %c0_i32_1 = arith.constant 0 : i32
    return %arg0, %c0_i32, %c0_i32_0 : i32, i32, i32
  }
  func.func @transform_1(%arg0: i32) -> (i32, i32, i32) {
    %c0_i32 = arith.constant 0 : i32
    %c0_i32_0 = arith.constant 0 : i32
    %c0_i32_1 = arith.constant 0 : i32
    return %arg0, %c0_i32, %c0_i32_0 : i32, i32, i32
  }
  func.func @transform_2(%arg0: i32) -> (i32, i32) {
    %c0_i32 = arith.constant 0 : i32
    %c0_i32_0 = arith.constant 0 : i32
    %c0_i32_1 = arith.constant 0 : i32
    return %c0_i32, %c0_i32_0 : i32, i32
  }
  func.func @transform_3(%arg0: i32) -> (i32, i32) {
    %c0_i32 = arith.constant 0 : i32
    %c0_i32_0 = arith.constant 0 : i32
    %c0_i32_1 = arith.constant 0 : i32
    return %c0_i32, %c0_i32_0 : i32, i32
  }
  func.func @transform_4(%arg0: i32) -> (i32, i32) {
    %c0_i32 = arith.constant 0 : i32
    %c0_i32_0 = arith.constant 0 : i32
    %c0_i32_1 = arith.constant 0 : i32
    return %c0_i32, %c0_i32_0 : i32, i32
  }
  func.func @transform_5(%arg0: i32) -> (i32, i32) {
    %c0_i32 = arith.constant 0 : i32
    %c0_i32_0 = arith.constant 0 : i32
    %c0_i32_1 = arith.constant 0 : i32
    return %c0_i32, %c0_i32_0 : i32, i32
  }
  func.func @transform_6(%arg0: i32) -> (i32, i32) {
    %c0_i32 = arith.constant 0 : i32
    %c0_i32_0 = arith.constant 0 : i32
    return %arg0, %c0_i32 : i32, i32
  }
  func.func @transform_7(%arg0: i32) -> (i32, i32) {
    %c0_i32 = arith.constant 0 : i32
    %c0_i32_0 = arith.constant 0 : i32
    return %arg0, %c0_i32 : i32, i32
  }
}

</mosaic_0001>

<llo_original>
// kernel: multi_scale_gradient_loss.1
$region0: #{multi_scale_gradient_loss.1}
  #allocation0 [shape = 'u32[]', space=smem, size = 0x4, offset = 0x4, fixed_abs, tag = 'smem constant byte address 0x4 - core index']
  #allocation1 [shape = 'u32[144,128]{1,0:T(1,128)}', space=vmem, size = 0x12000, scoped, tag = 'internal scratch']
  %s0 = inlined_call_operand.hbm [shape: f32[8,16,16], index: 0, kind: input, shape index: {}]
  %s1 = inlined_call_operand.hbm [shape: f32[8,16,16], index: 1, kind: input, shape index: {}]
  %s2 = inlined_call_operand.hbm [shape: f32[60,16], index: 2, kind: input, shape index: {}]
  %s3 = inlined_call_operand.hbm [shape: f32[30,16], index: 3, kind: input, shape index: {}]
  %s4 = inlined_call_operand.hbm [shape: f32[16,60], index: 4, kind: input, shape index: {}]
  %s5 = inlined_call_operand.vmem [shape: f32[16,30], index: 5, kind: input, shape index: {}]
  %s6 = inlined_call_operand.vmem [shape: f32[16,128], index: 6, kind: output, shape index: {0}]
  %s7 = inlined_call_operand.vmem [shape: s32[16,128], index: 7, kind: output, shape index: {1}]
  %8 = xla_tuple %s6, %s7
  %s9 = sld [smem:[#allocation0]]
  $region93: #{multi_scale_gradient_loss.1} parent=0
    _
  %s11 = ssub.s32 1, %s9
  %s12 = scalar_select 0, %s11, %s9
  $region1: #{multi_scale_gradient_loss.1} parent=0
    #allocation2 [shape = 'u8[65536]{0}', space=vmem, size = 0x10000, scoped, tag = 'input window, operand 0']
    #allocation3 [shape = 's32[2]{0}', space=sflag, size = 0x8, scoped, tag = 'scoped memory for multi_scale_gradient_loss.1']
    #allocation4 [shape = 'u8[65536]{0}', space=vmem, size = 0x10000, scoped, tag = 'input window, operand 1']
    #allocation5 [shape = 's32[2]{0}', space=sflag, size = 0x8, scoped, tag = 'scoped memory for multi_scale_gradient_loss.1']
    #allocation6 [shape = 'u8[32768]{0}', space=vmem, size = 0x8000, scoped, tag = 'input window, operand 2, single buffered']
    #allocation7 [shape = 'u8[16384]{0}', space=vmem, size = 0x4000, scoped, tag = 'input window, operand 3, single buffered']
    #allocation8 [shape = 's32[1]{0}', space=sflag, size = 0x4, scoped, tag = 'scoped memory for multi_scale_gradient_loss.1']
    #allocation9 [shape = 'u8[8192]{0}', space=vmem, size = 0x2000, scoped, tag = 'input window, operand 4, single buffered']
    %13 = vsyncpa [#allocation3], 0
    %s14 = scalar_lea.sflag [#allocation3], 1
    %15 = vsyncpa %s14, 0
    %16 = vsyncpa [#allocation5], 0
    %s17 = scalar_lea.sflag [#allocation5], 1
    %18 = vsyncpa %s17, 0
    %19 = vsyncpa [#allocation8], 0
    loop: start=0, step=1, limit=4
    $region2: #{multi_scale_gradient_loss.1} parent=1 // loop_pre_header
      _
    $region3: #{multi_scale_gradient_loss.1} parent=1 // loop_header
      %s21 = sphi 0, %s25
      %p22 = scmp.ge.s32.totalorder %s21, 4
      %s31 = sphi 0, %s33
      %s34 = sphi 0, %s31
      %s35 = sphi 0, %s34
      %s51 = sphi 0, %s35
      %s57 = sphi 0, %s59
      %s60 = sphi 0, %s57
      %s61 = sphi 0, %s60
      %s77 = sphi 0, %s61
      %s81 = sphi 0, %s81
      %s83 = sphi 0, %s81
      %s84 = sphi 0, %s83
      %s98 = sphi 0, %s84
      %s102 = sphi 0, %s102
      %s104 = sphi 0, %s102
      %s105 = sphi 0, %s104
      %s119 = sphi 0, %s105
      %s123 = sphi 0, %s123
      %s125 = sphi 0, %s123
      %s126 = sphi 0, %s125
      %s140 = sphi 0, %s126
      %s144 = sphi 0, %s144
      %s146 = sphi 0, %s144
      %s147 = sphi 0, %s146
      %s161 = sphi 0, %s147
      %s167 = sphi 0, %s169
      %s170 = sphi 0, %s167
      %s171 = sphi 0, %s170
      %s187 = sphi 0, %s171
      %s193 = sphi 0, %s195
      %s196 = sphi 0, %s193
      %s197 = sphi 0, %s196
      %s213 = sphi 0, %s197
    $region4: #{multi_scale_gradient_loss.1} parent=1 // loop_header_branch
      %24 = sbr.rel (%p22) target = $region8
    $region5: #{multi_scale_gradient_loss.1} parent=1 // loop_body
      %s26 = ssub.s32 %s21, 1
      %s27 = ssub.s32 %s21, 2
      %s28 = sadd.s32 %s21, 1
      %s29 = ssub.s32 %s21, %s28
      %p30 = scmp.eq.s32.totalorder %s29, 0
      %s32 = sadd.s32 %s31, 1
      %s33 = scalar_select %p30, %s31, %s32
      %p36 = pneg %p30
      %p37 = scmp.eq.s32.totalorder %s21, 1
      %p38 = por %p36, %p37
      %p39 = scmp.ne.s32.totalorder %s31, %s34
      %p40 = scmp.eq.s32.totalorder %s21, 0
      %p41 = por %p39, %p40
      %p42 = scmp.ne.s32.totalorder %s31, %s34
      %p43 = scmp.eq.s32.totalorder %s26, 1
      %p44 = por %p42, %p43
      %p45 = scmp.ne.s32.totalorder %s34, %s35
      %p46 = scmp.eq.s32.totalorder %s26, 0
      %p47 = por %p45, %p46
      %p48 = scmp.ne.s32.totalorder %s34, %s35
      %p49 = scmp.eq.s32.totalorder %s27, 1
      %p50 = por %p48, %p49
      %p52 = scmp.ne.s32.totalorder %s35, %s51
      %p53 = scmp.eq.s32.totalorder %s27, 0
      %p54 = por %p52, %p53
      %s55 = ssub.s32 %s21, %s28
      %p56 = scmp.eq.s32.totalorder %s55, 0
      %s58 = sadd.s32 %s57, 1
      %s59 = scalar_select %p56, %s57, %s58
      %p62 = pneg %p56
      %p63 = scmp.eq.s32.totalorder %s21, 1
      %p64 = por %p62, %p63
      %p65 = scmp.ne.s32.totalorder %s57, %s60
      %p66 = scmp.eq.s32.totalorder %s21, 0
      %p67 = por %p65, %p66
      %p68 = scmp.ne.s32.totalorder %s57, %s60
      %p69 = scmp.eq.s32.totalorder %s26, 1
      %p70 = por %p68, %p69
      %p71 = scmp.ne.s32.totalorder %s60, %s61
      %p72 = scmp.eq.s32.totalorder %s26, 0
      %p73 = por %p71, %p72
      %p74 = scmp.ne.s32.totalorder %s60, %s61
      %p75 = scmp.eq.s32.totalorder %s27, 1
      %p76 = por %p74, %p75
      %p78 = scmp.ne.s32.totalorder %s61, %s77
      %p79 = scmp.eq.s32.totalorder %s27, 0
      %p80 = por %p78, %p79
      %s82 = sadd.s32 %s81, 1
      %p85 = scmp.eq.s32.totalorder %s21, 1
      %p86 = scmp.ne.s32.totalorder %s81, %s83
      %p87 = scmp.eq.s32.totalorder %s21, 0
      %p88 = por %p86, %p87
      %p89 = scmp.ne.s32.totalorder %s81, %s83
      %p90 = scmp.eq.s32.totalorder %s26, 1
      %p91 = por %p89, %p90
      %p92 = scmp.ne.s32.totalorder %s83, %s84
      %p93 = scmp.eq.s32.totalorder %s26, 0
      %p94 = por %p92, %p93
      %p95 = scmp.ne.s32.totalorder %s83, %s84
      %p96 = scmp.eq.s32.totalorder %s27, 1
      %p97 = por %p95, %p96
      %p99 = scmp.ne.s32.totalorder %s84, %s98
      %p100 = scmp.eq.s32.totalorder %s27, 0
      %p101 = por %p99, %p100
      %s103 = sadd.s32 %s102, 1
      %p106 = scmp.eq.s32.totalorder %s21, 1
      %p107 = scmp.ne.s32.totalorder %s102, %s104
      %p108 = scmp.eq.s32.totalorder %s21, 0
      %p109 = por %p107, %p108
      %p110 = scmp.ne.s32.totalorder %s102, %s104
      %p111 = scmp.eq.s32.totalorder %s26, 1
      %p112 = por %p110, %p111
      %p113 = scmp.ne.s32.totalorder %s104, %s105
      %p114 = scmp.eq.s32.totalorder %s26, 0
      %p115 = por %p113, %p114
      %p116 = scmp.ne.s32.totalorder %s104, %s105
      %p117 = scmp.eq.s32.totalorder %s27, 1
      %p118 = por %p116, %p117
      %p120 = scmp.ne.s32.totalorder %s105, %s119
      %p121 = scmp.eq.s32.totalorder %s27, 0
      %p122 = por %p120, %p121
      %s124 = sadd.s32 %s123, 1
      %p127 = scmp.eq.s32.totalorder %s21, 1
      %p128 = scmp.ne.s32.totalorder %s123, %s125
      %p129 = scmp.eq.s32.totalorder %s21, 0
      %p130 = por %p128, %p129
      %p131 = scmp.ne.s32.totalorder %s123, %s125
      %p132 = scmp.eq.s32.totalorder %s26, 1
      %p133 = por %p131, %p132
      %p134 = scmp.ne.s32.totalorder %s125, %s126
      %p135 = scmp.eq.s32.totalorder %s26, 0
      %p136 = por %p134, %p135
      %p137 = scmp.ne.s32.totalorder %s125, %s126
      %p138 = scmp.eq.s32.totalorder %s27, 1
      %p139 = por %p137, %p138
      %p141 = scmp.ne.s32.totalorder %s126, %s140
      %p142 = scmp.eq.s32.totalorder %s27, 0
      %p143 = por %p141, %p142
      %s145 = sadd.s32 %s144, 1
      %p148 = scmp.eq.s32.totalorder %s21, 1
      %p149 = scmp.ne.s32.totalorder %s144, %s146
      %p150 = scmp.eq.s32.totalorder %s21, 0
      %p151 = por %p149, %p150
      %p152 = scmp.ne.s32.totalorder %s144, %s146
      %p153 = scmp.eq.s32.totalorder %s26, 1
      %p154 = por %p152, %p153
      %p155 = scmp.ne.s32.totalorder %s146, %s147
      %p156 = scmp.eq.s32.totalorder %s26, 0
      %p157 = por %p155, %p156
      %p158 = scmp.ne.s32.totalorder %s146, %s147
      %p159 = scmp.eq.s32.totalorder %s27, 1
      %p160 = por %p158, %p159
      %p162 = scmp.ne.s32.totalorder %s147, %s161
      %p163 = scmp.eq.s32.totalorder %s27, 0
      %p164 = por %p162, %p163
      %s165 = ssub.s32 %s21, %s28
      %p166 = scmp.eq.s32.totalorder %s165, 0
      %s168 = sadd.s32 %s167, 1
      %s169 = scalar_select %p166, %s167, %s168
      %p172 = pneg %p166
      %p173 = scmp.eq.s32.totalorder %s21, 1
      %p174 = por %p172, %p173
      %p175 = scmp.ne.s32.totalorder %s167, %s170
      %p176 = scmp.eq.s32.totalorder %s21, 0
      %p177 = por %p175, %p176
      %p178 = scmp.ne.s32.totalorder %s167, %s170
      %p179 = scmp.eq.s32.totalorder %s26, 1
      %p180 = por %p178, %p179
      %p181 = scmp.ne.s32.totalorder %s170, %s171
      %p182 = scmp.eq.s32.totalorder %s26, 0
      %p183 = por %p181, %p182
      %p184 = scmp.ne.s32.totalorder %s170, %s171
      %p185 = scmp.eq.s32.totalorder %s27, 1
      %p186 = por %p184, %p185
      %p188 = scmp.ne.s32.totalorder %s171, %s187
      %p189 = scmp.eq.s32.totalorder %s27, 0
      %p190 = por %p188, %p189
      %s191 = ssub.s32 %s21, %s28
      %p192 = scmp.eq.s32.totalorder %s191, 0
      %s194 = sadd.s32 %s193, 1
      %s195 = scalar_select %p192, %s193, %s194
      %p198 = pneg %p192
      %p199 = scmp.eq.s32.totalorder %s21, 1
      %p200 = por %p198, %p199
      %p201 = scmp.ne.s32.totalorder %s193, %s196
      %p202 = scmp.eq.s32.totalorder %s21, 0
      %p203 = por %p201, %p202
      %p204 = scmp.ne.s32.totalorder %s193, %s196
      %p205 = scmp.eq.s32.totalorder %s26, 1
      %p206 = por %p204, %p205
      %p207 = scmp.ne.s32.totalorder %s196, %s197
      %p208 = scmp.eq.s32.totalorder %s26, 0
      %p209 = por %p207, %p208
      %p210 = scmp.ne.s32.totalorder %s196, %s197
      %p211 = scmp.eq.s32.totalorder %s27, 1
      %p212 = por %p210, %p211
      %p214 = scmp.ne.s32.totalorder %s197, %s213
      %p215 = scmp.eq.s32.totalorder %s27, 0
      %p216 = por %p214, %p215
      %p217 = scmp.le.s32.totalorder 1, %s21
      %p218 = scmp.lt.s32.totalorder %s21, 3
      %p219 = pnand %p217, %p218
      %p220 = pneg %p219
      // Predicated region
      $region9: #{multi_scale_gradient_loss.1} parent=5 // pred_check
        _
      $region10: #{multi_scale_gradient_loss.1} parent=5 // pred_check_branch
        %222 = sbr.rel (%p219) target = $region12
      $region11: #{multi_scale_gradient_loss.1} parent=5 // pred_region
        %s223 = ssub.s32 %s21, 1
        // Predicated region
        $region13: #{multi_scale_gradient_loss.1} parent=11 // pred_check
          %p224 = pneg %p94
        $region14: #{multi_scale_gradient_loss.1} parent=11 // pred_check_branch
          %226 = sbr.rel (%p224) target = $region16
        $region15: #{multi_scale_gradient_loss.1} parent=11 // pred_region
          %s228 = ssub.s32 1024, 1024
          %229 = vsyncadd [#allocation5], %s228
          %s230 = sshll.u32 [#allocation6], 4
          %s231 = int_to_ptr.vmem [resolvable:$true] %s230
          %236 = dma.hbm_to_vmem [thread:$0]  %s2, 1024, %s231, [#allocation5], 128, 128, 8
        $region16: #{multi_scale_gradient_loss.1} parent=11 // pred_fallthru
          _
        // Predicated region
        $region17: #{multi_scale_gradient_loss.1} parent=11 // pred_check
          %p237 = pneg %p115
        $region18: #{multi_scale_gradient_loss.1} parent=11 // pred_check_branch
          %239 = sbr.rel (%p237) target = $region20
        $region19: #{multi_scale_gradient_loss.1} parent=11 // pred_region
          %s241 = ssub.s32 512, 512
          %242 = vsyncadd [#allocation8], %s241
          %s243 = sshll.u32 [#allocation7], 4
          %s244 = int_to_ptr.vmem [resolvable:$true] %s243
          %249 = dma.hbm_to_vmem [thread:$0]  %s3, 512, %s244, [#allocation8], 128, 128, 8
        $region20: #{multi_scale_gradient_loss.1} parent=11 // pred_fallthru
          _
        // Predicated region
        $region21: #{multi_scale_gradient_loss.1} parent=11 // pred_check
          %p250 = pneg %p136
        $region22: #{multi_scale_gradient_loss.1} parent=11 // pred_check_branch
          %252 = sbr.rel (%p250) target = $region24
        $region23: #{multi_scale_gradient_loss.1} parent=11 // pred_region
          %s254 = ssub.s32 256, 256
          %255 = vsyncadd [#allocation8], %s254
          %s256 = sshll.u32 [#allocation9], 4
          %s257 = int_to_ptr.vmem [resolvable:$true] %s256
          %262 = dma.hbm_to_vmem [thread:$0]  %s4, 256, %s257, [#allocation8], 128, 128, 8
        $region24: #{multi_scale_gradient_loss.1} parent=11 // pred_fallthru
          _
        // Predicated region
        $region25: #{multi_scale_gradient_loss.1} parent=11 // pred_check
          %p263 = pneg %p157
        $region26: #{multi_scale_gradient_loss.1} parent=11 // pred_check_branch
          %265 = sbr.rel (%p263) target = $region28
        $region27: #{multi_scale_gradient_loss.1} parent=11 // pred_region
          _
        $region28: #{multi_scale_gradient_loss.1} parent=11 // pred_fallthru
          _
      $region12: #{multi_scale_gradient_loss.1} parent=5 // pred_fallthru
        _
      %p266 = scmp.lt.s32.totalorder %s21, 2
      // Predicated region
      $region29: #{multi_scale_gradient_loss.1} parent=5 // pred_check
        %p267 = pneg %p266
      $region30: #{multi_scale_gradient_loss.1} parent=5 // pred_check_branch
        %269 = sbr.rel (%p267) target = $region32
      $region31: #{multi_scale_gradient_loss.1} parent=5 // pred_region
        // Predicated region
        $region33: #{multi_scale_gradient_loss.1} parent=31 // pred_check
          %p270 = pneg %p41
        $region34: #{multi_scale_gradient_loss.1} parent=31 // pred_check_branch
          %272 = sbr.rel (%p270) target = $region36
        $region35: #{multi_scale_gradient_loss.1} parent=31 // pred_region
          %s273 = sand.u32 %s31, 1
          %s274 = scalar_lea.sflag [#allocation3], %s273
          %s275 = sand.u32 %s31, 1
          %s276 = smul.addr %s275, 64
          %s277 = scalar_lea.vmem [#allocation2], %s276
          %s278 = smul.u32 4, %s21
          %s280 = ssub.s32 1024, 1024
          %281 = vsyncadd %s274, %s280
          %s282 = smul.addr %s278, 2
          %s283 = smul.addr %s282, 128
          %s284 = scalar_lea.hbm %s0, %s283
          %s285 = sshll.u32 %s277, 4
          %s286 = int_to_ptr.vmem [resolvable:$true] %s285
          %291 = dma.hbm_to_vmem [thread:$0]  %s284, 1024, %s286, %s274, 128, 128, 8
        $region36: #{multi_scale_gradient_loss.1} parent=31 // pred_fallthru
          _
        // Predicated region
        $region37: #{multi_scale_gradient_loss.1} parent=31 // pred_check
          %p292 = pneg %p67
        $region38: #{multi_scale_gradient_loss.1} parent=31 // pred_check_branch
          %294 = sbr.rel (%p292) target = $region40
        $region39: #{multi_scale_gradient_loss.1} parent=31 // pred_region
          %s295 = sand.u32 %s21, 1
          %s296 = scalar_lea.sflag [#allocation5], %s295
          %s297 = sand.u32 %s57, 1
          %s298 = smul.addr %s297, 64
          %s299 = scalar_lea.vmem [#allocation4], %s298
          %s300 = smul.u32 4, %s21
          %s302 = ssub.s32 1024, 1024
          %303 = vsyncadd %s296, %s302
          %s304 = smul.addr %s300, 2
          %s305 = smul.addr %s304, 128
          %s306 = scalar_lea.hbm %s1, %s305
          %s307 = sshll.u32 %s299, 4
          %s308 = int_to_ptr.vmem [resolvable:$true] %s307
          %313 = dma.hbm_to_vmem [thread:$0]  %s306, 1024, %s308, %s296, 128, 128, 8
        $region40: #{multi_scale_gradient_loss.1} parent=31 // pred_fallthru
          _
      $region32: #{multi_scale_gradient_loss.1} parent=5 // pred_fallthru
        _
      %p314 = scmp.le.s32.totalorder 1, %s21
      %p315 = scmp.lt.s32.totalorder %s21, 3
      %p316 = pnand %p314, %p315
      %p317 = pneg %p316
      // Predicated region
      $region41: #{multi_scale_gradient_loss.1} parent=5 // pred_check
        _
      $region42: #{multi_scale_gradient_loss.1} parent=5 // pred_check_branch
        %319 = sbr.rel (%p316) target = $region44
      $region43: #{multi_scale_gradient_loss.1} parent=5 // pred_region
        %s320 = ssub.s32 %s21, 1
        %s321 = sand.u32 %s34, 1
        %s322 = scalar_lea.sflag [#allocation3], %s321
        %s323 = sand.u32 %s34, 1
        %s324 = smul.addr %s323, 64
        %s325 = scalar_lea.vmem [#allocation2], %s324
        // Predicated region
        $region45: #{multi_scale_gradient_loss.1} parent=43 // pred_check
          %p326 = pneg %p47
        $region46: #{multi_scale_gradient_loss.1} parent=43 // pred_check_branch
          %328 = sbr.rel (%p326) target = $region48
        $region47: #{multi_scale_gradient_loss.1} parent=43 // pred_region
          %329 = dma.done %s322, 1024
        $region48: #{multi_scale_gradient_loss.1} parent=43 // pred_fallthru
          _
        %s330 = sand.u32 %s26, 1
        %s331 = scalar_lea.sflag [#allocation5], %s330
        %s332 = sand.u32 %s60, 1
        %s333 = smul.addr %s332, 64
        %s334 = scalar_lea.vmem [#allocation4], %s333
        // Predicated region
        $region49: #{multi_scale_gradient_loss.1} parent=43 // pred_check
          %p335 = pneg %p73
        $region50: #{multi_scale_gradient_loss.1} parent=43 // pred_check_branch
          %337 = sbr.rel (%p335) target = $region52
        $region51: #{multi_scale_gradient_loss.1} parent=43 // pred_region
          %338 = dma.done %s331, 1024
        $region52: #{multi_scale_gradient_loss.1} parent=43 // pred_fallthru
          _
        // Predicated region
        $region53: #{multi_scale_gradient_loss.1} parent=43 // pred_check
          %p339 = pneg %p94
        $region54: #{multi_scale_gradient_loss.1} parent=43 // pred_check_branch
          %341 = sbr.rel (%p339) target = $region56
        $region55: #{multi_scale_gradient_loss.1} parent=43 // pred_region
          %342 = dma.done [#allocation5], 1024
        $region56: #{multi_scale_gradient_loss.1} parent=43 // pred_fallthru
          _
        // Predicated region
        $region57: #{multi_scale_gradient_loss.1} parent=43 // pred_check
          %p343 = pneg %p115
        $region58: #{multi_scale_gradient_loss.1} parent=43 // pred_check_branch
          %345 = sbr.rel (%p343) target = $region60
        $region59: #{multi_scale_gradient_loss.1} parent=43 // pred_region
          %346 = dma.done [#allocation8], 512
        $region60: #{multi_scale_gradient_loss.1} parent=43 // pred_fallthru
          _
        // Predicated region
        $region61: #{multi_scale_gradient_loss.1} parent=43 // pred_check
          %p347 = pneg %p136
        $region62: #{multi_scale_gradient_loss.1} parent=43 // pred_check_branch
          %349 = sbr.rel (%p347) target = $region64
        $region63: #{multi_scale_gradient_loss.1} parent=43 // pred_region
          %350 = dma.done [#allocation8], 256
        $region64: #{multi_scale_gradient_loss.1} parent=43 // pred_fallthru
          _
        %s351 = sand.u32 %s34, 1
        %s352 = scalar_lea.sflag [#allocation3], %s351
        %s353 = sand.u32 %s34, 1
        %s354 = smul.addr %s353, 64
        %s355 = scalar_lea.vmem [#allocation2], %s354
        %p356 = pneg %p47
        %p357 = pneg %p44
        %s358 = sand.u32 %s26, 1
        %s359 = scalar_lea.sflag [#allocation5], %s358
        %s360 = sand.u32 %s60, 1
        %s361 = smul.addr %s360, 64
        %s362 = scalar_lea.vmem [#allocation4], %s361
        %p363 = pneg %p73
        %p364 = pneg %p70
        %p365 = pneg %p94
        %p366 = pneg %p91
        %p367 = pneg %p115
        %p368 = pneg %p112
        %p369 = pneg %p136
        %p370 = pneg %p133
        %p371 = pneg %p157
        %p372 = pneg %p154
        %p373 = pneg %p183
        %p374 = pneg %p180
        %p375 = scmp.lt.s32.totalorder %s26, 1
        %s376 = scalar_select %p375, %s26, 1
        %s377 = smul.addr %s376, 8
        %s378 = scalar_lea.vmem %s6, %s377
        %p379 = pneg %p209
        %p380 = pneg %p206
        %p381 = scmp.lt.s32.totalorder %s26, 1
        %s382 = scalar_select %p381, %s26, 1
        %s383 = smul.addr %s382, 8
        %s384 = scalar_lea.vmem %s7, %s383
        %s385 = smul.u32 4, %s26
        %s386 = smul.u32 4, %s26
        %p387 = scmp.lt.s32.totalorder %s26, 1
        %s388 = scalar_select %p387, %s26, 1
        %s389 = smul.addr %s388, 8
        %s390 = scalar_lea.vmem %s6, %s389
        %p391 = scmp.lt.s32.totalorder %s26, 1
        %s392 = scalar_select %p391, %s26, 1
        %s393 = smul.addr %s392, 8
        %s394 = scalar_lea.vmem %s7, %s393
        %v395 = vld [vmem:[%s325] sm:$0xff]
        %v396 = vld [vmem:[%s325 + $0x8] sm:$0xff]
        %v397 = vld [vmem:[%s325 + $0x10] sm:$0xff]
        %v398 = vld [vmem:[%s325 + $0x18] sm:$0xff]
        %v399 = vld [vmem:[%s325 + $0x20] sm:$0xff]
        %v400 = vld [vmem:[%s325 + $0x28] sm:$0xff]
        %v401 = vld [vmem:[%s325 + $0x30] sm:$0xff]
        %v402 = vld [vmem:[%s325 + $0x38] sm:$0xff]
        %v403 = vld [vmem:[%s334] sm:$0xff]
        %v404 = vld [vmem:[%s334 + $0x8] sm:$0xff]
        %v405 = vld [vmem:[%s334 + $0x10] sm:$0xff]
        %v406 = vld [vmem:[%s334 + $0x18] sm:$0xff]
        %v407 = vld [vmem:[%s334 + $0x20] sm:$0xff]
        %v408 = vld [vmem:[%s334 + $0x28] sm:$0xff]
        %v409 = vld [vmem:[%s334 + $0x30] sm:$0xff]
        %v410 = vld [vmem:[%s334 + $0x38] sm:$0xff]
        %v411 = vsub.f32 %v395, %v403
        %v412 = vsub.f32 %v396, %v404
        %v413 = vsub.f32 %v397, %v405
        %v414 = vsub.f32 %v398, %v406
        %v415 = vsub.f32 %v399, %v407
        %v416 = vsub.f32 %v400, %v408
        %v417 = vsub.f32 %v401, %v409
        %v418 = vsub.f32 %v402, %v410
        %vm419 = vcmp.ne.f32.partialorder %v411, %v411
        %vm420 = vcmp.ne.f32.partialorder %v412, %v412
        %vm421 = vcmp.ne.f32.partialorder %v413, %v413
        %vm422 = vcmp.ne.f32.partialorder %v414, %v414
        %vm423 = vcmp.ne.f32.partialorder %v415, %v415
        %vm424 = vcmp.ne.f32.partialorder %v416, %v416
        %vm425 = vcmp.ne.f32.partialorder %v417, %v417
        %vm426 = vcmp.ne.f32.partialorder %v418, %v418
        %v427 = vsel %vm419, 0.0, %v411
        %v428 = vsel %vm420, 0.0, %v412
        %v429 = vsel %vm421, 0.0, %v413
        %v430 = vsel %vm422, 0.0, %v414
        %v431 = vsel %vm423, 0.0, %v415
        %v432 = vsel %vm424, 0.0, %v416
        %v433 = vsel %vm425, 0.0, %v417
        %v434 = vsel %vm426, 0.0, %v418
        %v435 = vsel %vm419, 1, 0
        %v436 = vsel %vm420, 1, 0
        %v437 = vsel %vm421, 1, 0
        %v438 = vsel %vm422, 1, 0
        %v439 = vsel %vm423, 1, 0
        %v440 = vsel %vm424, 1, 0
        %v441 = vsel %vm425, 1, 0
        %v442 = vsel %vm426, 1, 0
        %v443 = vcvt.s32.f32 %v435
        %v444 = vcvt.s32.f32 %v436
        %v445 = vcvt.s32.f32 %v437
        %v446 = vcvt.s32.f32 %v438
        %v447 = vcvt.s32.f32 %v439
        %v448 = vcvt.s32.f32 %v440
        %v449 = vcvt.s32.f32 %v441
        %v450 = vcvt.s32.f32 %v442
        %vm451 = vcmask 130048
        %v452 = vsel %vm451, %v443, 0.0
        %v453 = vsel %vm451, %v444, 0.0
        %v454 = vadd.f32 %v452, %v453
        %v455 = vsel %vm451, %v445, 0.0
        %v456 = vadd.f32 %v454, %v455
        %v457 = vsel %vm451, %v446, 0.0
        %v458 = vadd.f32 %v456, %v457
        %v459 = vsel %vm451, %v447, 0.0
        %v460 = vadd.f32 %v458, %v459
        %v461 = vsel %vm451, %v448, 0.0
        %v462 = vadd.f32 %v460, %v461
        %v463 = vsel %vm451, %v449, 0.0
        %v464 = vadd.f32 %v462, %v463
        %v465 = vsel %vm451, %v450, 0.0
        %v466 = vadd.f32 %v464, %v465
        %467 = vadd.xlane.f32.xlu0 %v466
        %v468 = vpop.xlane.xlu0 %467
        %v469 = vrot.slane %v468, 4
        %v470 = vadd.f32 %v468, %v469
        %v471 = vrot.slane %v470, 2
        %v472 = vadd.f32 %v470, %v471
        %v473 = vrot.slane %v472, 1
        %v474 = vadd.f32 %v472, %v473
        %s475 = vtos %v474
        %p476 = scmp.gt.f32.partialorder %s475, 0.0
        %v477 = vld [vmem:[#allocation9] sm:$0xff]
        %v478 = vld [vmem:[#allocation9 + $0x8] sm:$0xff]
        %v480 = vsel %vm451, %v427, 0
        %v483 = vsel %vm451, %v428, 0
        %v486 = vsel %vm451, %v429, 0
        %v489 = vsel %vm451, %v430, 0
        %v492 = vsel %vm451, %v431, 0
        %v495 = vsel %vm451, %v432, 0
        %v498 = vsel %vm451, %v433, 0
        %v501 = vsel %vm451, %v434, 0
        %503 = vmatprep.subr.mxu0 0.0
        %504 = vmatpush1.msra.mxu0 %v477
        %505 = vmatprep.subr.mxu0 0.0
        %506 = vmatpush1.msra.mxu0 %v478
        %507 = vmatprep.subr.mxu0 0.0
        %508 = vmatpush1.msra.mxu0 0.0
        %509 = vmatprep.subr.mxu0 0.0
        %510 = vmatpush1.msra.mxu0 0.0
        %511 = vmatprep.subr.mxu0 0.0
        %512 = vmatpush1.msra.mxu0 0.0
        %513 = vmatprep.subr.mxu0 0.0
        %514 = vmatpush1.msra.mxu0 0.0
        %515 = vmatprep.subr.mxu0 0.0
        %516 = vmatpush1.msra.mxu0 0.0
        %517 = vmatprep.subr.mxu0 0.0
        %518 = vmatpush1.msra.mxu0 0.0
        %519 = vmatprep.subr.mxu0 0.0
        %520 = vmatpush1.msra.mxu0 0.0
        %521 = vmatprep.subr.mxu0 0.0
        %522 = vmatpush1.msra.mxu0 0.0
        %523 = vmatprep.subr.mxu0 0.0
        %524 = vmatpush1.msra.mxu0 0.0
        %525 = vmatprep.subr.mxu0 0.0
        %526 = vmatpush1.msra.mxu0 0.0
        %527 = vmatprep.subr.mxu0 0.0
        %528 = vmatpush1.msra.mxu0 0.0
        %529 = vmatprep.subr.mxu0 0.0
        %530 = vmatpush1.msra.mxu0 0.0
        %531 = vmatprep.subr.mxu0 0.0
        %532 = vmatpush1.msra.mxu0 0.0
        %533 = vmatprep.subr.mxu0 0.0
        %534 = vmatpush1.msra.mxu0 0.0
        %535 = vmatprep.subr.mxu0 0.0
        %536 = vmatpush1.msra.mxu0 0.0
        %537 = vmatprep.subr.mxu0 0.0
        %538 = vmatpush1.msra.mxu0 0.0
        %539 = vmatprep.subr.mxu0 0.0
        %540 = vmatpush1.msra.mxu0 0.0
        %541 = vmatprep.subr.mxu0 0.0
        %542 = vmatpush1.msra.mxu0 0.0
        %543 = vmatprep.subr.mxu0 0.0
        %544 = vmatpush1.msra.mxu0 0.0
        %545 = vmatprep.subr.mxu0 0.0
        %546 = vmatpush1.msra.mxu0 0.0
        %547 = vmatprep.subr.mxu0 0.0
        %548 = vmatpush1.msra.mxu0 0.0
        %549 = vmatprep.subr.mxu0 0.0
        %550 = vmatpush1.msra.mxu0 0.0
        %551 = vmatprep.subr.mxu0 0.0
        %552 = vmatpush1.msra.mxu0 0.0
        %553 = vmatprep.subr.mxu0 0.0
        %554 = vmatpush1.msra.mxu0 0.0
        %555 = vmatprep.subr.mxu0 0.0
        %556 = vmatpush1.msra.mxu0 0.0
        %557 = vmatprep.subr.mxu0 0.0
        %558 = vmatpush1.msra.mxu0 0.0
        %559 = vmatprep.subr.mxu0 0.0
        %560 = vmatpush1.msra.mxu0 0.0
        %561 = vmatprep.subr.mxu0 0.0
        %562 = vmatpush1.msra.mxu0 0.0
        %563 = vmatprep.subr.mxu0 0.0
        %564 = vmatpush1.msra.mxu0 0.0
        %565 = vmatprep.subr.mxu0 0.0
        %566 = vmatpush1.msra.mxu0 0.0
        %567 = vmatprep.mubr.f32.mxu0 0.0
        %568 = vmatmul.mubr.f32.gmra.mrb[0].mxu0 %v480
        %v569 = vpop.f32.mrb[0].mxu0
        %v570 = vadd.f32 0.0, %v569
        %v571 = vpop.f32.mrb[0].mxu0
        %572 = vmatprep.mubr.f32.mxu0 0.0
        %573 = vmatmul.mubr.f32.gmra.mrb[0].mxu0 %v483
        %v574 = vpop.f32.mrb[0].mxu0
        %v575 = vadd.f32 0.0, %v574
        %v576 = vpop.f32.mrb[0].mxu0
        %577 = vmatprep.mubr.f32.mxu0 0.0
        %578 = vmatmul.mubr.f32.gmra.mrb[0].mxu0 %v486
        %v579 = vpop.f32.mrb[0].mxu0
        %v580 = vadd.f32 0.0, %v579
        %v581 = vpop.f32.mrb[0].mxu0
        %582 = vmatprep.mubr.f32.mxu0 0.0
        %583 = vmatmul.mubr.f32.gmra.mrb[0].mxu0 %v489
        %v584 = vpop.f32.mrb[0].mxu0
        %v585 = vadd.f32 0.0, %v584
        %v586 = vpop.f32.mrb[0].mxu0
        %587 = vmatprep.mubr.f32.mxu0 0.0
        %588 = vmatmul.mubr.f32.gmra.mrb[0].mxu0 %v492
        %v589 = vpop.f32.mrb[0].mxu0
        %v590 = vadd.f32 0.0, %v589
        %v591 = vpop.f32.mrb[0].mxu0
        %592 = vmatprep.mubr.f32.mxu0 0.0
        %593 = vmatmul.mubr.f32.gmra.mrb[0].mxu0 %v495
        %v594 = vpop.f32.mrb[0].mxu0
        %v595 = vadd.f32 0.0, %v594
        %v596 = vpop.f32.mrb[0].mxu0
        %597 = vmatprep.mubr.f32.mxu0 0.0
        %598 = vmatmul.mubr.f32.gmra.mrb[0].mxu0 %v498
        %v599 = vpop.f32.mrb[0].mxu0
        %v600 = vadd.f32 0.0, %v599
        %v601 = vpop.f32.mrb[0].mxu0
        %602 = vmatprep.mubr.f32.mxu0 0.0
        %603 = vmatmul.mubr.f32.gmra.mrb[0].mxu0 %v501
        %v604 = vpop.f32.mrb[0].mxu0
        %v605 = vadd.f32 0.0, %v604
        %v606 = vpop.f32.mrb[0].mxu0
        %607 = vdwg.mxu0
        %v608 = vld [vmem:[#allocation6] sm:$0xff]
        %v609 = vld [vmem:[#allocation6 + $0x8] sm:$0xff]
        %v610 = vld [vmem:[#allocation6 + $0x10] sm:$0xff]
        %v611 = vld [vmem:[#allocation6 + $0x18] sm:$0xff]
        %v612 = vld [vmem:[#allocation6 + $0x20] sm:$0xff]
        %v613 = vld [vmem:[#allocation6 + $0x28] sm:$0xff]
        %v614 = vld [vmem:[#allocation6 + $0x30] sm:$0xff]
        %v615 = vld [vmem:[#allocation6 + $0x38] sm:$0xf]
        %v617 = vsel %vm451, %v608, 0
        %v620 = vsel %vm451, %v609, 0
        %v623 = vsel %vm451, %v610, 0
        %v626 = vsel %vm451, %v611, 0
        %628 = vmatprep.subr.mxu0 0.0
        %629 = vmatpush1.msra.mxu0 %v570
        %630 = vmatprep.subr.mxu0 0.0
        %631 = vmatpush1.msra.mxu0 %v575
        %632 = vmatprep.subr.mxu0 0.0
        %633 = vmatpush1.msra.mxu0 0.0
        %634 = vmatprep.subr.mxu0 0.0
        %635 = vmatpush1.msra.mxu0 0.0
        %636 = vmatprep.subr.mxu0 0.0
        %637 = vmatpush1.msra.mxu0 0.0
        %638 = vmatprep.subr.mxu0 0.0
        %639 = vmatpush1.msra.mxu0 0.0
        %640 = vmatprep.subr.mxu0 0.0
        %641 = vmatpush1.msra.mxu0 0.0
        %642 = vmatprep.subr.mxu0 0.0
        %643 = vmatpush1.msra.mxu0 0.0
        %644 = vmatprep.subr.mxu0 0.0
        %645 = vmatpush1.msra.mxu0 0.0
        %646 = vmatprep.subr.mxu0 0.0
        %647 = vmatpush1.msra.mxu0 0.0
        %648 = vmatprep.subr.mxu0 0.0
        %649 = vmatpush1.msra.mxu0 0.0
        %650 = vmatprep.subr.mxu0 0.0
        %651 = vmatpush1.msra.mxu0 0.0
        %652 = vmatprep.subr.mxu0 0.0
        %653 = vmatpush1.msra.mxu0 0.0
        %654 = vmatprep.subr.mxu0 0.0
        %655 = vmatpush1.msra.mxu0 0.0
        %656 = vmatprep.subr.mxu0 0.0
        %657 = vmatpush1.msra.mxu0 0.0
        %658 = vmatprep.subr.mxu0 0.0
        %659 = vmatpush1.msra.mxu0 0.0
        %660 = vmatprep.subr.mxu0 0.0
        %661 = vmatpush1.msra.mxu0 0.0
        %662 = vmatprep.subr.mxu0 0.0
        %663 = vmatpush1.msra.mxu0 0.0
        %664 = vmatprep.subr.mxu0 0.0
        %665 = vmatpush1.msra.mxu0 0.0
        %666 = vmatprep.subr.mxu0 0.0
        %667 = vmatpush1.msra.mxu0 0.0
        %668 = vmatprep.subr.mxu0 0.0
        %669 = vmatpush1.msra.mxu0 0.0
        %670 = vmatprep.subr.mxu0 0.0
        %671 = vmatpush1.msra.mxu0 0.0
        %672 = vmatprep.subr.mxu0 0.0
        %673 = vmatpush1.msra.mxu0 0.0
        %674 = vmatprep.subr.mxu0 0.0
        %675 = vmatpush1.msra.mxu0 0.0
        %676 = vmatprep.subr.mxu0 0.0
        %677 = vmatpush1.msra.mxu0 0.0
        %678 = vmatprep.subr.mxu0 0.0
        %679 = vmatpush1.msra.mxu0 0.0
        %680 = vmatprep.subr.mxu0 0.0
        %681 = vmatpush1.msra.mxu0 0.0
        %682 = vmatprep.subr.mxu0 0.0
        %683 = vmatpush1.msra.mxu0 0.0
        %684 = vmatprep.subr.mxu0 0.0
        %685 = vmatpush1.msra.mxu0 0.0
        %686 = vmatprep.subr.mxu0 0.0
        %687 = vmatpush1.msra.mxu0 0.0
        %688 = vmatprep.subr.mxu0 0.0
        %689 = vmatpush1.msra.mxu0 0.0
        %690 = vmatprep.subr.mxu0 0.0
        %691 = vmatpush1.msra.mxu0 0.0
        %692 = vmatprep.mubr.f32.mxu0 0.0
        %693 = vmatmul.mubr.f32.gmra.mrb[0].mxu0 %v617
        %v694 = vpop.f32.mrb[0].mxu0
        %v695 = vadd.f32 0.0, %v694
        %v696 = vpop.f32.mrb[0].mxu0
        %697 = vmatprep.mubr.f32.mxu0 0.0
        %698 = vmatmul.mubr.f32.gmra.mrb[0].mxu0 %v620
        %v699 = vpop.f32.mrb[0].mxu0
        %v700 = vadd.f32 0.0, %v699
        %v701 = vpop.f32.mrb[0].mxu0
        %702 = vmatprep.mubr.f32.mxu0 0.0
        %703 = vmatmul.mubr.f32.gmra.mrb[0].mxu0 %v623
        %v704 = vpop.f32.mrb[0].mxu0
        %v705 = vadd.f32 0.0, %v704
        %v706 = vpop.f32.mrb[0].mxu0
        %707 = vmatprep.mubr.f32.mxu0 0.0
        %708 = vmatmul.mubr.f32.gmra.mrb[0].mxu0 %v626
        %v709 = vpop.f32.mrb[0].mxu0
        %v710 = vadd.f32 0.0, %v709
        %v711 = vpop.f32.mrb[0].mxu0
        %712 = vdwg.mxu0
        %v713 = vand.u32 2147483647, %v695
        %v714 = vand.u32 2147483647, %v700
        %v715 = vand.u32 2147483647, %v705
        %v716 = vand.u32 2147483647, %v710
        %719 = vrot.lane.b32.xlu0 %v715, 112
        %v720 = vpop.permute.xlu0 %719
        %721 = vrot.lane.b32.xlu0 %v716, 112
        %v722 = vpop.permute.xlu0 %721
        %v725 = vadd.f32 %v713, %v720
        %v726 = vadd.f32 %v714, %v722
        %727 = vmatprep.subr.mxu0 0.0
        %728 = vmatpush1.msra.mxu0 %v580
        %729 = vmatprep.subr.mxu0 0.0
        %730 = vmatpush1.msra.mxu0 %v585
        %731 = vmatprep.subr.mxu0 0.0
        %732 = vmatpush1.msra.mxu0 0.0
        %733 = vmatprep.subr.mxu0 0.0
        %734 = vmatpush1.msra.mxu0 0.0
        %735 = vmatprep.subr.mxu0 0.0
        %736 = vmatpush1.msra.mxu0 0.0
        %737 = vmatprep.subr.mxu0 0.0
        %738 = vmatpush1.msra.mxu0 0.0
        %739 = vmatprep.subr.mxu0 0.0
        %740 = vmatpush1.msra.mxu0 0.0
        %741 = vmatprep.subr.mxu0 0.0
        %742 = vmatpush1.msra.mxu0 0.0
        %743 = vmatprep.subr.mxu0 0.0
        %744 = vmatpush1.msra.mxu0 0.0
        %745 = vmatprep.subr.mxu0 0.0
        %746 = vmatpush1.msra.mxu0 0.0
        %747 = vmatprep.subr.mxu0 0.0
        %748 = vmatpush1.msra.mxu0 0.0
        %749 = vmatprep.subr.mxu0 0.0
        %750 = vmatpush1.msra.mxu0 0.0
        %751 = vmatprep.subr.mxu0 0.0
        %752 = vmatpush1.msra.mxu0 0.0
        %753 = vmatprep.subr.mxu0 0.0
        %754 = vmatpush1.msra.mxu0 0.0
        %755 = vmatprep.subr.mxu0 0.0
        %756 = vmatpush1.msra.mxu0 0.0
        %757 = vmatprep.subr.mxu0 0.0
        %758 = vmatpush1.msra.mxu0 0.0
        %759 = vmatprep.subr.mxu0 0.0
        %760 = vmatpush1.msra.mxu0 0.0
        %761 = vmatprep.subr.mxu0 0.0
        %762 = vmatpush1.msra.mxu0 0.0
        %763 = vmatprep.subr.mxu0 0.0
        %764 = vmatpush1.msra.mxu0 0.0
        %765 = vmatprep.subr.mxu0 0.0
        %766 = vmatpush1.msra.mxu0 0.0
        %767 = vmatprep.subr.mxu0 0.0
        %768 = vmatpush1.msra.mxu0 0.0
        %769 = vmatprep.subr.mxu0 0.0
        %770 = vmatpush1.msra.mxu0 0.0
        %771 = vmatprep.subr.mxu0 0.0
        %772 = vmatpush1.msra.mxu0 0.0
        %773 = vmatprep.subr.mxu0 0.0
        %774 = vmatpush1.msra.mxu0 0.0
        %775 = vmatprep.subr.mxu0 0.0
        %776 = vmatpush1.msra.mxu0 0.0
        %777 = vmatprep.subr.mxu0 0.0
        %778 = vmatpush1.msra.mxu0 0.0
        %779 = vmatprep.subr.mxu0 0.0
        %780 = vmatpush1.msra.mxu0 0.0
        %781 = vmatprep.subr.mxu0 0.0
        %782 = vmatpush1.msra.mxu0 0.0
        %783 = vmatprep.subr.mxu0 0.0
        %784 = vmatpush1.msra.mxu0 0.0
        %785 = vmatprep.subr.mxu0 0.0
        %786 = vmatpush1.msra.mxu0 0.0
        %787 = vmatprep.subr.mxu0 0.0
        %788 = vmatpush1.msra.mxu0 0.0
        %789 = vmatprep.subr.mxu0 0.0
        %790 = vmatpush1.msra.mxu0 0.0
        %791 = vmatprep.mubr.f32.mxu0 0.0
        %792 = vmatmul.mubr.f32.gmra.mrb[0].mxu0 %v617
        %v793 = vpop.f32.mrb[0].mxu0
        %v794 = vadd.f32 0.0, %v793
        %v795 = vpop.f32.mrb[0].mxu0
        %796 = vmatprep.mubr.f32.mxu0 0.0
        %797 = vmatmul.mubr.f32.gmra.mrb[0].mxu0 %v620
        %v798 = vpop.f32.mrb[0].mxu0
        %v799 = vadd.f32 0.0, %v798
        %v800 = vpop.f32.mrb[0].mxu0
        %801 = vmatprep.mubr.f32.mxu0 0.0
        %802 = vmatmul.mubr.f32.gmra.mrb[0].mxu0 %v623
        %v803 = vpop.f32.mrb[0].mxu0
        %v804 = vadd.f32 0.0, %v803
        %v805 = vpop.f32.mrb[0].mxu0
        %806 = vmatprep.mubr.f32.mxu0 0.0
        %807 = vmatmul.mubr.f32.gmra.mrb[0].mxu0 %v626
        %v808 = vpop.f32.mrb[0].mxu0
        %v809 = vadd.f32 0.0, %v808
        %v810 = vpop.f32.mrb[0].mxu0
        %811 = vdwg.mxu0
        %v812 = vand.u32 2147483647, %v794
        %v813 = vand.u32 2147483647, %v799
        %v814 = vand.u32 2147483647, %v804
        %v815 = vand.u32 2147483647, %v809
        %818 = vrot.lane.b32.xlu0 %v814, 112
        %v819 = vpop.permute.xlu0 %818
        %820 = vrot.lane.b32.xlu0 %v815, 112
        %v821 = vpop.permute.xlu0 %820
        %v824 = vadd.f32 %v812, %v819
        %v825 = vadd.f32 %v813, %v821
        %826 = vmatprep.subr.mxu0 0.0
        %827 = vmatpush1.msra.mxu0 %v590
        %828 = vmatprep.subr.mxu0 0.0
        %829 = vmatpush1.msra.mxu0 %v595
        %830 = vmatprep.subr.mxu0 0.0
        %831 = vmatpush1.msra.mxu0 0.0
        %832 = vmatprep.subr.mxu0 0.0
        %833 = vmatpush1.msra.mxu0 0.0
        %834 = vmatprep.subr.mxu0 0.0
        %835 = vmatpush1.msra.mxu0 0.0
        %836 = vmatprep.subr.mxu0 0.0
        %837 = vmatpush1.msra.mxu0 0.0
        %838 = vmatprep.subr.mxu0 0.0
        %839 = vmatpush1.msra.mxu0 0.0
        %840 = vmatprep.subr.mxu0 0.0
        %841 = vmatpush1.msra.mxu0 0.0
        %842 = vmatprep.subr.mxu0 0.0
        %843 = vmatpush1.msra.mxu0 0.0
        %844 = vmatprep.subr.mxu0 0.0
        %845 = vmatpush1.msra.mxu0 0.0
        %846 = vmatprep.subr.mxu0 0.0
        %847 = vmatpush1.msra.mxu0 0.0
        %848 = vmatprep.subr.mxu0 0.0
        %849 = vmatpush1.msra.mxu0 0.0
        %850 = vmatprep.subr.mxu0 0.0
        %851 = vmatpush1.msra.mxu0 0.0
        %852 = vmatprep.subr.mxu0 0.0
        %853 = vmatpush1.msra.mxu0 0.0
        %854 = vmatprep.subr.mxu0 0.0
        %855 = vmatpush1.msra.mxu0 0.0
        %856 = vmatprep.subr.mxu0 0.0
        %857 = vmatpush1.msra.mxu0 0.0
        %858 = vmatprep.subr.mxu0 0.0
        %859 = vmatpush1.msra.mxu0 0.0
        %860 = vmatprep.subr.mxu0 0.0
        %861 = vmatpush1.msra.mxu0 0.0
        %862 = vmatprep.subr.mxu0 0.0
        %863 = vmatpush1.msra.mxu0 0.0
        %864 = vmatprep.subr.mxu0 0.0
        %865 = vmatpush1.msra.mxu0 0.0
        %866 = vmatprep.subr.mxu0 0.0
        %867 = vmatpush1.msra.mxu0 0.0
        %868 = vmatprep.subr.mxu0 0.0
        %869 = vmatpush1.msra.mxu0 0.0
        %870 = vmatprep.subr.mxu0 0.0
        %871 = vmatpush1.msra.mxu0 0.0
        %872 = vmatprep.subr.mxu0 0.0
        %873 = vmatpush1.msra.mxu0 0.0
        %874 = vmatprep.subr.mxu0 0.0
        %875 = vmatpush1.msra.mxu0 0.0
        %876 = vmatprep.subr.mxu0 0.0
        %877 = vmatpush1.msra.mxu0 0.0
        %878 = vmatprep.subr.mxu0 0.0
        %879 = vmatpush1.msra.mxu0 0.0
        %880 = vmatprep.subr.mxu0 0.0
        %881 = vmatpush1.msra.mxu0 0.0
        %882 = vmatprep.subr.mxu0 0.0
        %883 = vmatpush1.msra.mxu0 0.0
        %884 = vmatprep.subr.mxu0 0.0
        %885 = vmatpush1.msra.mxu0 0.0
        %886 = vmatprep.subr.mxu0 0.0
        %887 = vmatpush1.msra.mxu0 0.0
        %888 = vmatprep.subr.mxu0 0.0
        %889 = vmatpush1.msra.mxu0 0.0
        %890 = vmatprep.mubr.f32.mxu0 0.0
        %891 = vmatmul.mubr.f32.gmra.mrb[0].mxu0 %v617
        %v892 = vpop.f32.mrb[0].mxu0
        %v893 = vadd.f32 0.0, %v892
        %v894 = vpop.f32.mrb[0].mxu0
        %895 = vmatprep.mubr.f32.mxu0 0.0
        %896 = vmatmul.mubr.f32.gmra.mrb[0].mxu0 %v620
        %v897 = vpop.f32.mrb[0].mxu0
        %v898 = vadd.f32 0.0, %v897
        %v899 = vpop.f32.mrb[0].mxu0
        %900 = vmatprep.mubr.f32.mxu0 0.0
        %901 = vmatmul.mubr.f32.gmra.mrb[0].mxu0 %v623
        %v902 = vpop.f32.mrb[0].mxu0
        %v903 = vadd.f32 0.0, %v902
        %v904 = vpop.f32.mrb[0].mxu0
        %905 = vmatprep.mubr.f32.mxu0 0.0
        %906 = vmatmul.mubr.f32.gmra.mrb[0].mxu0 %v626
        %v907 = vpop.f32.mrb[0].mxu0
        %v908 = vadd.f32 0.0, %v907
        %v909 = vpop.f32.mrb[0].mxu0
        %910 = vdwg.mxu0
        %v911 = vand.u32 2147483647, %v893
        %v912 = vand.u32 2147483647, %v898
        %v913 = vand.u32 2147483647, %v903
        %v914 = vand.u32 2147483647, %v908
        %917 = vrot.lane.b32.xlu0 %v913, 112
        %v918 = vpop.permute.xlu0 %917
        %919 = vrot.lane.b32.xlu0 %v914, 112
        %v920 = vpop.permute.xlu0 %919
        %v923 = vadd.f32 %v911, %v918
        %v924 = vadd.f32 %v912, %v920
        %925 = vmatprep.subr.mxu0 0.0
        %926 = vmatpush1.msra.mxu0 %v600
        %927 = vmatprep.subr.mxu0 0.0
        %928 = vmatpush1.msra.mxu0 %v605
        %929 = vmatprep.subr.mxu0 0.0
        %930 = vmatpush1.msra.mxu0 0.0
        %931 = vmatprep.subr.mxu0 0.0
        %932 = vmatpush1.msra.mxu0 0.0
        %933 = vmatprep.subr.mxu0 0.0
        %934 = vmatpush1.msra.mxu0 0.0
        %935 = vmatprep.subr.mxu0 0.0
        %936 = vmatpush1.msra.mxu0 0.0
        %937 = vmatprep.subr.mxu0 0.0
        %938 = vmatpush1.msra.mxu0 0.0
        %939 = vmatprep.subr.mxu0 0.0
        %940 = vmatpush1.msra.mxu0 0.0
        %941 = vmatprep.subr.mxu0 0.0
        %942 = vmatpush1.msra.mxu0 0.0
        %943 = vmatprep.subr.mxu0 0.0
        %944 = vmatpush1.msra.mxu0 0.0
        %945 = vmatprep.subr.mxu0 0.0
        %946 = vmatpush1.msra.mxu0 0.0
        %947 = vmatprep.subr.mxu0 0.0
        %948 = vmatpush1.msra.mxu0 0.0
        %949 = vmatprep.subr.mxu0 0.0
        %950 = vmatpush1.msra.mxu0 0.0
        %951 = vmatprep.subr.mxu0 0.0
        %952 = vmatpush1.msra.mxu0 0.0
        %953 = vmatprep.subr.mxu0 0.0
        %954 = vmatpush1.msra.mxu0 0.0
        %955 = vmatprep.subr.mxu0 0.0
        %956 = vmatpush1.msra.mxu0 0.0
        %957 = vmatprep.subr.mxu0 0.0
        %958 = vmatpush1.msra.mxu0 0.0
        %959 = vmatprep.subr.mxu0 0.0
        %960 = vmatpush1.msra.mxu0 0.0
        %961 = vmatprep.subr.mxu0 0.0
        %962 = vmatpush1.msra.mxu0 0.0
        %963 = vmatprep.subr.mxu0 0.0
        %964 = vmatpush1.msra.mxu0 0.0
        %965 = vmatprep.subr.mxu0 0.0
        %966 = vmatpush1.msra.mxu0 0.0
        %967 = vmatprep.subr.mxu0 0.0
        %968 = vmatpush1.msra.mxu0 0.0
        %969 = vmatprep.subr.mxu0 0.0
        %970 = vmatpush1.msra.mxu0 0.0
        %971 = vmatprep.subr.mxu0 0.0
        %972 = vmatpush1.msra.mxu0 0.0
        %973 = vmatprep.subr.mxu0 0.0
        %974 = vmatpush1.msra.mxu0 0.0
        %975 = vmatprep.subr.mxu0 0.0
        %976 = vmatpush1.msra.mxu0 0.0
        %977 = vmatprep.subr.mxu0 0.0
        %978 = vmatpush1.msra.mxu0 0.0
        %979 = vmatprep.subr.mxu0 0.0
        %980 = vmatpush1.msra.mxu0 0.0
        %981 = vmatprep.subr.mxu0 0.0
        %982 = vmatpush1.msra.mxu0 0.0
        %983 = vmatprep.subr.mxu0 0.0
        %984 = vmatpush1.msra.mxu0 0.0
        %985 = vmatprep.subr.mxu0 0.0
        %986 = vmatpush1.msra.mxu0 0.0
        %987 = vmatprep.subr.mxu0 0.0
        %988 = vmatpush1.msra.mxu0 0.0
        %989 = vmatprep.mubr.f32.mxu0 0.0
        %990 = vmatmul.mubr.f32.gmra.mrb[0].mxu0 %v617
        %v991 = vpop.f32.mrb[0].mxu0
        %v992 = vadd.f32 0.0, %v991
        %v993 = vpop.f32.mrb[0].mxu0
        %994 = vmatprep.mubr.f32.mxu0 0.0
        %995 = vmatmul.mubr.f32.gmra.mrb[0].mxu0 %v620
        %v996 = vpop.f32.mrb[0].mxu0
        %v997 = vadd.f32 0.0, %v996
        %v998 = vpop.f32.mrb[0].mxu0
        %999 = vmatprep.mubr.f32.mxu0 0.0
        %1000 = vmatmul.mubr.f32.gmra.mrb[0].mxu0 %v623
        %v1001 = vpop.f32.mrb[0].mxu0
        %v1002 = vadd.f32 0.0, %v1001
        %v1003 = vpop.f32.mrb[0].mxu0
        %1004 = vmatprep.mubr.f32.mxu0 0.0
        %1005 = vmatmul.mubr.f32.gmra.mrb[0].mxu0 %v626
        %v1006 = vpop.f32.mrb[0].mxu0
        %v1007 = vadd.f32 0.0, %v1006
        %v1008 = vpop.f32.mrb[0].mxu0
        %1009 = vdwg.mxu0
        %v1010 = vand.u32 2147483647, %v992
        %v1011 = vand.u32 2147483647, %v997
        %v1012 = vand.u32 2147483647, %v1002
        %v1013 = vand.u32 2147483647, %v1007
        %1016 = vrot.lane.b32.xlu0 %v1012, 112
        %v1017 = vpop.permute.xlu0 %1016
        %1018 = vrot.lane.b32.xlu0 %v1013, 112
        %v1019 = vpop.permute.xlu0 %1018
        %v1022 = vadd.f32 %v1010, %v1017
        %v1023 = vadd.f32 %v1011, %v1019
        %1026 = vrot.lane.b32.xlu0 %v570, 96
        %v1027 = vpop.permute.xlu0 %1026
        %1028 = vrot.lane.b32.xlu0 %v575, 96
        %v1029 = vpop.permute.xlu0 %1028
        %v1033 = vsel %vm451, %v612, 0
        %v1036 = vsel %vm451, %v613, 0
        %1038 = vmatprep.subr.mxu0 0.0
        %1039 = vmatpush1.msra.mxu0 %v1027
        %1040 = vmatprep.subr.mxu0 0.0
        %1041 = vmatpush1.msra.mxu0 %v1029
        %1042 = vmatprep.subr.mxu0 0.0
        %1043 = vmatpush1.msra.mxu0 0.0
        %1044 = vmatprep.subr.mxu0 0.0
        %1045 = vmatpush1.msra.mxu0 0.0
        %1046 = vmatprep.subr.mxu0 0.0
        %1047 = vmatpush1.msra.mxu0 0.0
        %1048 = vmatprep.subr.mxu0 0.0
        %1049 = vmatpush1.msra.mxu0 0.0
        %1050 = vmatprep.subr.mxu0 0.0
        %1051 = vmatpush1.msra.mxu0 0.0
        %1052 = vmatprep.subr.mxu0 0.0
        %1053 = vmatpush1.msra.mxu0 0.0
        %1054 = vmatprep.subr.mxu0 0.0
        %1055 = vmatpush1.msra.mxu0 0.0
        %1056 = vmatprep.subr.mxu0 0.0
        %1057 = vmatpush1.msra.mxu0 0.0
        %1058 = vmatprep.subr.mxu0 0.0
        %1059 = vmatpush1.msra.mxu0 0.0
        %1060 = vmatprep.subr.mxu0 0.0
        %1061 = vmatpush1.msra.mxu0 0.0
        %1062 = vmatprep.subr.mxu0 0.0
        %1063 = vmatpush1.msra.mxu0 0.0
        %1064 = vmatprep.subr.mxu0 0.0
        %1065 = vmatpush1.msra.mxu0 0.0
        %1066 = vmatprep.subr.mxu0 0.0
        %1067 = vmatpush1.msra.mxu0 0.0
        %1068 = vmatprep.subr.mxu0 0.0
        %1069 = vmatpush1.msra.mxu0 0.0
        %1070 = vmatprep.subr.mxu0 0.0
        %1071 = vmatpush1.msra.mxu0 0.0
        %1072 = vmatprep.subr.mxu0 0.0
        %1073 = vmatpush1.msra.mxu0 0.0
        %1074 = vmatprep.subr.mxu0 0.0
        %1075 = vmatpush1.msra.mxu0 0.0
        %1076 = vmatprep.subr.mxu0 0.0
        %1077 = vmatpush1.msra.mxu0 0.0
        %1078 = vmatprep.subr.mxu0 0.0
        %1079 = vmatpush1.msra.mxu0 0.0
        %1080 = vmatprep.subr.mxu0 0.0
        %1081 = vmatpush1.msra.mxu0 0.0
        %1082 = vmatprep.subr.mxu0 0.0
        %1083 = vmatpush1.msra.mxu0 0.0
        %1084 = vmatprep.subr.mxu0 0.0
        %1085 = vmatpush1.msra.mxu0 0.0
        %1086 = vmatprep.subr.mxu0 0.0
        %1087 = vmatpush1.msra.mxu0 0.0
        %1088 = vmatprep.subr.mxu0 0.0
        %1089 = vmatpush1.msra.mxu0 0.0
        %1090 = vmatprep.subr.mxu0 0.0
        %1091 = vmatpush1.msra.mxu0 0.0
        %1092 = vmatprep.subr.mxu0 0.0
        %1093 = vmatpush1.msra.mxu0 0.0
        %1094 = vmatprep.subr.mxu0 0.0
        %1095 = vmatpush1.msra.mxu0 0.0
        %1096 = vmatprep.subr.mxu0 0.0
        %1097 = vmatpush1.msra.mxu0 0.0
        %1098 = vmatprep.subr.mxu0 0.0
        %1099 = vmatpush1.msra.mxu0 0.0
        %1100 = vmatprep.subr.mxu0 0.0
        %1101 = vmatpush1.msra.mxu0 0.0
        %1102 = vmatprep.mubr.f32.mxu0 0.0
        %1103 = vmatmul.mubr.f32.gmra.mrb[0].mxu0 %v1033
        %v1104 = vpop.f32.mrb[0].mxu0
        %v1105 = vadd.f32 0.0, %v1104
        %v1106 = vpop.f32.mrb[0].mxu0
        %1107 = vmatprep.mubr.f32.mxu0 0.0
        %1108 = vmatmul.mubr.f32.gmra.mrb[0].mxu0 %v1036
        %v1109 = vpop.f32.mrb[0].mxu0
        %v1110 = vadd.f32 0.0, %v1109
        %v1111 = vpop.f32.mrb[0].mxu0
        %1112 = vdwg.mxu0
        %v1113 = vand.u32 2147483647, %v1105
        %v1114 = vand.u32 2147483647, %v1110
        %1116 = vrot.lane.b32.xlu0 %v1114, 120
        %v1117 = vpop.permute.xlu0 %1116
        %v1119 = vadd.f32 %v1113, %v1117
        %1122 = vrot.lane.b32.xlu0 %v580, 96
        %v1123 = vpop.permute.xlu0 %1122
        %1124 = vrot.lane.b32.xlu0 %v585, 96
        %v1125 = vpop.permute.xlu0 %1124
        %1128 = vmatprep.subr.mxu0 0.0
        %1129 = vmatpush1.msra.mxu0 %v1123
        %1130 = vmatprep.subr.mxu0 0.0
        %1131 = vmatpush1.msra.mxu0 %v1125
        %1132 = vmatprep.subr.mxu0 0.0
        %1133 = vmatpush1.msra.mxu0 0.0
        %1134 = vmatprep.subr.mxu0 0.0
        %1135 = vmatpush1.msra.mxu0 0.0
        %1136 = vmatprep.subr.mxu0 0.0
        %1137 = vmatpush1.msra.mxu0 0.0
        %1138 = vmatprep.subr.mxu0 0.0
        %1139 = vmatpush1.msra.mxu0 0.0
        %1140 = vmatprep.subr.mxu0 0.0
        %1141 = vmatpush1.msra.mxu0 0.0
        %1142 = vmatprep.subr.mxu0 0.0
        %1143 = vmatpush1.msra.mxu0 0.0
        %1144 = vmatprep.subr.mxu0 0.0
        %1145 = vmatpush1.msra.mxu0 0.0
        %1146 = vmatprep.subr.mxu0 0.0
        %1147 = vmatpush1.msra.mxu0 0.0
        %1148 = vmatprep.subr.mxu0 0.0
        %1149 = vmatpush1.msra.mxu0 0.0
        %1150 = vmatprep.subr.mxu0 0.0
        %1151 = vmatpush1.msra.mxu0 0.0
        %1152 = vmatprep.subr.mxu0 0.0
        %1153 = vmatpush1.msra.mxu0 0.0
        %1154 = vmatprep.subr.mxu0 0.0
        %1155 = vmatpush1.msra.mxu0 0.0
        %1156 = vmatprep.subr.mxu0 0.0
        %1157 = vmatpush1.msra.mxu0 0.0
        %1158 = vmatprep.subr.mxu0 0.0
        %1159 = vmatpush1.msra.mxu0 0.0
        %1160 = vmatprep.subr.mxu0 0.0
        %1161 = vmatpush1.msra.mxu0 0.0
        %1162 = vmatprep.subr.mxu0 0.0
        %1163 = vmatpush1.msra.mxu0 0.0
        %1164 = vmatprep.subr.mxu0 0.0
        %1165 = vmatpush1.msra.mxu0 0.0
        %1166 = vmatprep.subr.mxu0 0.0
        %1167 = vmatpush1.msra.mxu0 0.0
        %1168 = vmatprep.subr.mxu0 0.0
        %1169 = vmatpush1.msra.mxu0 0.0
        %1170 = vmatprep.subr.mxu0 0.0
        %1171 = vmatpush1.msra.mxu0 0.0
        %1172 = vmatprep.subr.mxu0 0.0
        %1173 = vmatpush1.msra.mxu0 0.0
        %1174 = vmatprep.subr.mxu0 0.0
        %1175 = vmatpush1.msra.mxu0 0.0
        %1176 = vmatprep.subr.mxu0 0.0
        %1177 = vmatpush1.msra.mxu0 0.0
        %1178 = vmatprep.subr.mxu0 0.0
        %1179 = vmatpush1.msra.mxu0 0.0
        %1180 = vmatprep.subr.mxu0 0.0
        %1181 = vmatpush1.msra.mxu0 0.0
        %1182 = vmatprep.subr.mxu0 0.0
        %1183 = vmatpush1.msra.mxu0 0.0
        %1184 = vmatprep.subr.mxu0 0.0
        %1185 = vmatpush1.msra.mxu0 0.0
        %1186 = vmatprep.subr.mxu0 0.0
        %1187 = vmatpush1.msra.mxu0 0.0
        %1188 = vmatprep.subr.mxu0 0.0
        %1189 = vmatpush1.msra.mxu0 0.0
        %1190 = vmatprep.subr.mxu0 0.0
        %1191 = vmatpush1.msra.mxu0 0.0
        %1192 = vmatprep.mubr.f32.mxu0 0.0
        %1193 = vmatmul.mubr.f32.gmra.mrb[0].mxu0 %v1033
        %v1194 = vpop.f32.mrb[0].mxu0
        %v1195 = vadd.f32 0.0, %v1194
        %v1196 = vpop.f32.mrb[0].mxu0
        %1197 = vmatprep.mubr.f32.mxu0 0.0
        %1198 = vmatmul.mubr.f32.gmra.mrb[0].mxu0 %v1036
        %v1199 = vpop.f32.mrb[0].mxu0
        %v1200 = vadd.f32 0.0, %v1199
        %v1201 = vpop.f32.mrb[0].mxu0
        %1202 = vdwg.mxu0
        %v1203 = vand.u32 2147483647, %v1195
        %v1204 = vand.u32 2147483647, %v1200
        %1206 = vrot.lane.b32.xlu0 %v1204, 120
        %v1207 = vpop.permute.xlu0 %1206
        %v1209 = vadd.f32 %v1203, %v1207
        %1212 = vrot.lane.b32.xlu0 %v590, 96
        %v1213 = vpop.permute.xlu0 %1212
        %1214 = vrot.lane.b32.xlu0 %v595, 96
        %v1215 = vpop.permute.xlu0 %1214
        %1218 = vmatprep.subr.mxu0 0.0
        %1219 = vmatpush1.msra.mxu0 %v1213
        %1220 = vmatprep.subr.mxu0 0.0
        %1221 = vmatpush1.msra.mxu0 %v1215
        %1222 = vmatprep.subr.mxu0 0.0
        %1223 = vmatpush1.msra.mxu0 0.0
        %1224 = vmatprep.subr.mxu0 0.0
        %1225 = vmatpush1.msra.mxu0 0.0
        %1226 = vmatprep.subr.mxu0 0.0
        %1227 = vmatpush1.msra.mxu0 0.0
        %1228 = vmatprep.subr.mxu0 0.0
        %1229 = vmatpush1.msra.mxu0 0.0
        %1230 = vmatprep.subr.mxu0 0.0
        %1231 = vmatpush1.msra.mxu0 0.0
        %1232 = vmatprep.subr.mxu0 0.0
        %1233 = vmatpush1.msra.mxu0 0.0
        %1234 = vmatprep.subr.mxu0 0.0
        %1235 = vmatpush1.msra.mxu0 0.0
        %1236 = vmatprep.subr.mxu0 0.0
        %1237 = vmatpush1.msra.mxu0 0.0
        %1238 = vmatprep.subr.mxu0 0.0
        %1239 = vmatpush1.msra.mxu0 0.0
        %1240 = vmatprep.subr.mxu0 0.0
        %1241 = vmatpush1.msra.mxu0 0.0
        %1242 = vmatprep.subr.mxu0 0.0
        %1243 = vmatpush1.msra.mxu0 0.0
        %1244 = vmatprep.subr.mxu0 0.0
        %1245 = vmatpush1.msra.mxu0 0.0
        %1246 = vmatprep.subr.mxu0 0.0
        %1247 = vmatpush1.msra.mxu0 0.0
        %1248 = vmatprep.subr.mxu0 0.0
        %1249 = vmatpush1.msra.mxu0 0.0
        %1250 = vmatprep.subr.mxu0 0.0
        %1251 = vmatpush1.msra.mxu0 0.0
        %1252 = vmatprep.subr.mxu0 0.0
        %1253 = vmatpush1.msra.mxu0 0.0
        %1254 = vmatprep.subr.mxu0 0.0
        %1255 = vmatpush1.msra.mxu0 0.0
        %1256 = vmatprep.subr.mxu0 0.0
        %1257 = vmatpush1.msra.mxu0 0.0
        %1258 = vmatprep.subr.mxu0 0.0
        %1259 = vmatpush1.msra.mxu0 0.0
        %1260 = vmatprep.subr.mxu0 0.0
        %1261 = vmatpush1.msra.mxu0 0.0
        %1262 = vmatprep.subr.mxu0 0.0
        %1263 = vmatpush1.msra.mxu0 0.0
        %1264 = vmatprep.subr.mxu0 0.0
        %1265 = vmatpush1.msra.mxu0 0.0
        %1266 = vmatprep.subr.mxu0 0.0
        %1267 = vmatpush1.msra.mxu0 0.0
        %1268 = vmatprep.subr.mxu0 0.0
        %1269 = vmatpush1.msra.mxu0 0.0
        %1270 = vmatprep.subr.mxu0 0.0
        %1271 = vmatpush1.msra.mxu0 0.0
        %1272 = vmatprep.subr.mxu0 0.0
        %1273 = vmatpush1.msra.mxu0 0.0
        %1274 = vmatprep.subr.mxu0 0.0
        %1275 = vmatpush1.msra.mxu0 0.0
        %1276 = vmatprep.subr.mxu0 0.0
        %1277 = vmatpush1.msra.mxu0 0.0
        %1278 = vmatprep.subr.mxu0 0.0
        %1279 = vmatpush1.msra.mxu0 0.0
        %1280 = vmatprep.subr.mxu0 0.0
        %1281 = vmatpush1.msra.mxu0 0.0
        %1282 = vmatprep.mubr.f32.mxu0 0.0
        %1283 = vmatmul.mubr.f32.gmra.mrb[0].mxu0 %v1033
        %v1284 = vpop.f32.mrb[0].mxu0
        %v1285 = vadd.f32 0.0, %v1284
        %v1286 = vpop.f32.mrb[0].mxu0
        %1287 = vmatprep.mubr.f32.mxu0 0.0
        %1288 = vmatmul.mubr.f32.gmra.mrb[0].mxu0 %v1036
        %v1289 = vpop.f32.mrb[0].mxu0
        %v1290 = vadd.f32 0.0, %v1289
        %v1291 = vpop.f32.mrb[0].mxu0
        %1292 = vdwg.mxu0
        %v1293 = vand.u32 2147483647, %v1285
        %v1294 = vand.u32 2147483647, %v1290
        %1296 = vrot.lane.b32.xlu0 %v1294, 120
        %v1297 = vpop.permute.xlu0 %1296
        %v1299 = vadd.f32 %v1293, %v1297
        %1302 = vrot.lane.b32.xlu0 %v600, 96
        %v1303 = vpop.permute.xlu0 %1302
        %1304 = vrot.lane.b32.xlu0 %v605, 96
        %v1305 = vpop.permute.xlu0 %1304
        %1308 = vmatprep.subr.mxu0 0.0
        %1309 = vmatpush1.msra.mxu0 %v1303
        %1310 = vmatprep.subr.mxu0 0.0
        %1311 = vmatpush1.msra.mxu0 %v1305
        %1312 = vmatprep.subr.mxu0 0.0
        %1313 = vmatpush1.msra.mxu0 0.0
        %1314 = vmatprep.subr.mxu0 0.0
        %1315 = vmatpush1.msra.mxu0 0.0
        %1316 = vmatprep.subr.mxu0 0.0
        %1317 = vmatpush1.msra.mxu0 0.0
        %1318 = vmatprep.subr.mxu0 0.0
        %1319 = vmatpush1.msra.mxu0 0.0
        %1320 = vmatprep.subr.mxu0 0.0
        %1321 = vmatpush1.msra.mxu0 0.0
        %1322 = vmatprep.subr.mxu0 0.0
        %1323 = vmatpush1.msra.mxu0 0.0
        %1324 = vmatprep.subr.mxu0 0.0
        %1325 = vmatpush1.msra.mxu0 0.0
        %1326 = vmatprep.subr.mxu0 0.0
        %1327 = vmatpush1.msra.mxu0 0.0
        %1328 = vmatprep.subr.mxu0 0.0
        %1329 = vmatpush1.msra.mxu0 0.0
        %1330 = vmatprep.subr.mxu0 0.0
        %1331 = vmatpush1.msra.mxu0 0.0
        %1332 = vmatprep.subr.mxu0 0.0
        %1333 = vmatpush1.msra.mxu0 0.0
        %1334 = vmatprep.subr.mxu0 0.0
        %1335 = vmatpush1.msra.mxu0 0.0
        %1336 = vmatprep.subr.mxu0 0.0
        %1337 = vmatpush1.msra.mxu0 0.0
        %1338 = vmatprep.subr.mxu0 0.0
        %1339 = vmatpush1.msra.mxu0 0.0
        %1340 = vmatprep.subr.mxu0 0.0
        %1341 = vmatpush1.msra.mxu0 0.0
        %1342 = vmatprep.subr.mxu0 0.0
        %1343 = vmatpush1.msra.mxu0 0.0
        %1344 = vmatprep.subr.mxu0 0.0
        %1345 = vmatpush1.msra.mxu0 0.0
        %1346 = vmatprep.subr.mxu0 0.0
        %1347 = vmatpush1.msra.mxu0 0.0
        %1348 = vmatprep.subr.mxu0 0.0
        %1349 = vmatpush1.msra.mxu0 0.0
        %1350 = vmatprep.subr.mxu0 0.0
        %1351 = vmatpush1.msra.mxu0 0.0
        %1352 = vmatprep.subr.mxu0 0.0
        %1353 = vmatpush1.msra.mxu0 0.0
        %1354 = vmatprep.subr.mxu0 0.0
        %1355 = vmatpush1.msra.mxu0 0.0
        %1356 = vmatprep.subr.mxu0 0.0
        %1357 = vmatpush1.msra.mxu0 0.0
        %1358 = vmatprep.subr.mxu0 0.0
        %1359 = vmatpush1.msra.mxu0 0.0
        %1360 = vmatprep.subr.mxu0 0.0
        %1361 = vmatpush1.msra.mxu0 0.0
        %1362 = vmatprep.subr.mxu0 0.0
        %1363 = vmatpush1.msra.mxu0 0.0
        %1364 = vmatprep.subr.mxu0 0.0
        %1365 = vmatpush1.msra.mxu0 0.0
        %1366 = vmatprep.subr.mxu0 0.0
        %1367 = vmatpush1.msra.mxu0 0.0
        %1368 = vmatprep.subr.mxu0 0.0
        %1369 = vmatpush1.msra.mxu0 0.0
        %1370 = vmatprep.subr.mxu0 0.0
        %1371 = vmatpush1.msra.mxu0 0.0
        %1372 = vmatprep.mubr.f32.mxu0 0.0
        %1373 = vmatmul.mubr.f32.gmra.mrb[0].mxu0 %v1033
        %v1374 = vpop.f32.mrb[0].mxu0
        %v1375 = vadd.f32 0.0, %v1374
        %v1376 = vpop.f32.mrb[0].mxu0
        %1377 = vmatprep.mubr.f32.mxu0 0.0
        %1378 = vmatmul.mubr.f32.gmra.mrb[0].mxu0 %v1036
        %v1379 = vpop.f32.mrb[0].mxu0
        %v1380 = vadd.f32 0.0, %v1379
        %v1381 = vpop.f32.mrb[0].mxu0
        %1382 = vdwg.mxu0
        %v1383 = vand.u32 2147483647, %v1375
        %v1384 = vand.u32 2147483647, %v1380
        %1386 = vrot.lane.b32.xlu0 %v1384, 120
        %v1387 = vpop.permute.xlu0 %1386
        %v1389 = vadd.f32 %v1383, %v1387
        %1390 = vrot.lane.b32.xlu0 %v570, 80
        %v1391 = vpop.permute.xlu0 %1390
        %1392 = vrot.lane.b32.xlu0 %v575, 80
        %v1393 = vpop.permute.xlu0 %1392
        %v1397 = vsel %vm451, %v614, 0
        %1399 = vmatprep.subr.mxu0 0.0
        %1400 = vmatpush1.msra.mxu0 %v1391
        %1401 = vmatprep.subr.mxu0 0.0
        %1402 = vmatpush1.msra.mxu0 %v1393
        %1403 = vmatprep.subr.mxu0 0.0
        %1404 = vmatpush1.msra.mxu0 0.0
        %1405 = vmatprep.subr.mxu0 0.0
        %1406 = vmatpush1.msra.mxu0 0.0
        %1407 = vmatprep.subr.mxu0 0.0
        %1408 = vmatpush1.msra.mxu0 0.0
        %1409 = vmatprep.subr.mxu0 0.0
        %1410 = vmatpush1.msra.mxu0 0.0
        %1411 = vmatprep.subr.mxu0 0.0
        %1412 = vmatpush1.msra.mxu0 0.0
        %1413 = vmatprep.subr.mxu0 0.0
        %1414 = vmatpush1.msra.mxu0 0.0
        %1415 = vmatprep.subr.mxu0 0.0
        %1416 = vmatpush1.msra.mxu0 0.0
        %1417 = vmatprep.subr.mxu0 0.0
        %1418 = vmatpush1.msra.mxu0 0.0
        %1419 = vmatprep.subr.mxu0 0.0
        %1420 = vmatpush1.msra.mxu0 0.0
        %1421 = vmatprep.subr.mxu0 0.0
        %1422 = vmatpush1.msra.mxu0 0.0
        %1423 = vmatprep.subr.mxu0 0.0
        %1424 = vmatpush1.msra.mxu0 0.0
        %1425 = vmatprep.subr.mxu0 0.0
        %1426 = vmatpush1.msra.mxu0 0.0
        %1427 = vmatprep.subr.mxu0 0.0
        %1428 = vmatpush1.msra.mxu0 0.0
        %1429 = vmatprep.subr.mxu0 0.0
        %1430 = vmatpush1.msra.mxu0 0.0
        %1431 = vmatprep.subr.mxu0 0.0
        %1432 = vmatpush1.msra.mxu0 0.0
        %1433 = vmatprep.subr.mxu0 0.0
        %1434 = vmatpush1.msra.mxu0 0.0
        %1435 = vmatprep.subr.mxu0 0.0
        %1436 = vmatpush1.msra.mxu0 0.0
        %1437 = vmatprep.subr.mxu0 0.0
        %1438 = vmatpush1.msra.mxu0 0.0
        %1439 = vmatprep.subr.mxu0 0.0
        %1440 = vmatpush1.msra.mxu0 0.0
        %1441 = vmatprep.subr.mxu0 0.0
        %1442 = vmatpush1.msra.mxu0 0.0
        %1443 = vmatprep.subr.mxu0 0.0
        %1444 = vmatpush1.msra.mxu0 0.0
        %1445 = vmatprep.subr.mxu0 0.0
        %1446 = vmatpush1.msra.mxu0 0.0
        %1447 = vmatprep.subr.mxu0 0.0
        %1448 = vmatpush1.msra.mxu0 0.0
        %1449 = vmatprep.subr.mxu0 0.0
        %1450 = vmatpush1.msra.mxu0 0.0
        %1451 = vmatprep.subr.mxu0 0.0
        %1452 = vmatpush1.msra.mxu0 0.0
        %1453 = vmatprep.subr.mxu0 0.0
        %1454 = vmatpush1.msra.mxu0 0.0
        %1455 = vmatprep.subr.mxu0 0.0
        %1456 = vmatpush1.msra.mxu0 0.0
        %1457 = vmatprep.subr.mxu0 0.0
        %1458 = vmatpush1.msra.mxu0 0.0
        %1459 = vmatprep.subr.mxu0 0.0
        %1460 = vmatpush1.msra.mxu0 0.0
        %1461 = vmatprep.subr.mxu0 0.0
        %1462 = vmatpush1.msra.mxu0 0.0
        %1463 = vmatprep.mubr.f32.mxu0 0.0
        %1464 = vmatmul.mubr.f32.gmra.mrb[0].mxu0 %v1397
        %v1465 = vpop.f32.mrb[0].mxu0
        %v1466 = vadd.f32 0.0, %v1465
        %v1467 = vpop.f32.mrb[0].mxu0
        %1468 = vdwg.mxu0
        %v1469 = vand.u32 2147483647, %v1466
        %v1471 = vrot.slane %v1469, 4
        %1472 = vrot.lane.b32.xlu0 %v1471, 124
        %v1473 = vpop.permute.xlu0 %1472
        %v1475 = vadd.f32 %v1469, %v1473
        %1476 = vrot.lane.b32.xlu0 %v580, 80
        %v1477 = vpop.permute.xlu0 %1476
        %1478 = vrot.lane.b32.xlu0 %v585, 80
        %v1479 = vpop.permute.xlu0 %1478
        %1482 = vmatprep.subr.mxu0 0.0
        %1483 = vmatpush1.msra.mxu0 %v1477
        %1484 = vmatprep.subr.mxu0 0.0
        %1485 = vmatpush1.msra.mxu0 %v1479
        %1486 = vmatprep.subr.mxu0 0.0
        %1487 = vmatpush1.msra.mxu0 0.0
        %1488 = vmatprep.subr.mxu0 0.0
        %1489 = vmatpush1.msra.mxu0 0.0
        %1490 = vmatprep.subr.mxu0 0.0
        %1491 = vmatpush1.msra.mxu0 0.0
        %1492 = vmatprep.subr.mxu0 0.0
        %1493 = vmatpush1.msra.mxu0 0.0
        %1494 = vmatprep.subr.mxu0 0.0
        %1495 = vmatpush1.msra.mxu0 0.0
        %1496 = vmatprep.subr.mxu0 0.0
        %1497 = vmatpush1.msra.mxu0 0.0
        %1498 = vmatprep.subr.mxu0 0.0
        %1499 = vmatpush1.msra.mxu0 0.0
        %1500 = vmatprep.subr.mxu0 0.0
        %1501 = vmatpush1.msra.mxu0 0.0
        %1502 = vmatprep.subr.mxu0 0.0
        %1503 = vmatpush1.msra.mxu0 0.0
        %1504 = vmatprep.subr.mxu0 0.0
        %1505 = vmatpush1.msra.mxu0 0.0
        %1506 = vmatprep.subr.mxu0 0.0
        %1507 = vmatpush1.msra.mxu0 0.0
        %1508 = vmatprep.subr.mxu0 0.0
        %1509 = vmatpush1.msra.mxu0 0.0
        %1510 = vmatprep.subr.mxu0 0.0
        %1511 = vmatpush1.msra.mxu0 0.0
        %1512 = vmatprep.subr.mxu0 0.0
        %1513 = vmatpush1.msra.mxu0 0.0
        %1514 = vmatprep.subr.mxu0 0.0
        %1515 = vmatpush1.msra.mxu0 0.0
        %1516 = vmatprep.subr.mxu0 0.0
        %1517 = vmatpush1.msra.mxu0 0.0
        %1518 = vmatprep.subr.mxu0 0.0
        %1519 = vmatpush1.msra.mxu0 0.0
        %1520 = vmatprep.subr.mxu0 0.0
        %1521 = vmatpush1.msra.mxu0 0.0
        %1522 = vmatprep.subr.mxu0 0.0
        %1523 = vmatpush1.msra.mxu0 0.0
        %1524 = vmatprep.subr.mxu0 0.0
        %1525 = vmatpush1.msra.mxu0 0.0
        %1526 = vmatprep.subr.mxu0 0.0
        %1527 = vmatpush1.msra.mxu0 0.0
        %1528 = vmatprep.subr.mxu0 0.0
        %1529 = vmatpush1.msra.mxu0 0.0
        %1530 = vmatprep.subr.mxu0 0.0
        %1531 = vmatpush1.msra.mxu0 0.0
        %1532 = vmatprep.subr.mxu0 0.0
        %1533 = vmatpush1.msra.mxu0 0.0
        %1534 = vmatprep.subr.mxu0 0.0
        %1535 = vmatpush1.msra.mxu0 0.0
        %1536 = vmatprep.subr.mxu0 0.0
        %1537 = vmatpush1.msra.mxu0 0.0
        %1538 = vmatprep.subr.mxu0 0.0
        %1539 = vmatpush1.msra.mxu0 0.0
        %1540 = vmatprep.subr.mxu0 0.0
        %1541 = vmatpush1.msra.mxu0 0.0
        %1542 = vmatprep.subr.mxu0 0.0
        %1543 = vmatpush1.msra.mxu0 0.0
        %1544 = vmatprep.subr.mxu0 0.0
        %1545 = vmatpush1.msra.mxu0 0.0
        %1546 = vmatprep.mubr.f32.mxu0 0.0
        %1547 = vmatmul.mubr.f32.gmra.mrb[0].mxu0 %v1397
        %v1548 = vpop.f32.mrb[0].mxu0
        %v1549 = vadd.f32 0.0, %v1548
        %v1550 = vpop.f32.mrb[0].mxu0
        %1551 = vdwg.mxu0
        %v1552 = vand.u32 2147483647, %v1549
        %v1554 = vrot.slane %v1552, 4
        %1555 = vrot.lane.b32.xlu0 %v1554, 124
        %v1556 = vpop.permute.xlu0 %1555
        %v1558 = vadd.f32 %v1552, %v1556
        %1559 = vrot.lane.b32.xlu0 %v590, 80
        %v1560 = vpop.permute.xlu0 %1559
        %1561 = vrot.lane.b32.xlu0 %v595, 80
        %v1562 = vpop.permute.xlu0 %1561
        %1565 = vmatprep.subr.mxu0 0.0
        %1566 = vmatpush1.msra.mxu0 %v1560
        %1567 = vmatprep.subr.mxu0 0.0
        %1568 = vmatpush1.msra.mxu0 %v1562
        %1569 = vmatprep.subr.mxu0 0.0
        %1570 = vmatpush1.msra.mxu0 0.0
        %1571 = vmatprep.subr.mxu0 0.0
        %1572 = vmatpush1.msra.mxu0 0.0
        %1573 = vmatprep.subr.mxu0 0.0
        %1574 = vmatpush1.msra.mxu0 0.0
        %1575 = vmatprep.subr.mxu0 0.0
        %1576 = vmatpush1.msra.mxu0 0.0
        %1577 = vmatprep.subr.mxu0 0.0
        %1578 = vmatpush1.msra.mxu0 0.0
        %1579 = vmatprep.subr.mxu0 0.0
        %1580 = vmatpush1.msra.mxu0 0.0
        %1581 = vmatprep.subr.mxu0 0.0
        %1582 = vmatpush1.msra.mxu0 0.0
        %1583 = vmatprep.subr.mxu0 0.0
        %1584 = vmatpush1.msra.mxu0 0.0
        %1585 = vmatprep.subr.mxu0 0.0
        %1586 = vmatpush1.msra.mxu0 0.0
        %1587 = vmatprep.subr.mxu0 0.0
        %1588 = vmatpush1.msra.mxu0 0.0
        %1589 = vmatprep.subr.mxu0 0.0
        %1590 = vmatpush1.msra.mxu0 0.0
        %1591 = vmatprep.subr.mxu0 0.0
        %1592 = vmatpush1.msra.mxu0 0.0
        %1593 = vmatprep.subr.mxu0 0.0
        %1594 = vmatpush1.msra.mxu0 0.0
        %1595 = vmatprep.subr.mxu0 0.0
        %1596 = vmatpush1.msra.mxu0 0.0
        %1597 = vmatprep.subr.mxu0 0.0
        %1598 = vmatpush1.msra.mxu0 0.0
        %1599 = vmatprep.subr.mxu0 0.0
        %1600 = vmatpush1.msra.mxu0 0.0
        %1601 = vmatprep.subr.mxu0 0.0
        %1602 = vmatpush1.msra.mxu0 0.0
        %1603 = vmatprep.subr.mxu0 0.0
        %1604 = vmatpush1.msra.mxu0 0.0
        %1605 = vmatprep.subr.mxu0 0.0
        %1606 = vmatpush1.msra.mxu0 0.0
        %1607 = vmatprep.subr.mxu0 0.0
        %1608 = vmatpush1.msra.mxu0 0.0
        %1609 = vmatprep.subr.mxu0 0.0
        %1610 = vmatpush1.msra.mxu0 0.0
        %1611 = vmatprep.subr.mxu0 0.0
        %1612 = vmatpush1.msra.mxu0 0.0
        %1613 = vmatprep.subr.mxu0 0.0
        %1614 = vmatpush1.msra.mxu0 0.0
        %1615 = vmatprep.subr.mxu0 0.0
        %1616 = vmatpush1.msra.mxu0 0.0
        %1617 = vmatprep.subr.mxu0 0.0
        %1618 = vmatpush1.msra.mxu0 0.0
        %1619 = vmatprep.subr.mxu0 0.0
        %1620 = vmatpush1.msra.mxu0 0.0
        %1621 = vmatprep.subr.mxu0 0.0
        %1622 = vmatpush1.msra.mxu0 0.0
        %1623 = vmatprep.subr.mxu0 0.0
        %1624 = vmatpush1.msra.mxu0 0.0
        %1625 = vmatprep.subr.mxu0 0.0
        %1626 = vmatpush1.msra.mxu0 0.0
        %1627 = vmatprep.subr.mxu0 0.0
        %1628 = vmatpush1.msra.mxu0 0.0
        %1629 = vmatprep.mubr.f32.mxu0 0.0
        %1630 = vmatmul.mubr.f32.gmra.mrb[0].mxu0 %v1397
        %v1631 = vpop.f32.mrb[0].mxu0
        %v1632 = vadd.f32 0.0, %v1631
        %v1633 = vpop.f32.mrb[0].mxu0
        %1634 = vdwg.mxu0
        %v1635 = vand.u32 2147483647, %v1632
        %v1637 = vrot.slane %v1635, 4
        %1638 = vrot.lane.b32.xlu0 %v1637, 124
        %v1639 = vpop.permute.xlu0 %1638
        %v1641 = vadd.f32 %v1635, %v1639
        %1642 = vrot.lane.b32.xlu0 %v600, 80
        %v1643 = vpop.permute.xlu0 %1642
        %1644 = vrot.lane.b32.xlu0 %v605, 80
        %v1645 = vpop.permute.xlu0 %1644
        %1648 = vmatprep.subr.mxu0 0.0
        %1649 = vmatpush1.msra.mxu0 %v1643
        %1650 = vmatprep.subr.mxu0 0.0
        %1651 = vmatpush1.msra.mxu0 %v1645
        %1652 = vmatprep.subr.mxu0 0.0
        %1653 = vmatpush1.msra.mxu0 0.0
        %1654 = vmatprep.subr.mxu0 0.0
        %1655 = vmatpush1.msra.mxu0 0.0
        %1656 = vmatprep.subr.mxu0 0.0
        %1657 = vmatpush1.msra.mxu0 0.0
        %1658 = vmatprep.subr.mxu0 0.0
        %1659 = vmatpush1.msra.mxu0 0.0
        %1660 = vmatprep.subr.mxu0 0.0
        %1661 = vmatpush1.msra.mxu0 0.0
        %1662 = vmatprep.subr.mxu0 0.0
        %1663 = vmatpush1.msra.mxu0 0.0
        %1664 = vmatprep.subr.mxu0 0.0
        %1665 = vmatpush1.msra.mxu0 0.0
        %1666 = vmatprep.subr.mxu0 0.0
        %1667 = vmatpush1.msra.mxu0 0.0
        %1668 = vmatprep.subr.mxu0 0.0
        %1669 = vmatpush1.msra.mxu0 0.0
        %1670 = vmatprep.subr.mxu0 0.0
        %1671 = vmatpush1.msra.mxu0 0.0
        %1672 = vmatprep.subr.mxu0 0.0
        %1673 = vmatpush1.msra.mxu0 0.0
        %1674 = vmatprep.subr.mxu0 0.0
        %1675 = vmatpush1.msra.mxu0 0.0
        %1676 = vmatprep.subr.mxu0 0.0
        %1677 = vmatpush1.msra.mxu0 0.0
        %1678 = vmatprep.subr.mxu0 0.0
        %1679 = vmatpush1.msra.mxu0 0.0
        %1680 = vmatprep.subr.mxu0 0.0
        %1681 = vmatpush1.msra.mxu0 0.0
        %1682 = vmatprep.subr.mxu0 0.0
        %1683 = vmatpush1.msra.mxu0 0.0
        %1684 = vmatprep.subr.mxu0 0.0
        %1685 = vmatpush1.msra.mxu0 0.0
        %1686 = vmatprep.subr.mxu0 0.0
        %1687 = vmatpush1.msra.mxu0 0.0
        %1688 = vmatprep.subr.mxu0 0.0
        %1689 = vmatpush1.msra.mxu0 0.0
        %1690 = vmatprep.subr.mxu0 0.0
        %1691 = vmatpush1.msra.mxu0 0.0
        %1692 = vmatprep.subr.mxu0 0.0
        %1693 = vmatpush1.msra.mxu0 0.0
        %1694 = vmatprep.subr.mxu0 0.0
        %1695 = vmatpush1.msra.mxu0 0.0
        %1696 = vmatprep.subr.mxu0 0.0
        %1697 = vmatpush1.msra.mxu0 0.0
        %1698 = vmatprep.subr.mxu0 0.0
        %1699 = vmatpush1.msra.mxu0 0.0
        %1700 = vmatprep.subr.mxu0 0.0
        %1701 = vmatpush1.msra.mxu0 0.0
        %1702 = vmatprep.subr.mxu0 0.0
        %1703 = vmatpush1.msra.mxu0 0.0
        %1704 = vmatprep.subr.mxu0 0.0
        %1705 = vmatpush1.msra.mxu0 0.0
        %1706 = vmatprep.subr.mxu0 0.0
        %1707 = vmatpush1.msra.mxu0 0.0
        %1708 = vmatprep.subr.mxu0 0.0
        %1709 = vmatpush1.msra.mxu0 0.0
        %1710 = vmatprep.subr.mxu0 0.0
        %1711 = vmatpush1.msra.mxu0 0.0
        %1712 = vmatprep.mubr.f32.mxu0 0.0
        %1713 = vmatmul.mubr.f32.gmra.mrb[0].mxu0 %v1397
        %v1714 = vpop.f32.mrb[0].mxu0
        %v1715 = vadd.f32 0.0, %v1714
        %v1716 = vpop.f32.mrb[0].mxu0
        %1717 = vdwg.mxu0
        %v1718 = vand.u32 2147483647, %v1715
        %v1720 = vrot.slane %v1718, 4
        %1721 = vrot.lane.b32.xlu0 %v1720, 124
        %v1722 = vpop.permute.xlu0 %1721
        %v1724 = vadd.f32 %v1718, %v1722
        %1725 = vrot.lane.b32.xlu0 %v570, 72
        %v1726 = vpop.permute.xlu0 %1725
        %1727 = vrot.lane.b32.xlu0 %v575, 72
        %v1728 = vpop.permute.xlu0 %1727
        %v1732 = vsel %vm451, %v615, 0
        %1734 = vmatprep.subr.mxu0 0.0
        %1735 = vmatpush1.msra.mxu0 %v1726
        %1736 = vmatprep.subr.mxu0 0.0
        %1737 = vmatpush1.msra.mxu0 %v1728
        %1738 = vmatprep.subr.mxu0 0.0
        %1739 = vmatpush1.msra.mxu0 0.0
        %1740 = vmatprep.subr.mxu0 0.0
        %1741 = vmatpush1.msra.mxu0 0.0
        %1742 = vmatprep.subr.mxu0 0.0
        %1743 = vmatpush1.msra.mxu0 0.0
        %1744 = vmatprep.subr.mxu0 0.0
        %1745 = vmatpush1.msra.mxu0 0.0
        %1746 = vmatprep.subr.mxu0 0.0
        %1747 = vmatpush1.msra.mxu0 0.0
        %1748 = vmatprep.subr.mxu0 0.0
        %1749 = vmatpush1.msra.mxu0 0.0
        %1750 = vmatprep.subr.mxu0 0.0
        %1751 = vmatpush1.msra.mxu0 0.0
        %1752 = vmatprep.subr.mxu0 0.0
        %1753 = vmatpush1.msra.mxu0 0.0
        %1754 = vmatprep.subr.mxu0 0.0
        %1755 = vmatpush1.msra.mxu0 0.0
        %1756 = vmatprep.subr.mxu0 0.0
        %1757 = vmatpush1.msra.mxu0 0.0
        %1758 = vmatprep.subr.mxu0 0.0
        %1759 = vmatpush1.msra.mxu0 0.0
        %1760 = vmatprep.subr.mxu0 0.0
        %1761 = vmatpush1.msra.mxu0 0.0
        %1762 = vmatprep.subr.mxu0 0.0
        %1763 = vmatpush1.msra.mxu0 0.0
        %1764 = vmatprep.subr.mxu0 0.0
        %1765 = vmatpush1.msra.mxu0 0.0
        %1766 = vmatprep.subr.mxu0 0.0
        %1767 = vmatpush1.msra.mxu0 0.0
        %1768 = vmatprep.subr.mxu0 0.0
        %1769 = vmatpush1.msra.mxu0 0.0
        %1770 = vmatprep.subr.mxu0 0.0
        %1771 = vmatpush1.msra.mxu0 0.0
        %1772 = vmatprep.subr.mxu0 0.0
        %1773 = vmatpush1.msra.mxu0 0.0
        %1774 = vmatprep.subr.mxu0 0.0
        %1775 = vmatpush1.msra.mxu0 0.0
        %1776 = vmatprep.subr.mxu0 0.0
        %1777 = vmatpush1.msra.mxu0 0.0
        %1778 = vmatprep.subr.mxu0 0.0
        %1779 = vmatpush1.msra.mxu0 0.0
        %1780 = vmatprep.subr.mxu0 0.0
        %1781 = vmatpush1.msra.mxu0 0.0
        %1782 = vmatprep.subr.mxu0 0.0
        %1783 = vmatpush1.msra.mxu0 0.0
        %1784 = vmatprep.subr.mxu0 0.0
        %1785 = vmatpush1.msra.mxu0 0.0
        %1786 = vmatprep.subr.mxu0 0.0
        %1787 = vmatpush1.msra.mxu0 0.0
        %1788 = vmatprep.subr.mxu0 0.0
        %1789 = vmatpush1.msra.mxu0 0.0
        %1790 = vmatprep.subr.mxu0 0.0
        %1791 = vmatpush1.msra.mxu0 0.0
        %1792 = vmatprep.subr.mxu0 0.0
        %1793 = vmatpush1.msra.mxu0 0.0
        %1794 = vmatprep.subr.mxu0 0.0
        %1795 = vmatpush1.msra.mxu0 0.0
        %1796 = vmatprep.subr.mxu0 0.0
        %1797 = vmatpush1.msra.mxu0 0.0
        %1798 = vmatprep.mubr.f32.mxu0 0.0
        %1799 = vmatmul.mubr.f32.gmra.mrb[0].mxu0 %v1732
        %v1800 = vpop.f32.mrb[0].mxu0
        %v1801 = vadd.f32 0.0, %v1800
        %v1802 = vpop.f32.mrb[0].mxu0
        %1803 = vdwg.mxu0
        %v1804 = vand.u32 2147483647, %v1801
        %v1806 = vrot.slane %v1804, 2
        %1807 = vrot.lane.b32.xlu0 %v1806, 126
        %v1808 = vpop.permute.xlu0 %1807
        %v1810 = vadd.f32 %v1804, %v1808
        %1811 = vrot.lane.b32.xlu0 %v580, 72
        %v1812 = vpop.permute.xlu0 %1811
        %1813 = vrot.lane.b32.xlu0 %v585, 72
        %v1814 = vpop.permute.xlu0 %1813
        %1817 = vmatprep.subr.mxu0 0.0
        %1818 = vmatpush1.msra.mxu0 %v1812
        %1819 = vmatprep.subr.mxu0 0.0
        %1820 = vmatpush1.msra.mxu0 %v1814
        %1821 = vmatprep.subr.mxu0 0.0
        %1822 = vmatpush1.msra.mxu0 0.0
        %1823 = vmatprep.subr.mxu0 0.0
        %1824 = vmatpush1.msra.mxu0 0.0
        %1825 = vmatprep.subr.mxu0 0.0
        %1826 = vmatpush1.msra.mxu0 0.0
        %1827 = vmatprep.subr.mxu0 0.0
        %1828 = vmatpush1.msra.mxu0 0.0
        %1829 = vmatprep.subr.mxu0 0.0
        %1830 = vmatpush1.msra.mxu0 0.0
        %1831 = vmatprep.subr.mxu0 0.0
        %1832 = vmatpush1.msra.mxu0 0.0
        %1833 = vmatprep.subr.mxu0 0.0
        %1834 = vmatpush1.msra.mxu0 0.0
        %1835 = vmatprep.subr.mxu0 0.0
        %1836 = vmatpush1.msra.mxu0 0.0
        %1837 = vmatprep.subr.mxu0 0.0
        %1838 = vmatpush1.msra.mxu0 0.0
        %1839 = vmatprep.subr.mxu0 0.0
        %1840 = vmatpush1.msra.mxu0 0.0
        %1841 = vmatprep.subr.mxu0 0.0
        %1842 = vmatpush1.msra.mxu0 0.0
        %1843 = vmatprep.subr.mxu0 0.0
        %1844 = vmatpush1.msra.mxu0 0.0
        %1845 = vmatprep.subr.mxu0 0.0
        %1846 = vmatpush1.msra.mxu0 0.0
        %1847 = vmatprep.subr.mxu0 0.0
        %1848 = vmatpush1.msra.mxu0 0.0
        %1849 = vmatprep.subr.mxu0 0.0
        %1850 = vmatpush1.msra.mxu0 0.0
        %1851 = vmatprep.subr.mxu0 0.0
        %1852 = vmatpush1.msra.mxu0 0.0
        %1853 = vmatprep.subr.mxu0 0.0
        %1854 = vmatpush1.msra.mxu0 0.0
        %1855 = vmatprep.subr.mxu0 0.0
        %1856 = vmatpush1.msra.mxu0 0.0
        %1857 = vmatprep.subr.mxu0 0.0
        %1858 = vmatpush1.msra.mxu0 0.0
        %1859 = vmatprep.subr.mxu0 0.0
        %1860 = vmatpush1.msra.mxu0 0.0
        %1861 = vmatprep.subr.mxu0 0.0
        %1862 = vmatpush1.msra.mxu0 0.0
        %1863 = vmatprep.subr.mxu0 0.0
        %1864 = vmatpush1.msra.mxu0 0.0
        %1865 = vmatprep.subr.mxu0 0.0
        %1866 = vmatpush1.msra.mxu0 0.0
        %1867 = vmatprep.subr.mxu0 0.0
        %1868 = vmatpush1.msra.mxu0 0.0
        %1869 = vmatprep.subr.mxu0 0.0
        %1870 = vmatpush1.msra.mxu0 0.0
        %1871 = vmatprep.subr.mxu0 0.0
        %1872 = vmatpush1.msra.mxu0 0.0
        %1873 = vmatprep.subr.mxu0 0.0
        %1874 = vmatpush1.msra.mxu0 0.0
        %1875 = vmatprep.subr.mxu0 0.0
        %1876 = vmatpush1.msra.mxu0 0.0
        %1877 = vmatprep.subr.mxu0 0.0
        %1878 = vmatpush1.msra.mxu0 0.0
        %1879 = vmatprep.subr.mxu0 0.0
        %1880 = vmatpush1.msra.mxu0 0.0
        %1881 = vmatprep.mubr.f32.mxu0 0.0
        %1882 = vmatmul.mubr.f32.gmra.mrb[0].mxu0 %v1732
        %v1883 = vpop.f32.mrb[0].mxu0
        %v1884 = vadd.f32 0.0, %v1883
        %v1885 = vpop.f32.mrb[0].mxu0
        %1886 = vdwg.mxu0
        %v1887 = vand.u32 2147483647, %v1884
        %v1889 = vrot.slane %v1887, 2
        %1890 = vrot.lane.b32.xlu0 %v1889, 126
        %v1891 = vpop.permute.xlu0 %1890
        %v1893 = vadd.f32 %v1887, %v1891
        %1894 = vrot.lane.b32.xlu0 %v590, 72
        %v1895 = vpop.permute.xlu0 %1894
        %1896 = vrot.lane.b32.xlu0 %v595, 72
        %v1897 = vpop.permute.xlu0 %1896
        %1900 = vmatprep.subr.mxu0 0.0
        %1901 = vmatpush1.msra.mxu0 %v1895
        %1902 = vmatprep.subr.mxu0 0.0
        %1903 = vmatpush1.msra.mxu0 %v1897
        %1904 = vmatprep.subr.mxu0 0.0
        %1905 = vmatpush1.msra.mxu0 0.0
        %1906 = vmatprep.subr.mxu0 0.0
        %1907 = vmatpush1.msra.mxu0 0.0
        %1908 = vmatprep.subr.mxu0 0.0
        %1909 = vmatpush1.msra.mxu0 0.0
        %1910 = vmatprep.subr.mxu0 0.0
        %1911 = vmatpush1.msra.mxu0 0.0
        %1912 = vmatprep.subr.mxu0 0.0
        %1913 = vmatpush1.msra.mxu0 0.0
        %1914 = vmatprep.subr.mxu0 0.0
        %1915 = vmatpush1.msra.mxu0 0.0
        %1916 = vmatprep.subr.mxu0 0.0
        %1917 = vmatpush1.msra.mxu0 0.0
        %1918 = vmatprep.subr.mxu0 0.0
        %1919 = vmatpush1.msra.mxu0 0.0
        %1920 = vmatprep.subr.mxu0 0.0
        %1921 = vmatpush1.msra.mxu0 0.0
        %1922 = vmatprep.subr.mxu0 0.0
        %1923 = vmatpush1.msra.mxu0 0.0
        %1924 = vmatprep.subr.mxu0 0.0
        %1925 = vmatpush1.msra.mxu0 0.0
        %1926 = vmatprep.subr.mxu0 0.0
        %1927 = vmatpush1.msra.mxu0 0.0
        %1928 = vmatprep.subr.mxu0 0.0
        %1929 = vmatpush1.msra.mxu0 0.0
        %1930 = vmatprep.subr.mxu0 0.0
        %1931 = vmatpush1.msra.mxu0 0.0
        %1932 = vmatprep.subr.mxu0 0.0
        %1933 = vmatpush1.msra.mxu0 0.0
        %1934 = vmatprep.subr.mxu0 0.0
        %1935 = vmatpush1.msra.mxu0 0.0
        %1936 = vmatprep.subr.mxu0 0.0
        %1937 = vmatpush1.msra.mxu0 0.0
        %1938 = vmatprep.subr.mxu0 0.0
        %1939 = vmatpush1.msra.mxu0 0.0
        %1940 = vmatprep.subr.mxu0 0.0
        %1941 = vmatpush1.msra.mxu0 0.0
        %1942 = vmatprep.subr.mxu0 0.0
        %1943 = vmatpush1.msra.mxu0 0.0
        %1944 = vmatprep.subr.mxu0 0.0
        %1945 = vmatpush1.msra.mxu0 0.0
        %1946 = vmatprep.subr.mxu0 0.0
        %1947 = vmatpush1.msra.mxu0 0.0
        %1948 = vmatprep.subr.mxu0 0.0
        %1949 = vmatpush1.msra.mxu0 0.0
        %1950 = vmatprep.subr.mxu0 0.0
        %1951 = vmatpush1.msra.mxu0 0.0
        %1952 = vmatprep.subr.mxu0 0.0
        %1953 = vmatpush1.msra.mxu0 0.0
        %1954 = vmatprep.subr.mxu0 0.0
        %1955 = vmatpush1.msra.mxu0 0.0
        %1956 = vmatprep.subr.mxu0 0.0
        %1957 = vmatpush1.msra.mxu0 0.0
        %1958 = vmatprep.subr.mxu0 0.0
        %1959 = vmatpush1.msra.mxu0 0.0
        %1960 = vmatprep.subr.mxu0 0.0
        %1961 = vmatpush1.msra.mxu0 0.0
        %1962 = vmatprep.subr.mxu0 0.0
        %1963 = vmatpush1.msra.mxu0 0.0
        %1964 = vmatprep.mubr.f32.mxu0 0.0
        %1965 = vmatmul.mubr.f32.gmra.mrb[0].mxu0 %v1732
        %v1966 = vpop.f32.mrb[0].mxu0
        %v1967 = vadd.f32 0.0, %v1966
        %v1968 = vpop.f32.mrb[0].mxu0
        %1969 = vdwg.mxu0
        %v1970 = vand.u32 2147483647, %v1967
        %v1972 = vrot.slane %v1970, 2
        %1973 = vrot.lane.b32.xlu0 %v1972, 126
        %v1974 = vpop.permute.xlu0 %1973
        %v1976 = vadd.f32 %v1970, %v1974
        %1977 = vrot.lane.b32.xlu0 %v600, 72
        %v1978 = vpop.permute.xlu0 %1977
        %1979 = vrot.lane.b32.xlu0 %v605, 72
        %v1980 = vpop.permute.xlu0 %1979
        %1983 = vmatprep.subr.mxu0 0.0
        %1984 = vmatpush1.msra.mxu0 %v1978
        %1985 = vmatprep.subr.mxu0 0.0
        %1986 = vmatpush1.msra.mxu0 %v1980
        %1987 = vmatprep.subr.mxu0 0.0
        %1988 = vmatpush1.msra.mxu0 0.0
        %1989 = vmatprep.subr.mxu0 0.0
        %1990 = vmatpush1.msra.mxu0 0.0
        %1991 = vmatprep.subr.mxu0 0.0
        %1992 = vmatpush1.msra.mxu0 0.0
        %1993 = vmatprep.subr.mxu0 0.0
        %1994 = vmatpush1.msra.mxu0 0.0
        %1995 = vmatprep.subr.mxu0 0.0
        %1996 = vmatpush1.msra.mxu0 0.0
        %1997 = vmatprep.subr.mxu0 0.0
        %1998 = vmatpush1.msra.mxu0 0.0
        %1999 = vmatprep.subr.mxu0 0.0
        %2000 = vmatpush1.msra.mxu0 0.0
        %2001 = vmatprep.subr.mxu0 0.0
        %2002 = vmatpush1.msra.mxu0 0.0
        %2003 = vmatprep.subr.mxu0 0.0
        %2004 = vmatpush1.msra.mxu0 0.0
        %2005 = vmatprep.subr.mxu0 0.0
        %2006 = vmatpush1.msra.mxu0 0.0
        %2007 = vmatprep.subr.mxu0 0.0
        %2008 = vmatpush1.msra.mxu0 0.0
        %2009 = vmatprep.subr.mxu0 0.0
        %2010 = vmatpush1.msra.mxu0 0.0
        %2011 = vmatprep.subr.mxu0 0.0
        %2012 = vmatpush1.msra.mxu0 0.0
        %2013 = vmatprep.subr.mxu0 0.0
        %2014 = vmatpush1.msra.mxu0 0.0
        %2015 = vmatprep.subr.mxu0 0.0
        %2016 = vmatpush1.msra.mxu0 0.0
        %2017 = vmatprep.subr.mxu0 0.0
        %2018 = vmatpush1.msra.mxu0 0.0
        %2019 = vmatprep.subr.mxu0 0.0
        %2020 = vmatpush1.msra.mxu0 0.0
        %2021 = vmatprep.subr.mxu0 0.0
        %2022 = vmatpush1.msra.mxu0 0.0
        %2023 = vmatprep.subr.mxu0 0.0
        %2024 = vmatpush1.msra.mxu0 0.0
        %2025 = vmatprep.subr.mxu0 0.0
        %2026 = vmatpush1.msra.mxu0 0.0
        %2027 = vmatprep.subr.mxu0 0.0
        %2028 = vmatpush1.msra.mxu0 0.0
        %2029 = vmatprep.subr.mxu0 0.0
        %2030 = vmatpush1.msra.mxu0 0.0
        %2031 = vmatprep.subr.mxu0 0.0
        %2032 = vmatpush1.msra.mxu0 0.0
        %2033 = vmatprep.subr.mxu0 0.0
        %2034 = vmatpush1.msra.mxu0 0.0
        %2035 = vmatprep.subr.mxu0 0.0
        %2036 = vmatpush1.msra.mxu0 0.0
        %2037 = vmatprep.subr.mxu0 0.0
        %2038 = vmatpush1.msra.mxu0 0.0
        %2039 = vmatprep.subr.mxu0 0.0
        %2040 = vmatpush1.msra.mxu0 0.0
        %2041 = vmatprep.subr.mxu0 0.0
        %2042 = vmatpush1.msra.mxu0 0.0
        %2043 = vmatprep.subr.mxu0 0.0
        %2044 = vmatpush1.msra.mxu0 0.0
        %2045 = vmatprep.subr.mxu0 0.0
        %2046 = vmatpush1.msra.mxu0 0.0
        %2047 = vmatprep.mubr.f32.mxu0 0.0
        %2048 = vmatmul.mubr.f32.gmra.mrb[0].mxu0 %v1732
        %v2049 = vpop.f32.mrb[0].mxu0
        %v2050 = vadd.f32 0.0, %v2049
        %v2051 = vpop.f32.mrb[0].mxu0
        %2052 = vdwg.mxu0
        %v2053 = vand.u32 2147483647, %v2050
        %v2055 = vrot.slane %v2053, 2
        %2056 = vrot.lane.b32.xlu0 %v2055, 126
        %v2057 = vpop.permute.xlu0 %2056
        %v2059 = vadd.f32 %v2053, %v2057
        // Predicated region
        $region65: #{multi_scale_gradient_loss.1} parent=43 // pred_check
          %p2060 = pneg %p476
        $region66: #{multi_scale_gradient_loss.1} parent=43 // pred_check_branch
          %2062 = sbr.rel (%p2060) target = $region68
        $region67: #{multi_scale_gradient_loss.1} parent=43 // pred_region
          %v2063 = vld [vmem:[%s5] sm:$0xff]
          %v2064 = vld [vmem:[%s5 + $0x8] sm:$0xff]
          %v2066 = vsel %vm451, %v443, 0
          %v2069 = vsel %vm451, %v444, 0
          %v2072 = vsel %vm451, %v445, 0
          %v2075 = vsel %vm451, %v446, 0
          %v2078 = vsel %vm451, %v447, 0
          %v2081 = vsel %vm451, %v448, 0
          %v2084 = vsel %vm451, %v449, 0
          %v2087 = vsel %vm451, %v450, 0
          %2089 = vmatprep.subr.mxu0 0.0
          %2090 = vmatpush1.msra.mxu0 %v2063
          %2091 = vmatprep.subr.mxu0 0.0
          %2092 = vmatpush1.msra.mxu0 %v2064
          %2093 = vmatprep.subr.mxu0 0.0
          %2094 = vmatpush1.msra.mxu0 0.0
          %2095 = vmatprep.subr.mxu0 0.0
          %2096 = vmatpush1.msra.mxu0 0.0
          %2097 = vmatprep.subr.mxu0 0.0
          %2098 = vmatpush1.msra.mxu0 0.0
          %2099 = vmatprep.subr.mxu0 0.0
          %2100 = vmatpush1.msra.mxu0 0.0
          %2101 = vmatprep.subr.mxu0 0.0
          %2102 = vmatpush1.msra.mxu0 0.0
          %2103 = vmatprep.subr.mxu0 0.0
          %2104 = vmatpush1.msra.mxu0 0.0
          %2105 = vmatprep.subr.mxu0 0.0
          %2106 = vmatpush1.msra.mxu0 0.0
          %2107 = vmatprep.subr.mxu0 0.0
          %2108 = vmatpush1.msra.mxu0 0.0
          %2109 = vmatprep.subr.mxu0 0.0
          %2110 = vmatpush1.msra.mxu0 0.0
          %2111 = vmatprep.subr.mxu0 0.0
          %2112 = vmatpush1.msra.mxu0 0.0
          %2113 = vmatprep.subr.mxu0 0.0
          %2114 = vmatpush1.msra.mxu0 0.0
          %2115 = vmatprep.subr.mxu0 0.0
          %2116 = vmatpush1.msra.mxu0 0.0
          %2117 = vmatprep.subr.mxu0 0.0
          %2118 = vmatpush1.msra.mxu0 0.0
          %2119 = vmatprep.subr.mxu0 0.0
          %2120 = vmatpush1.msra.mxu0 0.0
          %2121 = vmatprep.subr.mxu0 0.0
          %2122 = vmatpush1.msra.mxu0 0.0
          %2123 = vmatprep.subr.mxu0 0.0
          %2124 = vmatpush1.msra.mxu0 0.0
          %2125 = vmatprep.subr.mxu0 0.0
          %2126 = vmatpush1.msra.mxu0 0.0
          %2127 = vmatprep.subr.mxu0 0.0
          %2128 = vmatpush1.msra.mxu0 0.0
          %2129 = vmatprep.subr.mxu0 0.0
          %2130 = vmatpush1.msra.mxu0 0.0
          %2131 = vmatprep.subr.mxu0 0.0
          %2132 = vmatpush1.msra.mxu0 0.0
          %2133 = vmatprep.subr.mxu0 0.0
          %2134 = vmatpush1.msra.mxu0 0.0
          %2135 = vmatprep.subr.mxu0 0.0
          %2136 = vmatpush1.msra.mxu0 0.0
          %2137 = vmatprep.subr.mxu0 0.0
          %2138 = vmatpush1.msra.mxu0 0.0
          %2139 = vmatprep.subr.mxu0 0.0
          %2140 = vmatpush1.msra.mxu0 0.0
          %2141 = vmatprep.subr.mxu0 0.0
          %2142 = vmatpush1.msra.mxu0 0.0
          %2143 = vmatprep.subr.mxu0 0.0
          %2144 = vmatpush1.msra.mxu0 0.0
          %2145 = vmatprep.subr.mxu0 0.0
          %2146 = vmatpush1.msra.mxu0 0.0
          %2147 = vmatprep.subr.mxu0 0.0
          %2148 = vmatpush1.msra.mxu0 0.0
          %2149 = vmatprep.subr.mxu0 0.0
          %2150 = vmatpush1.msra.mxu0 0.0
          %2151 = vmatprep.subr.mxu0 0.0
          %2152 = vmatpush1.msra.mxu0 0.0
          %2153 = vmatprep.mubr.f32.mxu0 0.0
          %2154 = vmatmul.mubr.f32.gmra.mrb[0].mxu0 %v2066
          %v2155 = vpop.f32.mrb[0].mxu0
          %v2156 = vadd.f32 0.0, %v2155
          %v2157 = vpop.f32.mrb[0].mxu0
          %2158 = vmatprep.mubr.f32.mxu0 0.0
          %2159 = vmatmul.mubr.f32.gmra.mrb[0].mxu0 %v2069
          %v2160 = vpop.f32.mrb[0].mxu0
          %v2161 = vadd.f32 0.0, %v2160
          %v2162 = vpop.f32.mrb[0].mxu0
          %2163 = vmatprep.mubr.f32.mxu0 0.0
          %2164 = vmatmul.mubr.f32.gmra.mrb[0].mxu0 %v2072
          %v2165 = vpop.f32.mrb[0].mxu0
          %v2166 = vadd.f32 0.0, %v2165
          %v2167 = vpop.f32.mrb[0].mxu0
          %2168 = vmatprep.mubr.f32.mxu0 0.0
          %2169 = vmatmul.mubr.f32.gmra.mrb[0].mxu0 %v2075
          %v2170 = vpop.f32.mrb[0].mxu0
          %v2171 = vadd.f32 0.0, %v2170
          %v2172 = vpop.f32.mrb[0].mxu0
          %2173 = vmatprep.mubr.f32.mxu0 0.0
          %2174 = vmatmul.mubr.f32.gmra.mrb[0].mxu0 %v2078
          %v2175 = vpop.f32.mrb[0].mxu0
          %v2176 = vadd.f32 0.0, %v2175
          %v2177 = vpop.f32.mrb[0].mxu0
          %2178 = vmatprep.mubr.f32.mxu0 0.0
          %2179 = vmatmul.mubr.f32.gmra.mrb[0].mxu0 %v2081
          %v2180 = vpop.f32.mrb[0].mxu0
          %v2181 = vadd.f32 0.0, %v2180
          %v2182 = vpop.f32.mrb[0].mxu0
          %2183 = vmatprep.mubr.f32.mxu0 0.0
          %2184 = vmatmul.mubr.f32.gmra.mrb[0].mxu0 %v2084
          %v2185 = vpop.f32.mrb[0].mxu0
          %v2186 = vadd.f32 0.0, %v2185
          %v2187 = vpop.f32.mrb[0].mxu0
          %2188 = vmatprep.mubr.f32.mxu0 0.0
          %2189 = vmatmul.mubr.f32.gmra.mrb[0].mxu0 %v2087
          %v2190 = vpop.f32.mrb[0].mxu0
          %v2191 = vadd.f32 0.0, %v2190
          %v2192 = vpop.f32.mrb[0].mxu0
          %2193 = vdwg.mxu0
          %v2194 = vld [vmem:[#allocation7] sm:$0xff]
          %v2195 = vld [vmem:[#allocation7 + $0x8] sm:$0xff]
          %v2196 = vld [vmem:[#allocation7 + $0x10] sm:$0xff]
          %v2197 = vld [vmem:[#allocation7 + $0x18] sm:$0x3f]
          %v2199 = vsel %vm451, %v2194, 0
          %v2202 = vsel %vm451, %v2195, 0
          %2204 = vmatprep.subr.mxu0 0.0
          %2205 = vmatpush1.msra.mxu0 %v2156
          %2206 = vmatprep.subr.mxu0 0.0
          %2207 = vmatpush1.msra.mxu0 %v2161
          %2208 = vmatprep.subr.mxu0 0.0
          %2209 = vmatpush1.msra.mxu0 0.0
          %2210 = vmatprep.subr.mxu0 0.0
          %2211 = vmatpush1.msra.mxu0 0.0
          %2212 = vmatprep.subr.mxu0 0.0
          %2213 = vmatpush1.msra.mxu0 0.0
          %2214 = vmatprep.subr.mxu0 0.0
          %2215 = vmatpush1.msra.mxu0 0.0
          %2216 = vmatprep.subr.mxu0 0.0
          %2217 = vmatpush1.msra.mxu0 0.0
          %2218 = vmatprep.subr.mxu0 0.0
          %2219 = vmatpush1.msra.mxu0 0.0
          %2220 = vmatprep.subr.mxu0 0.0
          %2221 = vmatpush1.msra.mxu0 0.0
          %2222 = vmatprep.subr.mxu0 0.0
          %2223 = vmatpush1.msra.mxu0 0.0
          %2224 = vmatprep.subr.mxu0 0.0
          %2225 = vmatpush1.msra.mxu0 0.0
          %2226 = vmatprep.subr.mxu0 0.0
          %2227 = vmatpush1.msra.mxu0 0.0
          %2228 = vmatprep.subr.mxu0 0.0
          %2229 = vmatpush1.msra.mxu0 0.0
          %2230 = vmatprep.subr.mxu0 0.0
          %2231 = vmatpush1.msra.mxu0 0.0
          %2232 = vmatprep.subr.mxu0 0.0
          %2233 = vmatpush1.msra.mxu0 0.0
          %2234 = vmatprep.subr.mxu0 0.0
          %2235 = vmatpush1.msra.mxu0 0.0
          %2236 = vmatprep.subr.mxu0 0.0
          %2237 = vmatpush1.msra.mxu0 0.0
          %2238 = vmatprep.subr.mxu0 0.0
          %2239 = vmatpush1.msra.mxu0 0.0
          %2240 = vmatprep.subr.mxu0 0.0
          %2241 = vmatpush1.msra.mxu0 0.0
          %2242 = vmatprep.subr.mxu0 0.0
          %2243 = vmatpush1.msra.mxu0 0.0
          %2244 = vmatprep.subr.mxu0 0.0
          %2245 = vmatpush1.msra.mxu0 0.0
          %2246 = vmatprep.subr.mxu0 0.0
          %2247 = vmatpush1.msra.mxu0 0.0
          %2248 = vmatprep.subr.mxu0 0.0
          %2249 = vmatpush1.msra.mxu0 0.0
          %2250 = vmatprep.subr.mxu0 0.0
          %2251 = vmatpush1.msra.mxu0 0.0
          %2252 = vmatprep.subr.mxu0 0.0
          %2253 = vmatpush1.msra.mxu0 0.0
          %2254 = vmatprep.subr.mxu0 0.0
          %2255 = vmatpush1.msra.mxu0 0.0
          %2256 = vmatprep.subr.mxu0 0.0
          %2257 = vmatpush1.msra.mxu0 0.0
          %2258 = vmatprep.subr.mxu0 0.0
          %2259 = vmatpush1.msra.mxu0 0.0
          %2260 = vmatprep.subr.mxu0 0.0
          %2261 = vmatpush1.msra.mxu0 0.0
          %2262 = vmatprep.subr.mxu0 0.0
          %2263 = vmatpush1.msra.mxu0 0.0
          %2264 = vmatprep.subr.mxu0 0.0
          %2265 = vmatpush1.msra.mxu0 0.0
          %2266 = vmatprep.subr.mxu0 0.0
          %2267 = vmatpush1.msra.mxu0 0.0
          %2268 = vmatprep.mubr.f32.mxu0 0.0
          %2269 = vmatmul.mubr.f32.gmra.mrb[0].mxu0 %v2199
          %v2270 = vpop.f32.mrb[0].mxu0
          %v2271 = vadd.f32 0.0, %v2270
          %v2272 = vpop.f32.mrb[0].mxu0
          %2273 = vmatprep.mubr.f32.mxu0 0.0
          %2274 = vmatmul.mubr.f32.gmra.mrb[0].mxu0 %v2202
          %v2275 = vpop.f32.mrb[0].mxu0
          %v2276 = vadd.f32 0.0, %v2275
          %v2277 = vpop.f32.mrb[0].mxu0
          %2278 = vdwg.mxu0
          %vm2279 = vcmp.lt.f32.partialorder %v2271, 0.5
          %vm2280 = vcmp.lt.f32.partialorder %v2276, 0.5
          %v2281 = vsel %vm2279, %v725, 0.0
          %v2282 = vsel %vm2280, %v726, 0.0
          %v2283 = vsel %vm451, %v2281, 0.0
          %v2284 = vsel %vm451, %v2282, 0.0
          %v2285 = vadd.f32 %v2283, %v2284
          %2286 = vadd.xlane.f32.xlu0 %v2285
          %v2287 = vpop.xlane.xlu0 %2286
          %v2288 = vrot.slane %v2287, 4
          %v2289 = vadd.f32 %v2287, %v2288
          %v2290 = vrot.slane %v2289, 2
          %v2291 = vadd.f32 %v2289, %v2290
          %v2292 = vrot.slane %v2291, 1
          %v2293 = vadd.f32 %v2291, %v2292
          %s2294 = vtos %v2293
          %s2295 = sadd.f32 %s2294, 0.0
          %v2296 = vsel %vm2279, 1, 0
          %v2297 = vsel %vm2280, 1, 0
          %v2298 = vsel %vm451, %v2296, 0
          %v2299 = vsel %vm451, %v2297, 0
          %v2300 = vadd.s32 %v2298, %v2299
          %v2301 = vand.u32 %v2300, 65535
          %v2302 = vshrl.u32 %v2300, 16
          %v2303 = vcvt.s32.f32 %v2301
          %v2304 = vcvt.s32.f32 %v2302
          %2305 = vadd.xlane.f32.xlu0 %v2303
          %v2306 = vpop.xlane.xlu0 %2305
          %2307 = vadd.xlane.f32.xlu0 %v2304
          %v2308 = vpop.xlane.xlu0 %2307
          %v2309 = vcvt.f32.s32 %v2306
          %v2310 = vcvt.f32.s32 %v2308
          %v2311 = vshll.u32 %v2310, 16
          %v2312 = vadd.s32 %v2311, %v2309
          %v2313 = vrot.slane %v2312, 4
          %v2314 = vadd.s32 %v2312, %v2313
          %v2315 = vrot.slane %v2314, 2
          %v2316 = vadd.s32 %v2314, %v2315
          %v2317 = vrot.slane %v2316, 1
          %v2318 = vadd.s32 %v2316, %v2317
          %s2319 = vtos %v2318
          %s2320 = smul.u32 %s2319, 2
          %2321 = vmatprep.subr.mxu0 0.0
          %2322 = vmatpush1.msra.mxu0 %v2166
          %2323 = vmatprep.subr.mxu0 0.0
          %2324 = vmatpush1.msra.mxu0 %v2171
          %2325 = vmatprep.subr.mxu0 0.0
          %2326 = vmatpush1.msra.mxu0 0.0
          %2327 = vmatprep.subr.mxu0 0.0
          %2328 = vmatpush1.msra.mxu0 0.0
          %2329 = vmatprep.subr.mxu0 0.0
          %2330 = vmatpush1.msra.mxu0 0.0
          %2331 = vmatprep.subr.mxu0 0.0
          %2332 = vmatpush1.msra.mxu0 0.0
          %2333 = vmatprep.subr.mxu0 0.0
          %2334 = vmatpush1.msra.mxu0 0.0
          %2335 = vmatprep.subr.mxu0 0.0
          %2336 = vmatpush1.msra.mxu0 0.0
          %2337 = vmatprep.subr.mxu0 0.0
          %2338 = vmatpush1.msra.mxu0 0.0
          %2339 = vmatprep.subr.mxu0 0.0
          %2340 = vmatpush1.msra.mxu0 0.0
          %2341 = vmatprep.subr.mxu0 0.0
          %2342 = vmatpush1.msra.mxu0 0.0
          %2343 = vmatprep.subr.mxu0 0.0
          %2344 = vmatpush1.msra.mxu0 0.0
          %2345 = vmatprep.subr.mxu0 0.0
          %2346 = vmatpush1.msra.mxu0 0.0
          %2347 = vmatprep.subr.mxu0 0.0
          %2348 = vmatpush1.msra.mxu0 0.0
          %2349 = vmatprep.subr.mxu0 0.0
          %2350 = vmatpush1.msra.mxu0 0.0
          %2351 = vmatprep.subr.mxu0 0.0
          %2352 = vmatpush1.msra.mxu0 0.0
          %2353 = vmatprep.subr.mxu0 0.0
          %2354 = vmatpush1.msra.mxu0 0.0
          %2355 = vmatprep.subr.mxu0 0.0
          %2356 = vmatpush1.msra.mxu0 0.0
          %2357 = vmatprep.subr.mxu0 0.0
          %2358 = vmatpush1.msra.mxu0 0.0
          %2359 = vmatprep.subr.mxu0 0.0
          %2360 = vmatpush1.msra.mxu0 0.0
          %2361 = vmatprep.subr.mxu0 0.0
          %2362 = vmatpush1.msra.mxu0 0.0
          %2363 = vmatprep.subr.mxu0 0.0
          %2364 = vmatpush1.msra.mxu0 0.0
          %2365 = vmatprep.subr.mxu0 0.0
          %2366 = vmatpush1.msra.mxu0 0.0
          %2367 = vmatprep.subr.mxu0 0.0
          %2368 = vmatpush1.msra.mxu0 0.0
          %2369 = vmatprep.subr.mxu0 0.0
          %2370 = vmatpush1.msra.mxu0 0.0
          %2371 = vmatprep.subr.mxu0 0.0
          %2372 = vmatpush1.msra.mxu0 0.0
          %2373 = vmatprep.subr.mxu0 0.0
          %2374 = vmatpush1.msra.mxu0 0.0
          %2375 = vmatprep.subr.mxu0 0.0
          %2376 = vmatpush1.msra.mxu0 0.0
          %2377 = vmatprep.subr.mxu0 0.0
          %2378 = vmatpush1.msra.mxu0 0.0
          %2379 = vmatprep.subr.mxu0 0.0
          %2380 = vmatpush1.msra.mxu0 0.0
          %2381 = vmatprep.subr.mxu0 0.0
          %2382 = vmatpush1.msra.mxu0 0.0
          %2383 = vmatprep.subr.mxu0 0.0
          %2384 = vmatpush1.msra.mxu0 0.0
          %2385 = vmatprep.mubr.f32.mxu0 0.0
          %2386 = vmatmul.mubr.f32.gmra.mrb[0].mxu0 %v2199
          %v2387 = vpop.f32.mrb[0].mxu0
          %v2388 = vadd.f32 0.0, %v2387
          %v2389 = vpop.f32.mrb[0].mxu0
          %2390 = vmatprep.mubr.f32.mxu0 0.0
          %2391 = vmatmul.mubr.f32.gmra.mrb[0].mxu0 %v2202
          %v2392 = vpop.f32.mrb[0].mxu0
          %v2393 = vadd.f32 0.0, %v2392
          %v2394 = vpop.f32.mrb[0].mxu0
          %2395 = vdwg.mxu0
          %vm2396 = vcmp.lt.f32.partialorder %v2388, 0.5
          %vm2397 = vcmp.lt.f32.partialorder %v2393, 0.5
          %v2398 = vsel %vm2396, %v824, 0.0
          %v2399 = vsel %vm2397, %v825, 0.0
          %v2400 = vsel %vm451, %v2398, 0.0
          %v2401 = vsel %vm451, %v2399, 0.0
          %v2402 = vadd.f32 %v2400, %v2401
          %2403 = vadd.xlane.f32.xlu0 %v2402
          %v2404 = vpop.xlane.xlu0 %2403
          %v2405 = vrot.slane %v2404, 4
          %v2406 = vadd.f32 %v2404, %v2405
          %v2407 = vrot.slane %v2406, 2
          %v2408 = vadd.f32 %v2406, %v2407
          %v2409 = vrot.slane %v2408, 1
          %v2410 = vadd.f32 %v2408, %v2409
          %s2411 = vtos %v2410
          %s2412 = sadd.f32 %s2295, %s2411
          %v2413 = vsel %vm2396, 1, 0
          %v2414 = vsel %vm2397, 1, 0
          %v2415 = vsel %vm451, %v2413, 0
          %v2416 = vsel %vm451, %v2414, 0
          %v2417 = vadd.s32 %v2415, %v2416
          %v2418 = vand.u32 %v2417, 65535
          %v2419 = vshrl.u32 %v2417, 16
          %v2420 = vcvt.s32.f32 %v2418
          %v2421 = vcvt.s32.f32 %v2419
          %2422 = vadd.xlane.f32.xlu0 %v2420
          %v2423 = vpop.xlane.xlu0 %2422
          %2424 = vadd.xlane.f32.xlu0 %v2421
          %v2425 = vpop.xlane.xlu0 %2424
          %v2426 = vcvt.f32.s32 %v2423
          %v2427 = vcvt.f32.s32 %v2425
          %v2428 = vshll.u32 %v2427, 16
          %v2429 = vadd.s32 %v2428, %v2426
          %v2430 = vrot.slane %v2429, 4
          %v2431 = vadd.s32 %v2429, %v2430
          %v2432 = vrot.slane %v2431, 2
          %v2433 = vadd.s32 %v2431, %v2432
          %v2434 = vrot.slane %v2433, 1
          %v2435 = vadd.s32 %v2433, %v2434
          %s2436 = vtos %v2435
          %s2437 = smul.u32 %s2436, 2
          %s2438 = sadd.s32 %s2320, %s2437
          %2439 = vmatprep.subr.mxu0 0.0
          %2440 = vmatpush1.msra.mxu0 %v2176
          %2441 = vmatprep.subr.mxu0 0.0
          %2442 = vmatpush1.msra.mxu0 %v2181
          %2443 = vmatprep.subr.mxu0 0.0
          %2444 = vmatpush1.msra.mxu0 0.0
          %2445 = vmatprep.subr.mxu0 0.0
          %2446 = vmatpush1.msra.mxu0 0.0
          %2447 = vmatprep.subr.mxu0 0.0
          %2448 = vmatpush1.msra.mxu0 0.0
          %2449 = vmatprep.subr.mxu0 0.0
          %2450 = vmatpush1.msra.mxu0 0.0
          %2451 = vmatprep.subr.mxu0 0.0
          %2452 = vmatpush1.msra.mxu0 0.0
          %2453 = vmatprep.subr.mxu0 0.0
          %2454 = vmatpush1.msra.mxu0 0.0
          %2455 = vmatprep.subr.mxu0 0.0
          %2456 = vmatpush1.msra.mxu0 0.0
          %2457 = vmatprep.subr.mxu0 0.0
          %2458 = vmatpush1.msra.mxu0 0.0
          %2459 = vmatprep.subr.mxu0 0.0
          %2460 = vmatpush1.msra.mxu0 0.0
          %2461 = vmatprep.subr.mxu0 0.0
          %2462 = vmatpush1.msra.mxu0 0.0
          %2463 = vmatprep.subr.mxu0 0.0
          %2464 = vmatpush1.msra.mxu0 0.0
          %2465 = vmatprep.subr.mxu0 0.0
          %2466 = vmatpush1.msra.mxu0 0.0
          %2467 = vmatprep.subr.mxu0 0.0
          %2468 = vmatpush1.msra.mxu0 0.0
          %2469 = vmatprep.subr.mxu0 0.0
          %2470 = vmatpush1.msra.mxu0 0.0
          %2471 = vmatprep.subr.mxu0 0.0
          %2472 = vmatpush1.msra.mxu0 0.0
          %2473 = vmatprep.subr.mxu0 0.0
          %2474 = vmatpush1.msra.mxu0 0.0
          %2475 = vmatprep.subr.mxu0 0.0
          %2476 = vmatpush1.msra.mxu0 0.0
          %2477 = vmatprep.subr.mxu0 0.0
          %2478 = vmatpush1.msra.mxu0 0.0
          %2479 = vmatprep.subr.mxu0 0.0
          %2480 = vmatpush1.msra.mxu0 0.0
          %2481 = vmatprep.subr.mxu0 0.0
          %2482 = vmatpush1.msra.mxu0 0.0
          %2483 = vmatprep.subr.mxu0 0.0
          %2484 = vmatpush1.msra.mxu0 0.0
          %2485 = vmatprep.subr.mxu0 0.0
          %2486 = vmatpush1.msra.mxu0 0.0
          %2487 = vmatprep.subr.mxu0 0.0
          %2488 = vmatpush1.msra.mxu0 0.0
          %2489 = vmatprep.subr.mxu0 0.0
          %2490 = vmatpush1.msra.mxu0 0.0
          %2491 = vmatprep.subr.mxu0 0.0
          %2492 = vmatpush1.msra.mxu0 0.0
          %2493 = vmatprep.subr.mxu0 0.0
          %2494 = vmatpush1.msra.mxu0 0.0
          %2495 = vmatprep.subr.mxu0 0.0
          %2496 = vmatpush1.msra.mxu0 0.0
          %2497 = vmatprep.subr.mxu0 0.0
          %2498 = vmatpush1.msra.mxu0 0.0
          %2499 = vmatprep.subr.mxu0 0.0
          %2500 = vmatpush1.msra.mxu0 0.0
          %2501 = vmatprep.subr.mxu0 0.0
          %2502 = vmatpush1.msra.mxu0 0.0
          %2503 = vmatprep.mubr.f32.mxu0 0.0
          %2504 = vmatmul.mubr.f32.gmra.mrb[0].mxu0 %v2199
          %v2505 = vpop.f32.mrb[0].mxu0
          %v2506 = vadd.f32 0.0, %v2505
          %v2507 = vpop.f32.mrb[0].mxu0
          %2508 = vmatprep.mubr.f32.mxu0 0.0
          %2509 = vmatmul.mubr.f32.gmra.mrb[0].mxu0 %v2202
          %v2510 = vpop.f32.mrb[0].mxu0
          %v2511 = vadd.f32 0.0, %v2510
          %v2512 = vpop.f32.mrb[0].mxu0
          %2513 = vdwg.mxu0
          %vm2514 = vcmp.lt.f32.partialorder %v2506, 0.5
          %vm2515 = vcmp.lt.f32.partialorder %v2511, 0.5
          %v2516 = vsel %vm2514, %v923, 0.0
          %v2517 = vsel %vm2515, %v924, 0.0
          %v2518 = vsel %vm451, %v2516, 0.0
          %v2519 = vsel %vm451, %v2517, 0.0
          %v2520 = vadd.f32 %v2518, %v2519
          %2521 = vadd.xlane.f32.xlu0 %v2520
          %v2522 = vpop.xlane.xlu0 %2521
          %v2523 = vrot.slane %v2522, 4
          %v2524 = vadd.f32 %v2522, %v2523
          %v2525 = vrot.slane %v2524, 2
          %v2526 = vadd.f32 %v2524, %v2525
          %v2527 = vrot.slane %v2526, 1
          %v2528 = vadd.f32 %v2526, %v2527
          %s2529 = vtos %v2528
          %s2530 = sadd.f32 %s2412, %s2529
          %v2531 = vsel %vm2514, 1, 0
          %v2532 = vsel %vm2515, 1, 0
          %v2533 = vsel %vm451, %v2531, 0
          %v2534 = vsel %vm451, %v2532, 0
          %v2535 = vadd.s32 %v2533, %v2534
          %v2536 = vand.u32 %v2535, 65535
          %v2537 = vshrl.u32 %v2535, 16
          %v2538 = vcvt.s32.f32 %v2536
          %v2539 = vcvt.s32.f32 %v2537
          %2540 = vadd.xlane.f32.xlu0 %v2538
          %v2541 = vpop.xlane.xlu0 %2540
          %2542 = vadd.xlane.f32.xlu0 %v2539
          %v2543 = vpop.xlane.xlu0 %2542
          %v2544 = vcvt.f32.s32 %v2541
          %v2545 = vcvt.f32.s32 %v2543
          %v2546 = vshll.u32 %v2545, 16
          %v2547 = vadd.s32 %v2546, %v2544
          %v2548 = vrot.slane %v2547, 4
          %v2549 = vadd.s32 %v2547, %v2548
          %v2550 = vrot.slane %v2549, 2
          %v2551 = vadd.s32 %v2549, %v2550
          %v2552 = vrot.slane %v2551, 1
          %v2553 = vadd.s32 %v2551, %v2552
          %s2554 = vtos %v2553
          %s2555 = smul.u32 %s2554, 2
          %s2556 = sadd.s32 %s2438, %s2555
          %2557 = vmatprep.subr.mxu0 0.0
          %2558 = vmatpush1.msra.mxu0 %v2186
          %2559 = vmatprep.subr.mxu0 0.0
          %2560 = vmatpush1.msra.mxu0 %v2191
          %2561 = vmatprep.subr.mxu0 0.0
          %2562 = vmatpush1.msra.mxu0 0.0
          %2563 = vmatprep.subr.mxu0 0.0
          %2564 = vmatpush1.msra.mxu0 0.0
          %2565 = vmatprep.subr.mxu0 0.0
          %2566 = vmatpush1.msra.mxu0 0.0
          %2567 = vmatprep.subr.mxu0 0.0
          %2568 = vmatpush1.msra.mxu0 0.0
          %2569 = vmatprep.subr.mxu0 0.0
          %2570 = vmatpush1.msra.mxu0 0.0
          %2571 = vmatprep.subr.mxu0 0.0
          %2572 = vmatpush1.msra.mxu0 0.0
          %2573 = vmatprep.subr.mxu0 0.0
          %2574 = vmatpush1.msra.mxu0 0.0
          %2575 = vmatprep.subr.mxu0 0.0
          %2576 = vmatpush1.msra.mxu0 0.0
          %2577 = vmatprep.subr.mxu0 0.0
          %2578 = vmatpush1.msra.mxu0 0.0
          %2579 = vmatprep.subr.mxu0 0.0
          %2580 = vmatpush1.msra.mxu0 0.0
          %2581 = vmatprep.subr.mxu0 0.0
          %2582 = vmatpush1.msra.mxu0 0.0
          %2583 = vmatprep.subr.mxu0 0.0
          %2584 = vmatpush1.msra.mxu0 0.0
          %2585 = vmatprep.subr.mxu0 0.0
          %2586 = vmatpush1.msra.mxu0 0.0
          %2587 = vmatprep.subr.mxu0 0.0
          %2588 = vmatpush1.msra.mxu0 0.0
          %2589 = vmatprep.subr.mxu0 0.0
          %2590 = vmatpush1.msra.mxu0 0.0
          %2591 = vmatprep.subr.mxu0 0.0
          %2592 = vmatpush1.msra.mxu0 0.0
          %2593 = vmatprep.subr.mxu0 0.0
          %2594 = vmatpush1.msra.mxu0 0.0
          %2595 = vmatprep.subr.mxu0 0.0
          %2596 = vmatpush1.msra.mxu0 0.0
          %2597 = vmatprep.subr.mxu0 0.0
          %2598 = vmatpush1.msra.mxu0 0.0
          %2599 = vmatprep.subr.mxu0 0.0
          %2600 = vmatpush1.msra.mxu0 0.0
          %2601 = vmatprep.subr.mxu0 0.0
          %2602 = vmatpush1.msra.mxu0 0.0
          %2603 = vmatprep.subr.mxu0 0.0
          %2604 = vmatpush1.msra.mxu0 0.0
          %2605 = vmatprep.subr.mxu0 0.0
          %2606 = vmatpush1.msra.mxu0 0.0
          %2607 = vmatprep.subr.mxu0 0.0
          %2608 = vmatpush1.msra.mxu0 0.0
          %2609 = vmatprep.subr.mxu0 0.0
          %2610 = vmatpush1.msra.mxu0 0.0
          %2611 = vmatprep.subr.mxu0 0.0
          %2612 = vmatpush1.msra.mxu0 0.0
          %2613 = vmatprep.subr.mxu0 0.0
          %2614 = vmatpush1.msra.mxu0 0.0
          %2615 = vmatprep.subr.mxu0 0.0
          %2616 = vmatpush1.msra.mxu0 0.0
          %2617 = vmatprep.subr.mxu0 0.0
          %2618 = vmatpush1.msra.mxu0 0.0
          %2619 = vmatprep.subr.mxu0 0.0
          %2620 = vmatpush1.msra.mxu0 0.0
          %2621 = vmatprep.mubr.f32.mxu0 0.0
          %2622 = vmatmul.mubr.f32.gmra.mrb[0].mxu0 %v2199
          %v2623 = vpop.f32.mrb[0].mxu0
          %v2624 = vadd.f32 0.0, %v2623
          %v2625 = vpop.f32.mrb[0].mxu0
          %2626 = vmatprep.mubr.f32.mxu0 0.0
          %2627 = vmatmul.mubr.f32.gmra.mrb[0].mxu0 %v2202
          %v2628 = vpop.f32.mrb[0].mxu0
          %v2629 = vadd.f32 0.0, %v2628
          %v2630 = vpop.f32.mrb[0].mxu0
          %2631 = vdwg.mxu0
          %vm2632 = vcmp.lt.f32.partialorder %v2624, 0.5
          %vm2633 = vcmp.lt.f32.partialorder %v2629, 0.5
          %v2634 = vsel %vm2632, %v1022, 0.0
          %v2635 = vsel %vm2633, %v1023, 0.0
          %v2636 = vsel %vm451, %v2634, 0.0
          %v2637 = vsel %vm451, %v2635, 0.0
          %v2638 = vadd.f32 %v2636, %v2637
          %2639 = vadd.xlane.f32.xlu0 %v2638
          %v2640 = vpop.xlane.xlu0 %2639
          %v2641 = vrot.slane %v2640, 4
          %v2642 = vadd.f32 %v2640, %v2641
          %v2643 = vrot.slane %v2642, 2
          %v2644 = vadd.f32 %v2642, %v2643
          %v2645 = vrot.slane %v2644, 1
          %v2646 = vadd.f32 %v2644, %v2645
          %s2647 = vtos %v2646
          %s2648 = sadd.f32 %s2530, %s2647
          %v2649 = vsel %vm2632, 1, 0
          %v2650 = vsel %vm2633, 1, 0
          %v2651 = vsel %vm451, %v2649, 0
          %v2652 = vsel %vm451, %v2650, 0
          %v2653 = vadd.s32 %v2651, %v2652
          %v2654 = vand.u32 %v2653, 65535
          %v2655 = vshrl.u32 %v2653, 16
          %v2656 = vcvt.s32.f32 %v2654
          %v2657 = vcvt.s32.f32 %v2655
          %2658 = vadd.xlane.f32.xlu0 %v2656
          %v2659 = vpop.xlane.xlu0 %2658
          %2660 = vadd.xlane.f32.xlu0 %v2657
          %v2661 = vpop.xlane.xlu0 %2660
          %v2662 = vcvt.f32.s32 %v2659
          %v2663 = vcvt.f32.s32 %v2661
          %v2664 = vshll.u32 %v2663, 16
          %v2665 = vadd.s32 %v2664, %v2662
          %v2666 = vrot.slane %v2665, 4
          %v2667 = vadd.s32 %v2665, %v2666
          %v2668 = vrot.slane %v2667, 2
          %v2669 = vadd.s32 %v2667, %v2668
          %v2670 = vrot.slane %v2669, 1
          %v2671 = vadd.s32 %v2669, %v2670
          %s2672 = vtos %v2671
          %s2673 = smul.u32 %s2672, 2
          %s2674 = sadd.s32 %s2556, %s2673
          %v2675 = vstv %s2648
          %2676 = vst [vmem:[%s390] sm:$0x1] %v2675
          %v2677 = vstv %s2674
          %2678 = vst [vmem:[%s394] sm:$0x1] %v2677
          %2681 = vrot.lane.b32.xlu0 %v2156, 112
          %v2682 = vpop.permute.xlu0 %2681
          %2683 = vrot.lane.b32.xlu0 %v2161, 112
          %v2684 = vpop.permute.xlu0 %2683
          %v2688 = vsel %vm451, %v2196, 0
          %2690 = vmatprep.subr.mxu0 0.0
          %2691 = vmatpush1.msra.mxu0 %v2682
          %2692 = vmatprep.subr.mxu0 0.0
          %2693 = vmatpush1.msra.mxu0 %v2684
          %2694 = vmatprep.subr.mxu0 0.0
          %2695 = vmatpush1.msra.mxu0 0.0
          %2696 = vmatprep.subr.mxu0 0.0
          %2697 = vmatpush1.msra.mxu0 0.0
          %2698 = vmatprep.subr.mxu0 0.0
          %2699 = vmatpush1.msra.mxu0 0.0
          %2700 = vmatprep.subr.mxu0 0.0
          %2701 = vmatpush1.msra.mxu0 0.0
          %2702 = vmatprep.subr.mxu0 0.0
          %2703 = vmatpush1.msra.mxu0 0.0
          %2704 = vmatprep.subr.mxu0 0.0
          %2705 = vmatpush1.msra.mxu0 0.0
          %2706 = vmatprep.subr.mxu0 0.0
          %2707 = vmatpush1.msra.mxu0 0.0
          %2708 = vmatprep.subr.mxu0 0.0
          %2709 = vmatpush1.msra.mxu0 0.0
          %2710 = vmatprep.subr.mxu0 0.0
          %2711 = vmatpush1.msra.mxu0 0.0
          %2712 = vmatprep.subr.mxu0 0.0
          %2713 = vmatpush1.msra.mxu0 0.0
          %2714 = vmatprep.subr.mxu0 0.0
          %2715 = vmatpush1.msra.mxu0 0.0
          %2716 = vmatprep.subr.mxu0 0.0
          %2717 = vmatpush1.msra.mxu0 0.0
          %2718 = vmatprep.subr.mxu0 0.0
          %2719 = vmatpush1.msra.mxu0 0.0
          %2720 = vmatprep.subr.mxu0 0.0
          %2721 = vmatpush1.msra.mxu0 0.0
          %2722 = vmatprep.subr.mxu0 0.0
          %2723 = vmatpush1.msra.mxu0 0.0
          %2724 = vmatprep.subr.mxu0 0.0
          %2725 = vmatpush1.msra.mxu0 0.0
          %2726 = vmatprep.subr.mxu0 0.0
          %2727 = vmatpush1.msra.mxu0 0.0
          %2728 = vmatprep.subr.mxu0 0.0
          %2729 = vmatpush1.msra.mxu0 0.0
          %2730 = vmatprep.subr.mxu0 0.0
          %2731 = vmatpush1.msra.mxu0 0.0
          %2732 = vmatprep.subr.mxu0 0.0
          %2733 = vmatpush1.msra.mxu0 0.0
          %2734 = vmatprep.subr.mxu0 0.0
          %2735 = vmatpush1.msra.mxu0 0.0
          %2736 = vmatprep.subr.mxu0 0.0
          %2737 = vmatpush1.msra.mxu0 0.0
          %2738 = vmatprep.subr.mxu0 0.0
          %2739 = vmatpush1.msra.mxu0 0.0
          %2740 = vmatprep.subr.mxu0 0.0
          %2741 = vmatpush1.msra.mxu0 0.0
          %2742 = vmatprep.subr.mxu0 0.0
          %2743 = vmatpush1.msra.mxu0 0.0
          %2744 = vmatprep.subr.mxu0 0.0
          %2745 = vmatpush1.msra.mxu0 0.0
          %2746 = vmatprep.subr.mxu0 0.0
          %2747 = vmatpush1.msra.mxu0 0.0
          %2748 = vmatprep.subr.mxu0 0.0
          %2749 = vmatpush1.msra.mxu0 0.0
          %2750 = vmatprep.subr.mxu0 0.0
          %2751 = vmatpush1.msra.mxu0 0.0
          %2752 = vmatprep.subr.mxu0 0.0
          %2753 = vmatpush1.msra.mxu0 0.0
          %2754 = vmatprep.mubr.f32.mxu0 0.0
          %2755 = vmatmul.mubr.f32.gmra.mrb[0].mxu0 %v2688
          %v2756 = vpop.f32.mrb[0].mxu0
          %v2757 = vadd.f32 0.0, %v2756
          %v2758 = vpop.f32.mrb[0].mxu0
          %2759 = vdwg.mxu0
          %vm2760 = vcmp.lt.f32.partialorder %v2757, 0.5
          %v2761 = vsel %vm2760, %v1119, 0.0
          %vm2762 = vcmask 64512
          %v2763 = vsel %vm2762, %v2761, 0.0
          %2764 = vadd.xlane.f32.xlu0 %v2763
          %v2765 = vpop.xlane.xlu0 %2764
          %v2766 = vrot.slane %v2765, 4
          %v2767 = vadd.f32 %v2765, %v2766
          %v2768 = vrot.slane %v2767, 2
          %v2769 = vadd.f32 %v2767, %v2768
          %v2770 = vrot.slane %v2769, 1
          %v2771 = vadd.f32 %v2769, %v2770
          %s2772 = vtos %v2771
          %s2773 = sadd.f32 %s2772, 0.0
          %v2774 = vsel %vm2760, 1, 0
          %v2775 = vsel %vm2762, %v2774, 0
          %v2776 = vand.u32 %v2775, 65535
          %v2777 = vshrl.u32 %v2775, 16
          %v2778 = vcvt.s32.f32 %v2776
          %v2779 = vcvt.s32.f32 %v2777
          %2780 = vadd.xlane.f32.xlu0 %v2778
          %v2781 = vpop.xlane.xlu0 %2780
          %2782 = vadd.xlane.f32.xlu0 %v2779
          %v2783 = vpop.xlane.xlu0 %2782
          %v2784 = vcvt.f32.s32 %v2781
          %v2785 = vcvt.f32.s32 %v2783
          %v2786 = vshll.u32 %v2785, 16
          %v2787 = vadd.s32 %v2786, %v2784
          %v2788 = vrot.slane %v2787, 4
          %v2789 = vadd.s32 %v2787, %v2788
          %v2790 = vrot.slane %v2789, 2
          %v2791 = vadd.s32 %v2789, %v2790
          %v2792 = vrot.slane %v2791, 1
          %v2793 = vadd.s32 %v2791, %v2792
          %s2794 = vtos %v2793
          %s2795 = smul.u32 %s2794, 2
          %2798 = vrot.lane.b32.xlu0 %v2166, 112
          %v2799 = vpop.permute.xlu0 %2798
          %2800 = vrot.lane.b32.xlu0 %v2171, 112
          %v2801 = vpop.permute.xlu0 %2800
          %2804 = vmatprep.subr.mxu0 0.0
          %2805 = vmatpush1.msra.mxu0 %v2799
          %2806 = vmatprep.subr.mxu0 0.0
          %2807 = vmatpush1.msra.mxu0 %v2801
          %2808 = vmatprep.subr.mxu0 0.0
          %2809 = vmatpush1.msra.mxu0 0.0
          %2810 = vmatprep.subr.mxu0 0.0
          %2811 = vmatpush1.msra.mxu0 0.0
          %2812 = vmatprep.subr.mxu0 0.0
          %2813 = vmatpush1.msra.mxu0 0.0
          %2814 = vmatprep.subr.mxu0 0.0
          %2815 = vmatpush1.msra.mxu0 0.0
          %2816 = vmatprep.subr.mxu0 0.0
          %2817 = vmatpush1.msra.mxu0 0.0
          %2818 = vmatprep.subr.mxu0 0.0
          %2819 = vmatpush1.msra.mxu0 0.0
          %2820 = vmatprep.subr.mxu0 0.0
          %2821 = vmatpush1.msra.mxu0 0.0
          %2822 = vmatprep.subr.mxu0 0.0
          %2823 = vmatpush1.msra.mxu0 0.0
          %2824 = vmatprep.subr.mxu0 0.0
          %2825 = vmatpush1.msra.mxu0 0.0
          %2826 = vmatprep.subr.mxu0 0.0
          %2827 = vmatpush1.msra.mxu0 0.0
          %2828 = vmatprep.subr.mxu0 0.0
          %2829 = vmatpush1.msra.mxu0 0.0
          %2830 = vmatprep.subr.mxu0 0.0
          %2831 = vmatpush1.msra.mxu0 0.0
          %2832 = vmatprep.subr.mxu0 0.0
          %2833 = vmatpush1.msra.mxu0 0.0
          %2834 = vmatprep.subr.mxu0 0.0
          %2835 = vmatpush1.msra.mxu0 0.0
          %2836 = vmatprep.subr.mxu0 0.0
          %2837 = vmatpush1.msra.mxu0 0.0
          %2838 = vmatprep.subr.mxu0 0.0
          %2839 = vmatpush1.msra.mxu0 0.0
          %2840 = vmatprep.subr.mxu0 0.0
          %2841 = vmatpush1.msra.mxu0 0.0
          %2842 = vmatprep.subr.mxu0 0.0
          %2843 = vmatpush1.msra.mxu0 0.0
          %2844 = vmatprep.subr.mxu0 0.0
          %2845 = vmatpush1.msra.mxu0 0.0
          %2846 = vmatprep.subr.mxu0 0.0
          %2847 = vmatpush1.msra.mxu0 0.0
          %2848 = vmatprep.subr.mxu0 0.0
          %2849 = vmatpush1.msra.mxu0 0.0
          %2850 = vmatprep.subr.mxu0 0.0
          %2851 = vmatpush1.msra.mxu0 0.0
          %2852 = vmatprep.subr.mxu0 0.0
          %2853 = vmatpush1.msra.mxu0 0.0
          %2854 = vmatprep.subr.mxu0 0.0
          %2855 = vmatpush1.msra.mxu0 0.0
          %2856 = vmatprep.subr.mxu0 0.0
          %2857 = vmatpush1.msra.mxu0 0.0
          %2858 = vmatprep.subr.mxu0 0.0
          %2859 = vmatpush1.msra.mxu0 0.0
          %2860 = vmatprep.subr.mxu0 0.0
          %2861 = vmatpush1.msra.mxu0 0.0
          %2862 = vmatprep.subr.mxu0 0.0
          %2863 = vmatpush1.msra.mxu0 0.0
          %2864 = vmatprep.subr.mxu0 0.0
          %2865 = vmatpush1.msra.mxu0 0.0
          %2866 = vmatprep.subr.mxu0 0.0
          %2867 = vmatpush1.msra.mxu0 0.0
          %2868 = vmatprep.mubr.f32.mxu0 0.0
          %2869 = vmatmul.mubr.f32.gmra.mrb[0].mxu0 %v2688
          %v2870 = vpop.f32.mrb[0].mxu0
          %v2871 = vadd.f32 0.0, %v2870
          %v2872 = vpop.f32.mrb[0].mxu0
          %2873 = vdwg.mxu0
          %vm2874 = vcmp.lt.f32.partialorder %v2871, 0.5
          %v2875 = vsel %vm2874, %v1209, 0.0
          %v2876 = vsel %vm2762, %v2875, 0.0
          %2877 = vadd.xlane.f32.xlu0 %v2876
          %v2878 = vpop.xlane.xlu0 %2877
          %v2879 = vrot.slane %v2878, 4
          %v2880 = vadd.f32 %v2878, %v2879
          %v2881 = vrot.slane %v2880, 2
          %v2882 = vadd.f32 %v2880, %v2881
          %v2883 = vrot.slane %v2882, 1
          %v2884 = vadd.f32 %v2882, %v2883
          %s2885 = vtos %v2884
          %s2886 = sadd.f32 %s2773, %s2885
          %v2887 = vsel %vm2874, 1, 0
          %v2888 = vsel %vm2762, %v2887, 0
          %v2889 = vand.u32 %v2888, 65535
          %v2890 = vshrl.u32 %v2888, 16
          %v2891 = vcvt.s32.f32 %v2889
          %v2892 = vcvt.s32.f32 %v2890
          %2893 = vadd.xlane.f32.xlu0 %v2891
          %v2894 = vpop.xlane.xlu0 %2893
          %2895 = vadd.xlane.f32.xlu0 %v2892
          %v2896 = vpop.xlane.xlu0 %2895
          %v2897 = vcvt.f32.s32 %v2894
          %v2898 = vcvt.f32.s32 %v2896
          %v2899 = vshll.u32 %v2898, 16
          %v2900 = vadd.s32 %v2899, %v2897
          %v2901 = vrot.slane %v2900, 4
          %v2902 = vadd.s32 %v2900, %v2901
          %v2903 = vrot.slane %v2902, 2
          %v2904 = vadd.s32 %v2902, %v2903
          %v2905 = vrot.slane %v2904, 1
          %v2906 = vadd.s32 %v2904, %v2905
          %s2907 = vtos %v2906
          %s2908 = smul.u32 %s2907, 2
          %s2909 = sadd.s32 %s2795, %s2908
          %2912 = vrot.lane.b32.xlu0 %v2176, 112
          %v2913 = vpop.permute.xlu0 %2912
          %2914 = vrot.lane.b32.xlu0 %v2181, 112
          %v2915 = vpop.permute.xlu0 %2914
          %2918 = vmatprep.subr.mxu0 0.0
          %2919 = vmatpush1.msra.mxu0 %v2913
          %2920 = vmatprep.subr.mxu0 0.0
          %2921 = vmatpush1.msra.mxu0 %v2915
          %2922 = vmatprep.subr.mxu0 0.0
          %2923 = vmatpush1.msra.mxu0 0.0
          %2924 = vmatprep.subr.mxu0 0.0
          %2925 = vmatpush1.msra.mxu0 0.0
          %2926 = vmatprep.subr.mxu0 0.0
          %2927 = vmatpush1.msra.mxu0 0.0
          %2928 = vmatprep.subr.mxu0 0.0
          %2929 = vmatpush1.msra.mxu0 0.0
          %2930 = vmatprep.subr.mxu0 0.0
          %2931 = vmatpush1.msra.mxu0 0.0
          %2932 = vmatprep.subr.mxu0 0.0
          %2933 = vmatpush1.msra.mxu0 0.0
          %2934 = vmatprep.subr.mxu0 0.0
          %2935 = vmatpush1.msra.mxu0 0.0
          %2936 = vmatprep.subr.mxu0 0.0
          %2937 = vmatpush1.msra.mxu0 0.0
          %2938 = vmatprep.subr.mxu0 0.0
          %2939 = vmatpush1.msra.mxu0 0.0
          %2940 = vmatprep.subr.mxu0 0.0
          %2941 = vmatpush1.msra.mxu0 0.0
          %2942 = vmatprep.subr.mxu0 0.0
          %2943 = vmatpush1.msra.mxu0 0.0
          %2944 = vmatprep.subr.mxu0 0.0
          %2945 = vmatpush1.msra.mxu0 0.0
          %2946 = vmatprep.subr.mxu0 0.0
          %2947 = vmatpush1.msra.mxu0 0.0
          %2948 = vmatprep.subr.mxu0 0.0
          %2949 = vmatpush1.msra.mxu0 0.0
          %2950 = vmatprep.subr.mxu0 0.0
          %2951 = vmatpush1.msra.mxu0 0.0
          %2952 = vmatprep.subr.mxu0 0.0
          %2953 = vmatpush1.msra.mxu0 0.0
          %2954 = vmatprep.subr.mxu0 0.0
          %2955 = vmatpush1.msra.mxu0 0.0
          %2956 = vmatprep.subr.mxu0 0.0
          %2957 = vmatpush1.msra.mxu0 0.0
          %2958 = vmatprep.subr.mxu0 0.0
          %2959 = vmatpush1.msra.mxu0 0.0
          %2960 = vmatprep.subr.mxu0 0.0
          %2961 = vmatpush1.msra.mxu0 0.0
          %2962 = vmatprep.subr.mxu0 0.0
          %2963 = vmatpush1.msra.mxu0 0.0
          %2964 = vmatprep.subr.mxu0 0.0
          %2965 = vmatpush1.msra.mxu0 0.0
          %2966 = vmatprep.subr.mxu0 0.0
          %2967 = vmatpush1.msra.mxu0 0.0
          %2968 = vmatprep.subr.mxu0 0.0
          %2969 = vmatpush1.msra.mxu0 0.0
          %2970 = vmatprep.subr.mxu0 0.0
          %2971 = vmatpush1.msra.mxu0 0.0
          %2972 = vmatprep.subr.mxu0 0.0
          %2973 = vmatpush1.msra.mxu0 0.0
          %2974 = vmatprep.subr.mxu0 0.0
          %2975 = vmatpush1.msra.mxu0 0.0
          %2976 = vmatprep.subr.mxu0 0.0
          %2977 = vmatpush1.msra.mxu0 0.0
          %2978 = vmatprep.subr.mxu0 0.0
          %2979 = vmatpush1.msra.mxu0 0.0
          %2980 = vmatprep.subr.mxu0 0.0
          %2981 = vmatpush1.msra.mxu0 0.0
          %2982 = vmatprep.mubr.f32.mxu0 0.0
          %2983 = vmatmul.mubr.f32.gmra.mrb[0].mxu0 %v2688
          %v2984 = vpop.f32.mrb[0].mxu0
          %v2985 = vadd.f32 0.0, %v2984
          %v2986 = vpop.f32.mrb[0].mxu0
          %2987 = vdwg.mxu0
          %vm2988 = vcmp.lt.f32.partialorder %v2985, 0.5
          %v2989 = vsel %vm2988, %v1299, 0.0
          %v2990 = vsel %vm2762, %v2989, 0.0
          %2991 = vadd.xlane.f32.xlu0 %v2990
          %v2992 = vpop.xlane.xlu0 %2991
          %v2993 = vrot.slane %v2992, 4
          %v2994 = vadd.f32 %v2992, %v2993
          %v2995 = vrot.slane %v2994, 2
          %v2996 = vadd.f32 %v2994, %v2995
          %v2997 = vrot.slane %v2996, 1
          %v2998 = vadd.f32 %v2996, %v2997
          %s2999 = vtos %v2998
          %s3000 = sadd.f32 %s2886, %s2999
          %v3001 = vsel %vm2988, 1, 0
          %v3002 = vsel %vm2762, %v3001, 0
          %v3003 = vand.u32 %v3002, 65535
          %v3004 = vshrl.u32 %v3002, 16
          %v3005 = vcvt.s32.f32 %v3003
          %v3006 = vcvt.s32.f32 %v3004
          %3007 = vadd.xlane.f32.xlu0 %v3005
          %v3008 = vpop.xlane.xlu0 %3007
          %3009 = vadd.xlane.f32.xlu0 %v3006
          %v3010 = vpop.xlane.xlu0 %3009
          %v3011 = vcvt.f32.s32 %v3008
          %v3012 = vcvt.f32.s32 %v3010
          %v3013 = vshll.u32 %v3012, 16
          %v3014 = vadd.s32 %v3013, %v3011
          %v3015 = vrot.slane %v3014, 4
          %v3016 = vadd.s32 %v3014, %v3015
          %v3017 = vrot.slane %v3016, 2
          %v3018 = vadd.s32 %v3016, %v3017
          %v3019 = vrot.slane %v3018, 1
          %v3020 = vadd.s32 %v3018, %v3019
          %s3021 = vtos %v3020
          %s3022 = smul.u32 %s3021, 2
          %s3023 = sadd.s32 %s2909, %s3022
          %3026 = vrot.lane.b32.xlu0 %v2186, 112
          %v3027 = vpop.permute.xlu0 %3026
          %3028 = vrot.lane.b32.xlu0 %v2191, 112
          %v3029 = vpop.permute.xlu0 %3028
          %3032 = vmatprep.subr.mxu0 0.0
          %3033 = vmatpush1.msra.mxu0 %v3027
          %3034 = vmatprep.subr.mxu0 0.0
          %3035 = vmatpush1.msra.mxu0 %v3029
          %3036 = vmatprep.subr.mxu0 0.0
          %3037 = vmatpush1.msra.mxu0 0.0
          %3038 = vmatprep.subr.mxu0 0.0
          %3039 = vmatpush1.msra.mxu0 0.0
          %3040 = vmatprep.subr.mxu0 0.0
          %3041 = vmatpush1.msra.mxu0 0.0
          %3042 = vmatprep.subr.mxu0 0.0
          %3043 = vmatpush1.msra.mxu0 0.0
          %3044 = vmatprep.subr.mxu0 0.0
          %3045 = vmatpush1.msra.mxu0 0.0
          %3046 = vmatprep.subr.mxu0 0.0
          %3047 = vmatpush1.msra.mxu0 0.0
          %3048 = vmatprep.subr.mxu0 0.0
          %3049 = vmatpush1.msra.mxu0 0.0
          %3050 = vmatprep.subr.mxu0 0.0
          %3051 = vmatpush1.msra.mxu0 0.0
          %3052 = vmatprep.subr.mxu0 0.0
          %3053 = vmatpush1.msra.mxu0 0.0
          %3054 = vmatprep.subr.mxu0 0.0
          %3055 = vmatpush1.msra.mxu0 0.0
          %3056 = vmatprep.subr.mxu0 0.0
          %3057 = vmatpush1.msra.mxu0 0.0
          %3058 = vmatprep.subr.mxu0 0.0
          %3059 = vmatpush1.msra.mxu0 0.0
          %3060 = vmatprep.subr.mxu0 0.0
          %3061 = vmatpush1.msra.mxu0 0.0
          %3062 = vmatprep.subr.mxu0 0.0
          %3063 = vmatpush1.msra.mxu0 0.0
          %3064 = vmatprep.subr.mxu0 0.0
          %3065 = vmatpush1.msra.mxu0 0.0
          %3066 = vmatprep.subr.mxu0 0.0
          %3067 = vmatpush1.msra.mxu0 0.0
          %3068 = vmatprep.subr.mxu0 0.0
          %3069 = vmatpush1.msra.mxu0 0.0
          %3070 = vmatprep.subr.mxu0 0.0
          %3071 = vmatpush1.msra.mxu0 0.0
          %3072 = vmatprep.subr.mxu0 0.0
          %3073 = vmatpush1.msra.mxu0 0.0
          %3074 = vmatprep.subr.mxu0 0.0
          %3075 = vmatpush1.msra.mxu0 0.0
          %3076 = vmatprep.subr.mxu0 0.0
          %3077 = vmatpush1.msra.mxu0 0.0
          %3078 = vmatprep.subr.mxu0 0.0
          %3079 = vmatpush1.msra.mxu0 0.0
          %3080 = vmatprep.subr.mxu0 0.0
          %3081 = vmatpush1.msra.mxu0 0.0
          %3082 = vmatprep.subr.mxu0 0.0
          %3083 = vmatpush1.msra.mxu0 0.0
          %3084 = vmatprep.subr.mxu0 0.0
          %3085 = vmatpush1.msra.mxu0 0.0
          %3086 = vmatprep.subr.mxu0 0.0
          %3087 = vmatpush1.msra.mxu0 0.0
          %3088 = vmatprep.subr.mxu0 0.0
          %3089 = vmatpush1.msra.mxu0 0.0
          %3090 = vmatprep.subr.mxu0 0.0
          %3091 = vmatpush1.msra.mxu0 0.0
          %3092 = vmatprep.subr.mxu0 0.0
          %3093 = vmatpush1.msra.mxu0 0.0
          %3094 = vmatprep.subr.mxu0 0.0
          %3095 = vmatpush1.msra.mxu0 0.0
          %3096 = vmatprep.mubr.f32.mxu0 0.0
          %3097 = vmatmul.mubr.f32.gmra.mrb[0].mxu0 %v2688
          %v3098 = vpop.f32.mrb[0].mxu0
          %v3099 = vadd.f32 0.0, %v3098
          %v3100 = vpop.f32.mrb[0].mxu0
          %3101 = vdwg.mxu0
          %vm3102 = vcmp.lt.f32.partialorder %v3099, 0.5
          %v3103 = vsel %vm3102, %v1389, 0.0
          %v3104 = vsel %vm2762, %v3103, 0.0
          %3105 = vadd.xlane.f32.xlu0 %v3104
          %v3106 = vpop.xlane.xlu0 %3105
          %v3107 = vrot.slane %v3106, 4
          %v3108 = vadd.f32 %v3106, %v3107
          %v3109 = vrot.slane %v3108, 2
          %v3110 = vadd.f32 %v3108, %v3109
          %v3111 = vrot.slane %v3110, 1
          %v3112 = vadd.f32 %v3110, %v3111
          %s3113 = vtos %v3112
          %s3114 = sadd.f32 %s3000, %s3113
          %v3115 = vsel %vm3102, 1, 0
          %v3116 = vsel %vm2762, %v3115, 0
          %v3117 = vand.u32 %v3116, 65535
          %v3118 = vshrl.u32 %v3116, 16
          %v3119 = vcvt.s32.f32 %v3117
          %v3120 = vcvt.s32.f32 %v3118
          %3121 = vadd.xlane.f32.xlu0 %v3119
          %v3122 = vpop.xlane.xlu0 %3121
          %3123 = vadd.xlane.f32.xlu0 %v3120
          %v3124 = vpop.xlane.xlu0 %3123
          %v3125 = vcvt.f32.s32 %v3122
          %v3126 = vcvt.f32.s32 %v3124
          %v3127 = vshll.u32 %v3126, 16
          %v3128 = vadd.s32 %v3127, %v3125
          %v3129 = vrot.slane %v3128, 4
          %v3130 = vadd.s32 %v3128, %v3129
          %v3131 = vrot.slane %v3130, 2
          %v3132 = vadd.s32 %v3130, %v3131
          %v3133 = vrot.slane %v3132, 1
          %v3134 = vadd.s32 %v3132, %v3133
          %s3135 = vtos %v3134
          %s3136 = smul.u32 %s3135, 2
          %s3137 = sadd.s32 %s3023, %s3136
          %v3138 = vstv %s3114
          %3139 = vst [vmem:[%s390 + $0x1] sm:$0x1] %v3138
          %v3140 = vstv %s3137
          %3141 = vst [vmem:[%s394 + $0x1] sm:$0x1] %v3140
          %3142 = vrot.lane.b32.xlu0 %v2156, 104
          %v3143 = vpop.permute.xlu0 %3142
          %3144 = vrot.lane.b32.xlu0 %v2161, 104
          %v3145 = vpop.permute.xlu0 %3144
          %v3149 = vsel %vm451, %v2197, 0
          %3151 = vmatprep.subr.mxu0 0.0
          %3152 = vmatpush1.msra.mxu0 %v3143
          %3153 = vmatprep.subr.mxu0 0.0
          %3154 = vmatpush1.msra.mxu0 %v3145
          %3155 = vmatprep.subr.mxu0 0.0
          %3156 = vmatpush1.msra.mxu0 0.0
          %3157 = vmatprep.subr.mxu0 0.0
          %3158 = vmatpush1.msra.mxu0 0.0
          %3159 = vmatprep.subr.mxu0 0.0
          %3160 = vmatpush1.msra.mxu0 0.0
          %3161 = vmatprep.subr.mxu0 0.0
          %3162 = vmatpush1.msra.mxu0 0.0
          %3163 = vmatprep.subr.mxu0 0.0
          %3164 = vmatpush1.msra.mxu0 0.0
          %3165 = vmatprep.subr.mxu0 0.0
          %3166 = vmatpush1.msra.mxu0 0.0
          %3167 = vmatprep.subr.mxu0 0.0
          %3168 = vmatpush1.msra.mxu0 0.0
          %3169 = vmatprep.subr.mxu0 0.0
          %3170 = vmatpush1.msra.mxu0 0.0
          %3171 = vmatprep.subr.mxu0 0.0
          %3172 = vmatpush1.msra.mxu0 0.0
          %3173 = vmatprep.subr.mxu0 0.0
          %3174 = vmatpush1.msra.mxu0 0.0
          %3175 = vmatprep.subr.mxu0 0.0
          %3176 = vmatpush1.msra.mxu0 0.0
          %3177 = vmatprep.subr.mxu0 0.0
          %3178 = vmatpush1.msra.mxu0 0.0
          %3179 = vmatprep.subr.mxu0 0.0
          %3180 = vmatpush1.msra.mxu0 0.0
          %3181 = vmatprep.subr.mxu0 0.0
          %3182 = vmatpush1.msra.mxu0 0.0
          %3183 = vmatprep.subr.mxu0 0.0
          %3184 = vmatpush1.msra.mxu0 0.0
          %3185 = vmatprep.subr.mxu0 0.0
          %3186 = vmatpush1.msra.mxu0 0.0
          %3187 = vmatprep.subr.mxu0 0.0
          %3188 = vmatpush1.msra.mxu0 0.0
          %3189 = vmatprep.subr.mxu0 0.0
          %3190 = vmatpush1.msra.mxu0 0.0
          %3191 = vmatprep.subr.mxu0 0.0
          %3192 = vmatpush1.msra.mxu0 0.0
          %3193 = vmatprep.subr.mxu0 0.0
          %3194 = vmatpush1.msra.mxu0 0.0
          %3195 = vmatprep.subr.mxu0 0.0
          %3196 = vmatpush1.msra.mxu0 0.0
          %3197 = vmatprep.subr.mxu0 0.0
          %3198 = vmatpush1.msra.mxu0 0.0
          %3199 = vmatprep.subr.mxu0 0.0
          %3200 = vmatpush1.msra.mxu0 0.0
          %3201 = vmatprep.subr.mxu0 0.0
          %3202 = vmatpush1.msra.mxu0 0.0
          %3203 = vmatprep.subr.mxu0 0.0
          %3204 = vmatpush1.msra.mxu0 0.0
          %3205 = vmatprep.subr.mxu0 0.0
          %3206 = vmatpush1.msra.mxu0 0.0
          %3207 = vmatprep.subr.mxu0 0.0
          %3208 = vmatpush1.msra.mxu0 0.0
          %3209 = vmatprep.subr.mxu0 0.0
          %3210 = vmatpush1.msra.mxu0 0.0
          %3211 = vmatprep.subr.mxu0 0.0
          %3212 = vmatpush1.msra.mxu0 0.0
          %3213 = vmatprep.subr.mxu0 0.0
          %3214 = vmatpush1.msra.mxu0 0.0
          %3215 = vmatprep.mubr.f32.mxu0 0.0
          %3216 = vmatmul.mubr.f32.gmra.mrb[0].mxu0 %v3149
          %v3217 = vpop.f32.mrb[0].mxu0
          %v3218 = vadd.f32 0.0, %v3217
          %v3219 = vpop.f32.mrb[0].mxu0
          %3220 = vdwg.mxu0
          %vm3221 = vcmp.lt.f32.partialorder %v3218, 0.5
          %v3222 = vsel %vm3221, %v1475, 0.0
          %vm3223 = vcmask 27648
          %v3224 = vsel %vm3223, %v3222, 0.0
          %3225 = vadd.xlane.f32.xlu0 %v3224
          %v3226 = vpop.xlane.xlu0 %3225
          %v3227 = vrot.slane %v3226, 4
          %v3228 = vadd.f32 %v3226, %v3227
          %v3229 = vrot.slane %v3228, 2
          %v3230 = vadd.f32 %v3228, %v3229
          %v3231 = vrot.slane %v3230, 1
          %v3232 = vadd.f32 %v3230, %v3231
          %s3233 = vtos %v3232
          %s3234 = sadd.f32 %s3233, 0.0
          %v3235 = vsel %vm3221, 1, 0
          %v3236 = vsel %vm3223, %v3235, 0
          %v3237 = vand.u32 %v3236, 65535
          %v3238 = vshrl.u32 %v3236, 16
          %v3239 = vcvt.s32.f32 %v3237
          %v3240 = vcvt.s32.f32 %v3238
          %3241 = vadd.xlane.f32.xlu0 %v3239
          %v3242 = vpop.xlane.xlu0 %3241
          %3243 = vadd.xlane.f32.xlu0 %v3240
          %v3244 = vpop.xlane.xlu0 %3243
          %v3245 = vcvt.f32.s32 %v3242
          %v3246 = vcvt.f32.s32 %v3244
          %v3247 = vshll.u32 %v3246, 16
          %v3248 = vadd.s32 %v3247, %v3245
          %v3249 = vrot.slane %v3248, 4
          %v3250 = vadd.s32 %v3248, %v3249
          %v3251 = vrot.slane %v3250, 2
          %v3252 = vadd.s32 %v3250, %v3251
          %v3253 = vrot.slane %v3252, 1
          %v3254 = vadd.s32 %v3252, %v3253
          %s3255 = vtos %v3254
          %s3256 = smul.u32 %s3255, 2
          %3257 = vrot.lane.b32.xlu0 %v2166, 104
          %v3258 = vpop.permute.xlu0 %3257
          %3259 = vrot.lane.b32.xlu0 %v2171, 104
          %v3260 = vpop.permute.xlu0 %3259
          %3263 = vmatprep.subr.mxu0 0.0
          %3264 = vmatpush1.msra.mxu0 %v3258
          %3265 = vmatprep.subr.mxu0 0.0
          %3266 = vmatpush1.msra.mxu0 %v3260
          %3267 = vmatprep.subr.mxu0 0.0
          %3268 = vmatpush1.msra.mxu0 0.0
          %3269 = vmatprep.subr.mxu0 0.0
          %3270 = vmatpush1.msra.mxu0 0.0
          %3271 = vmatprep.subr.mxu0 0.0
          %3272 = vmatpush1.msra.mxu0 0.0
          %3273 = vmatprep.subr.mxu0 0.0
          %3274 = vmatpush1.msra.mxu0 0.0
          %3275 = vmatprep.subr.mxu0 0.0
          %3276 = vmatpush1.msra.mxu0 0.0
          %3277 = vmatprep.subr.mxu0 0.0
          %3278 = vmatpush1.msra.mxu0 0.0
          %3279 = vmatprep.subr.mxu0 0.0
          %3280 = vmatpush1.msra.mxu0 0.0
          %3281 = vmatprep.subr.mxu0 0.0
          %3282 = vmatpush1.msra.mxu0 0.0
          %3283 = vmatprep.subr.mxu0 0.0
          %3284 = vmatpush1.msra.mxu0 0.0
          %3285 = vmatprep.subr.mxu0 0.0
          %3286 = vmatpush1.msra.mxu0 0.0
          %3287 = vmatprep.subr.mxu0 0.0
          %3288 = vmatpush1.msra.mxu0 0.0
          %3289 = vmatprep.subr.mxu0 0.0
          %3290 = vmatpush1.msra.mxu0 0.0
          %3291 = vmatprep.subr.mxu0 0.0
          %3292 = vmatpush1.msra.mxu0 0.0
          %3293 = vmatprep.subr.mxu0 0.0
          %3294 = vmatpush1.msra.mxu0 0.0
          %3295 = vmatprep.subr.mxu0 0.0
          %3296 = vmatpush1.msra.mxu0 0.0
          %3297 = vmatprep.subr.mxu0 0.0
          %3298 = vmatpush1.msra.mxu0 0.0
          %3299 = vmatprep.subr.mxu0 0.0
          %3300 = vmatpush1.msra.mxu0 0.0
          %3301 = vmatprep.subr.mxu0 0.0
          %3302 = vmatpush1.msra.mxu0 0.0
          %3303 = vmatprep.subr.mxu0 0.0
          %3304 = vmatpush1.msra.mxu0 0.0
          %3305 = vmatprep.subr.mxu0 0.0
          %3306 = vmatpush1.msra.mxu0 0.0
          %3307 = vmatprep.subr.mxu0 0.0
          %3308 = vmatpush1.msra.mxu0 0.0
          %3309 = vmatprep.subr.mxu0 0.0
          %3310 = vmatpush1.msra.mxu0 0.0
          %3311 = vmatprep.subr.mxu0 0.0
          %3312 = vmatpush1.msra.mxu0 0.0
          %3313 = vmatprep.subr.mxu0 0.0
          %3314 = vmatpush1.msra.mxu0 0.0
          %3315 = vmatprep.subr.mxu0 0.0
          %3316 = vmatpush1.msra.mxu0 0.0
          %3317 = vmatprep.subr.mxu0 0.0
          %3318 = vmatpush1.msra.mxu0 0.0
          %3319 = vmatprep.subr.mxu0 0.0
          %3320 = vmatpush1.msra.mxu0 0.0
          %3321 = vmatprep.subr.mxu0 0.0
          %3322 = vmatpush1.msra.mxu0 0.0
          %3323 = vmatprep.subr.mxu0 0.0
          %3324 = vmatpush1.msra.mxu0 0.0
          %3325 = vmatprep.subr.mxu0 0.0
          %3326 = vmatpush1.msra.mxu0 0.0
          %3327 = vmatprep.mubr.f32.mxu0 0.0
          %3328 = vmatmul.mubr.f32.gmra.mrb[0].mxu0 %v3149
          %v3329 = vpop.f32.mrb[0].mxu0
          %v3330 = vadd.f32 0.0, %v3329
          %v3331 = vpop.f32.mrb[0].mxu0
          %3332 = vdwg.mxu0
          %vm3333 = vcmp.lt.f32.partialorder %v3330, 0.5
          %v3334 = vsel %vm3333, %v1558, 0.0
          %v3335 = vsel %vm3223, %v3334, 0.0
          %3336 = vadd.xlane.f32.xlu0 %v3335
          %v3337 = vpop.xlane.xlu0 %3336
          %v3338 = vrot.slane %v3337, 4
          %v3339 = vadd.f32 %v3337, %v3338
          %v3340 = vrot.slane %v3339, 2
          %v3341 = vadd.f32 %v3339, %v3340
          %v3342 = vrot.slane %v3341, 1
          %v3343 = vadd.f32 %v3341, %v3342
          %s3344 = vtos %v3343
          %s3345 = sadd.f32 %s3234, %s3344
          %v3346 = vsel %vm3333, 1, 0
          %v3347 = vsel %vm3223, %v3346, 0
          %v3348 = vand.u32 %v3347, 65535
          %v3349 = vshrl.u32 %v3347, 16
          %v3350 = vcvt.s32.f32 %v3348
          %v3351 = vcvt.s32.f32 %v3349
          %3352 = vadd.xlane.f32.xlu0 %v3350
          %v3353 = vpop.xlane.xlu0 %3352
          %3354 = vadd.xlane.f32.xlu0 %v3351
          %v3355 = vpop.xlane.xlu0 %3354
          %v3356 = vcvt.f32.s32 %v3353
          %v3357 = vcvt.f32.s32 %v3355
          %v3358 = vshll.u32 %v3357, 16
          %v3359 = vadd.s32 %v3358, %v3356
          %v3360 = vrot.slane %v3359, 4
          %v3361 = vadd.s32 %v3359, %v3360
          %v3362 = vrot.slane %v3361, 2
          %v3363 = vadd.s32 %v3361, %v3362
          %v3364 = vrot.slane %v3363, 1
          %v3365 = vadd.s32 %v3363, %v3364
          %s3366 = vtos %v3365
          %s3367 = smul.u32 %s3366, 2
          %s3368 = sadd.s32 %s3256, %s3367
          %3369 = vrot.lane.b32.xlu0 %v2176, 104
          %v3370 = vpop.permute.xlu0 %3369
          %3371 = vrot.lane.b32.xlu0 %v2181, 104
          %v3372 = vpop.permute.xlu0 %3371
          %3375 = vmatprep.subr.mxu0 0.0
          %3376 = vmatpush1.msra.mxu0 %v3370
          %3377 = vmatprep.subr.mxu0 0.0
          %3378 = vmatpush1.msra.mxu0 %v3372
          %3379 = vmatprep.subr.mxu0 0.0
          %3380 = vmatpush1.msra.mxu0 0.0
          %3381 = vmatprep.subr.mxu0 0.0
          %3382 = vmatpush1.msra.mxu0 0.0
          %3383 = vmatprep.subr.mxu0 0.0
          %3384 = vmatpush1.msra.mxu0 0.0
          %3385 = vmatprep.subr.mxu0 0.0
          %3386 = vmatpush1.msra.mxu0 0.0
          %3387 = vmatprep.subr.mxu0 0.0
          %3388 = vmatpush1.msra.mxu0 0.0
          %3389 = vmatprep.subr.mxu0 0.0
          %3390 = vmatpush1.msra.mxu0 0.0
          %3391 = vmatprep.subr.mxu0 0.0
          %3392 = vmatpush1.msra.mxu0 0.0
          %3393 = vmatprep.subr.mxu0 0.0
          %3394 = vmatpush1.msra.mxu0 0.0
          %3395 = vmatprep.subr.mxu0 0.0
          %3396 = vmatpush1.msra.mxu0 0.0
          %3397 = vmatprep.subr.mxu0 0.0
          %3398 = vmatpush1.msra.mxu0 0.0
          %3399 = vmatprep.subr.mxu0 0.0
          %3400 = vmatpush1.msra.mxu0 0.0
          %3401 = vmatprep.subr.mxu0 0.0
          %3402 = vmatpush1.msra.mxu0 0.0
          %3403 = vmatprep.subr.mxu0 0.0
          %3404 = vmatpush1.msra.mxu0 0.0
          %3405 = vmatprep.subr.mxu0 0.0
          %3406 = vmatpush1.msra.mxu0 0.0
          %3407 = vmatprep.subr.mxu0 0.0
          %3408 = vmatpush1.msra.mxu0 0.0
          %3409 = vmatprep.subr.mxu0 0.0
          %3410 = vmatpush1.msra.mxu0 0.0
          %3411 = vmatprep.subr.mxu0 0.0
          %3412 = vmatpush1.msra.mxu0 0.0
          %3413 = vmatprep.subr.mxu0 0.0
          %3414 = vmatpush1.msra.mxu0 0.0
          %3415 = vmatprep.subr.mxu0 0.0
          %3416 = vmatpush1.msra.mxu0 0.0
          %3417 = vmatprep.subr.mxu0 0.0
          %3418 = vmatpush1.msra.mxu0 0.0
          %3419 = vmatprep.subr.mxu0 0.0
          %3420 = vmatpush1.msra.mxu0 0.0
          %3421 = vmatprep.subr.mxu0 0.0
          %3422 = vmatpush1.msra.mxu0 0.0
          %3423 = vmatprep.subr.mxu0 0.0
          %3424 = vmatpush1.msra.mxu0 0.0
          %3425 = vmatprep.subr.mxu0 0.0
          %3426 = vmatpush1.msra.mxu0 0.0
          %3427 = vmatprep.subr.mxu0 0.0
          %3428 = vmatpush1.msra.mxu0 0.0
          %3429 = vmatprep.subr.mxu0 0.0
          %3430 = vmatpush1.msra.mxu0 0.0
          %3431 = vmatprep.subr.mxu0 0.0
          %3432 = vmatpush1.msra.mxu0 0.0
          %3433 = vmatprep.subr.mxu0 0.0
          %3434 = vmatpush1.msra.mxu0 0.0
          %3435 = vmatprep.subr.mxu0 0.0
          %3436 = vmatpush1.msra.mxu0 0.0
          %3437 = vmatprep.subr.mxu0 0.0
          %3438 = vmatpush1.msra.mxu0 0.0
          %3439 = vmatprep.mubr.f32.mxu0 0.0
          %3440 = vmatmul.mubr.f32.gmra.mrb[0].mxu0 %v3149
          %v3441 = vpop.f32.mrb[0].mxu0
          %v3442 = vadd.f32 0.0, %v3441
          %v3443 = vpop.f32.mrb[0].mxu0
          %3444 = vdwg.mxu0
          %vm3445 = vcmp.lt.f32.partialorder %v3442, 0.5
          %v3446 = vsel %vm3445, %v1641, 0.0
          %v3447 = vsel %vm3223, %v3446, 0.0
          %3448 = vadd.xlane.f32.xlu0 %v3447
          %v3449 = vpop.xlane.xlu0 %3448
          %v3450 = vrot.slane %v3449, 4
          %v3451 = vadd.f32 %v3449, %v3450
          %v3452 = vrot.slane %v3451, 2
          %v3453 = vadd.f32 %v3451, %v3452
          %v3454 = vrot.slane %v3453, 1
          %v3455 = vadd.f32 %v3453, %v3454
          %s3456 = vtos %v3455
          %s3457 = sadd.f32 %s3345, %s3456
          %v3458 = vsel %vm3445, 1, 0
          %v3459 = vsel %vm3223, %v3458, 0
          %v3460 = vand.u32 %v3459, 65535
          %v3461 = vshrl.u32 %v3459, 16
          %v3462 = vcvt.s32.f32 %v3460
          %v3463 = vcvt.s32.f32 %v3461
          %3464 = vadd.xlane.f32.xlu0 %v3462
          %v3465 = vpop.xlane.xlu0 %3464
          %3466 = vadd.xlane.f32.xlu0 %v3463
          %v3467 = vpop.xlane.xlu0 %3466
          %v3468 = vcvt.f32.s32 %v3465
          %v3469 = vcvt.f32.s32 %v3467
          %v3470 = vshll.u32 %v3469, 16
          %v3471 = vadd.s32 %v3470, %v3468
          %v3472 = vrot.slane %v3471, 4
          %v3473 = vadd.s32 %v3471, %v3472
          %v3474 = vrot.slane %v3473, 2
          %v3475 = vadd.s32 %v3473, %v3474
          %v3476 = vrot.slane %v3475, 1
          %v3477 = vadd.s32 %v3475, %v3476
          %s3478 = vtos %v3477
          %s3479 = smul.u32 %s3478, 2
          %s3480 = sadd.s32 %s3368, %s3479
          %3481 = vrot.lane.b32.xlu0 %v2186, 104
          %v3482 = vpop.permute.xlu0 %3481
          %3483 = vrot.lane.b32.xlu0 %v2191, 104
          %v3484 = vpop.permute.xlu0 %3483
          %3487 = vmatprep.subr.mxu0 0.0
          %3488 = vmatpush1.msra.mxu0 %v3482
          %3489 = vmatprep.subr.mxu0 0.0
          %3490 = vmatpush1.msra.mxu0 %v3484
          %3491 = vmatprep.subr.mxu0 0.0
          %3492 = vmatpush1.msra.mxu0 0.0
          %3493 = vmatprep.subr.mxu0 0.0
          %3494 = vmatpush1.msra.mxu0 0.0
          %3495 = vmatprep.subr.mxu0 0.0
          %3496 = vmatpush1.msra.mxu0 0.0
          %3497 = vmatprep.subr.mxu0 0.0
          %3498 = vmatpush1.msra.mxu0 0.0
          %3499 = vmatprep.subr.mxu0 0.0
          %3500 = vmatpush1.msra.mxu0 0.0
          %3501 = vmatprep.subr.mxu0 0.0
          %3502 = vmatpush1.msra.mxu0 0.0
          %3503 = vmatprep.subr.mxu0 0.0
          %3504 = vmatpush1.msra.mxu0 0.0
          %3505 = vmatprep.subr.mxu0 0.0
          %3506 = vmatpush1.msra.mxu0 0.0
          %3507 = vmatprep.subr.mxu0 0.0
          %3508 = vmatpush1.msra.mxu0 0.0
          %3509 = vmatprep.subr.mxu0 0.0
          %3510 = vmatpush1.msra.mxu0 0.0
          %3511 = vmatprep.subr.mxu0 0.0
          %3512 = vmatpush1.msra.mxu0 0.0
          %3513 = vmatprep.subr.mxu0 0.0
          %3514 = vmatpush1.msra.mxu0 0.0
          %3515 = vmatprep.subr.mxu0 0.0
          %3516 = vmatpush1.msra.mxu0 0.0
          %3517 = vmatprep.subr.mxu0 0.0
          %3518 = vmatpush1.msra.mxu0 0.0
          %3519 = vmatprep.subr.mxu0 0.0
          %3520 = vmatpush1.msra.mxu0 0.0
          %3521 = vmatprep.subr.mxu0 0.0
          %3522 = vmatpush1.msra.mxu0 0.0
          %3523 = vmatprep.subr.mxu0 0.0
          %3524 = vmatpush1.msra.mxu0 0.0
          %3525 = vmatprep.subr.mxu0 0.0
          %3526 = vmatpush1.msra.mxu0 0.0
          %3527 = vmatprep.subr.mxu0 0.0
          %3528 = vmatpush1.msra.mxu0 0.0
          %3529 = vmatprep.subr.mxu0 0.0
          %3530 = vmatpush1.msra.mxu0 0.0
          %3531 = vmatprep.subr.mxu0 0.0
          %3532 = vmatpush1.msra.mxu0 0.0
          %3533 = vmatprep.subr.mxu0 0.0
          %3534 = vmatpush1.msra.mxu0 0.0
          %3535 = vmatprep.subr.mxu0 0.0
          %3536 = vmatpush1.msra.mxu0 0.0
          %3537 = vmatprep.subr.mxu0 0.0
          %3538 = vmatpush1.msra.mxu0 0.0
          %3539 = vmatprep.subr.mxu0 0.0
          %3540 = vmatpush1.msra.mxu0 0.0
          %3541 = vmatprep.subr.mxu0 0.0
          %3542 = vmatpush1.msra.mxu0 0.0
          %3543 = vmatprep.subr.mxu0 0.0
          %3544 = vmatpush1.msra.mxu0 0.0
          %3545 = vmatprep.subr.mxu0 0.0
          %3546 = vmatpush1.msra.mxu0 0.0
          %3547 = vmatprep.subr.mxu0 0.0
          %3548 = vmatpush1.msra.mxu0 0.0
          %3549 = vmatprep.subr.mxu0 0.0
          %3550 = vmatpush1.msra.mxu0 0.0
          %3551 = vmatprep.mubr.f32.mxu0 0.0
          %3552 = vmatmul.mubr.f32.gmra.mrb[0].mxu0 %v3149
          %v3553 = vpop.f32.mrb[0].mxu0
          %v3554 = vadd.f32 0.0, %v3553
          %v3555 = vpop.f32.mrb[0].mxu0
          %3556 = vdwg.mxu0
          %vm3557 = vcmp.lt.f32.partialorder %v3554, 0.5
          %v3558 = vsel %vm3557, %v1724, 0.0
          %v3559 = vsel %vm3223, %v3558, 0.0
          %3560 = vadd.xlane.f32.xlu0 %v3559
          %v3561 = vpop.xlane.xlu0 %3560
          %v3562 = vrot.slane %v3561, 4
          %v3563 = vadd.f32 %v3561, %v3562
          %v3564 = vrot.slane %v3563, 2
          %v3565 = vadd.f32 %v3563, %v3564
          %v3566 = vrot.slane %v3565, 1
          %v3567 = vadd.f32 %v3565, %v3566
          %s3568 = vtos %v3567
          %s3569 = sadd.f32 %s3457, %s3568
          %v3570 = vsel %vm3557, 1, 0
          %v3571 = vsel %vm3223, %v3570, 0
          %v3572 = vand.u32 %v3571, 65535
          %v3573 = vshrl.u32 %v3571, 16
          %v3574 = vcvt.s32.f32 %v3572
          %v3575 = vcvt.s32.f32 %v3573
          %3576 = vadd.xlane.f32.xlu0 %v3574
          %v3577 = vpop.xlane.xlu0 %3576
          %3578 = vadd.xlane.f32.xlu0 %v3575
          %v3579 = vpop.xlane.xlu0 %3578
          %v3580 = vcvt.f32.s32 %v3577
          %v3581 = vcvt.f32.s32 %v3579
          %v3582 = vshll.u32 %v3581, 16
          %v3583 = vadd.s32 %v3582, %v3580
          %v3584 = vrot.slane %v3583, 4
          %v3585 = vadd.s32 %v3583, %v3584
          %v3586 = vrot.slane %v3585, 2
          %v3587 = vadd.s32 %v3585, %v3586
          %v3588 = vrot.slane %v3587, 1
          %v3589 = vadd.s32 %v3587, %v3588
          %s3590 = vtos %v3589
          %s3591 = smul.u32 %s3590, 2
          %s3592 = sadd.s32 %s3480, %s3591
          %v3593 = vstv %s3569
          %3594 = vst [vmem:[%s390 + $0x2] sm:$0x1] %v3593
          %v3595 = vstv %s3592
          %3596 = vst [vmem:[%s394 + $0x2] sm:$0x1] %v3595
          %v3597 = vrot.slane %v2197, 4
          %3598 = vrot.lane.b32.xlu0 %v2156, 100
          %v3599 = vpop.permute.xlu0 %3598
          %3600 = vrot.lane.b32.xlu0 %v2161, 100
          %v3601 = vpop.permute.xlu0 %3600
          %v3604 = vsel %vm451, %v3597, 0
          %3606 = vmatprep.subr.mxu0 0.0
          %3607 = vmatpush1.msra.mxu0 %v3599
          %3608 = vmatprep.subr.mxu0 0.0
          %3609 = vmatpush1.msra.mxu0 %v3601
          %3610 = vmatprep.subr.mxu0 0.0
          %3611 = vmatpush1.msra.mxu0 0.0
          %3612 = vmatprep.subr.mxu0 0.0
          %3613 = vmatpush1.msra.mxu0 0.0
          %3614 = vmatprep.subr.mxu0 0.0
          %3615 = vmatpush1.msra.mxu0 0.0
          %3616 = vmatprep.subr.mxu0 0.0
          %3617 = vmatpush1.msra.mxu0 0.0
          %3618 = vmatprep.subr.mxu0 0.0
          %3619 = vmatpush1.msra.mxu0 0.0
          %3620 = vmatprep.subr.mxu0 0.0
          %3621 = vmatpush1.msra.mxu0 0.0
          %3622 = vmatprep.subr.mxu0 0.0
          %3623 = vmatpush1.msra.mxu0 0.0
          %3624 = vmatprep.subr.mxu0 0.0
          %3625 = vmatpush1.msra.mxu0 0.0
          %3626 = vmatprep.subr.mxu0 0.0
          %3627 = vmatpush1.msra.mxu0 0.0
          %3628 = vmatprep.subr.mxu0 0.0
          %3629 = vmatpush1.msra.mxu0 0.0
          %3630 = vmatprep.subr.mxu0 0.0
          %3631 = vmatpush1.msra.mxu0 0.0
          %3632 = vmatprep.subr.mxu0 0.0
          %3633 = vmatpush1.msra.mxu0 0.0
          %3634 = vmatprep.subr.mxu0 0.0
          %3635 = vmatpush1.msra.mxu0 0.0
          %3636 = vmatprep.subr.mxu0 0.0
          %3637 = vmatpush1.msra.mxu0 0.0
          %3638 = vmatprep.subr.mxu0 0.0
          %3639 = vmatpush1.msra.mxu0 0.0
          %3640 = vmatprep.subr.mxu0 0.0
          %3641 = vmatpush1.msra.mxu0 0.0
          %3642 = vmatprep.subr.mxu0 0.0
          %3643 = vmatpush1.msra.mxu0 0.0
          %3644 = vmatprep.subr.mxu0 0.0
          %3645 = vmatpush1.msra.mxu0 0.0
          %3646 = vmatprep.subr.mxu0 0.0
          %3647 = vmatpush1.msra.mxu0 0.0
          %3648 = vmatprep.subr.mxu0 0.0
          %3649 = vmatpush1.msra.mxu0 0.0
          %3650 = vmatprep.subr.mxu0 0.0
          %3651 = vmatpush1.msra.mxu0 0.0
          %3652 = vmatprep.subr.mxu0 0.0
          %3653 = vmatpush1.msra.mxu0 0.0
          %3654 = vmatprep.subr.mxu0 0.0
          %3655 = vmatpush1.msra.mxu0 0.0
          %3656 = vmatprep.subr.mxu0 0.0
          %3657 = vmatpush1.msra.mxu0 0.0
          %3658 = vmatprep.subr.mxu0 0.0
          %3659 = vmatpush1.msra.mxu0 0.0
          %3660 = vmatprep.subr.mxu0 0.0
          %3661 = vmatpush1.msra.mxu0 0.0
          %3662 = vmatprep.subr.mxu0 0.0
          %3663 = vmatpush1.msra.mxu0 0.0
          %3664 = vmatprep.subr.mxu0 0.0
          %3665 = vmatpush1.msra.mxu0 0.0
          %3666 = vmatprep.subr.mxu0 0.0
          %3667 = vmatpush1.msra.mxu0 0.0
          %3668 = vmatprep.subr.mxu0 0.0
          %3669 = vmatpush1.msra.mxu0 0.0
          %3670 = vmatprep.mubr.f32.mxu0 0.0
          %3671 = vmatmul.mubr.f32.gmra.mrb[0].mxu0 %v3604
          %v3672 = vpop.f32.mrb[0].mxu0
          %v3673 = vadd.f32 0.0, %v3672
          %v3674 = vpop.f32.mrb[0].mxu0
          %3675 = vdwg.mxu0
          %vm3676 = vcmp.lt.f32.partialorder %v3673, 0.5
          %v3677 = vsel %vm3676, %v1810, 0.0
          %vm3678 = vcmask 9216
          %v3679 = vsel %vm3678, %v3677, 0.0
          %3680 = vadd.xlane.f32.xlu0 %v3679
          %v3681 = vpop.xlane.xlu0 %3680
          %v3682 = vrot.slane %v3681, 4
          %v3683 = vadd.f32 %v3681, %v3682
          %v3684 = vrot.slane %v3683, 2
          %v3685 = vadd.f32 %v3683, %v3684
          %v3686 = vrot.slane %v3685, 1
          %v3687 = vadd.f32 %v3685, %v3686
          %s3688 = vtos %v3687
          %s3689 = sadd.f32 %s3688, 0.0
          %v3690 = vsel %vm3676, 1, 0
          %v3691 = vsel %vm3678, %v3690, 0
          %v3692 = vand.u32 %v3691, 65535
          %v3693 = vshrl.u32 %v3691, 16
          %v3694 = vcvt.s32.f32 %v3692
          %v3695 = vcvt.s32.f32 %v3693
          %3696 = vadd.xlane.f32.xlu0 %v3694
          %v3697 = vpop.xlane.xlu0 %3696
          %3698 = vadd.xlane.f32.xlu0 %v3695
          %v3699 = vpop.xlane.xlu0 %3698
          %v3700 = vcvt.f32.s32 %v3697
          %v3701 = vcvt.f32.s32 %v3699
          %v3702 = vshll.u32 %v3701, 16
          %v3703 = vadd.s32 %v3702, %v3700
          %v3704 = vrot.slane %v3703, 4
          %v3705 = vadd.s32 %v3703, %v3704
          %v3706 = vrot.slane %v3705, 2
          %v3707 = vadd.s32 %v3705, %v3706
          %v3708 = vrot.slane %v3707, 1
          %v3709 = vadd.s32 %v3707, %v3708
          %s3710 = vtos %v3709
          %s3711 = smul.u32 %s3710, 2
          %3712 = vrot.lane.b32.xlu0 %v2166, 100
          %v3713 = vpop.permute.xlu0 %3712
          %3714 = vrot.lane.b32.xlu0 %v2171, 100
          %v3715 = vpop.permute.xlu0 %3714
          %3718 = vmatprep.subr.mxu0 0.0
          %3719 = vmatpush1.msra.mxu0 %v3713
          %3720 = vmatprep.subr.mxu0 0.0
          %3721 = vmatpush1.msra.mxu0 %v3715
          %3722 = vmatprep.subr.mxu0 0.0
          %3723 = vmatpush1.msra.mxu0 0.0
          %3724 = vmatprep.subr.mxu0 0.0
          %3725 = vmatpush1.msra.mxu0 0.0
          %3726 = vmatprep.subr.mxu0 0.0
          %3727 = vmatpush1.msra.mxu0 0.0
          %3728 = vmatprep.subr.mxu0 0.0
          %3729 = vmatpush1.msra.mxu0 0.0
          %3730 = vmatprep.subr.mxu0 0.0
          %3731 = vmatpush1.msra.mxu0 0.0
          %3732 = vmatprep.subr.mxu0 0.0
          %3733 = vmatpush1.msra.mxu0 0.0
          %3734 = vmatprep.subr.mxu0 0.0
          %3735 = vmatpush1.msra.mxu0 0.0
          %3736 = vmatprep.subr.mxu0 0.0
          %3737 = vmatpush1.msra.mxu0 0.0
          %3738 = vmatprep.subr.mxu0 0.0
          %3739 = vmatpush1.msra.mxu0 0.0
          %3740 = vmatprep.subr.mxu0 0.0
          %3741 = vmatpush1.msra.mxu0 0.0
          %3742 = vmatprep.subr.mxu0 0.0
          %3743 = vmatpush1.msra.mxu0 0.0
          %3744 = vmatprep.subr.mxu0 0.0
          %3745 = vmatpush1.msra.mxu0 0.0
          %3746 = vmatprep.subr.mxu0 0.0
          %3747 = vmatpush1.msra.mxu0 0.0
          %3748 = vmatprep.subr.mxu0 0.0
          %3749 = vmatpush1.msra.mxu0 0.0
          %3750 = vmatprep.subr.mxu0 0.0
          %3751 = vmatpush1.msra.mxu0 0.0
          %3752 = vmatprep.subr.mxu0 0.0
          %3753 = vmatpush1.msra.mxu0 0.0
          %3754 = vmatprep.subr.mxu0 0.0
          %3755 = vmatpush1.msra.mxu0 0.0
          %3756 = vmatprep.subr.mxu0 0.0
          %3757 = vmatpush1.msra.mxu0 0.0
          %3758 = vmatprep.subr.mxu0 0.0
          %3759 = vmatpush1.msra.mxu0 0.0
          %3760 = vmatprep.subr.mxu0 0.0
          %3761 = vmatpush1.msra.mxu0 0.0
          %3762 = vmatprep.subr.mxu0 0.0
          %3763 = vmatpush1.msra.mxu0 0.0
          %3764 = vmatprep.subr.mxu0 0.0
          %3765 = vmatpush1.msra.mxu0 0.0
          %3766 = vmatprep.subr.mxu0 0.0
          %3767 = vmatpush1.msra.mxu0 0.0
          %3768 = vmatprep.subr.mxu0 0.0
          %3769 = vmatpush1.msra.mxu0 0.0
          %3770 = vmatprep.subr.mxu0 0.0
          %3771 = vmatpush1.msra.mxu0 0.0
          %3772 = vmatprep.subr.mxu0 0.0
          %3773 = vmatpush1.msra.mxu0 0.0
          %3774 = vmatprep.subr.mxu0 0.0
          %3775 = vmatpush1.msra.mxu0 0.0
          %3776 = vmatprep.subr.mxu0 0.0
          %3777 = vmatpush1.msra.mxu0 0.0
          %3778 = vmatprep.subr.mxu0 0.0
          %3779 = vmatpush1.msra.mxu0 0.0
          %3780 = vmatprep.subr.mxu0 0.0
          %3781 = vmatpush1.msra.mxu0 0.0
          %3782 = vmatprep.mubr.f32.mxu0 0.0
          %3783 = vmatmul.mubr.f32.gmra.mrb[0].mxu0 %v3604
          %v3784 = vpop.f32.mrb[0].mxu0
          %v3785 = vadd.f32 0.0, %v3784
          %v3786 = vpop.f32.mrb[0].mxu0
          %3787 = vdwg.mxu0
          %vm3788 = vcmp.lt.f32.partialorder %v3785, 0.5
          %v3789 = vsel %vm3788, %v1893, 0.0
          %v3790 = vsel %vm3678, %v3789, 0.0
          %3791 = vadd.xlane.f32.xlu0 %v3790
          %v3792 = vpop.xlane.xlu0 %3791
          %v3793 = vrot.slane %v3792, 4
          %v3794 = vadd.f32 %v3792, %v3793
          %v3795 = vrot.slane %v3794, 2
          %v3796 = vadd.f32 %v3794, %v3795
          %v3797 = vrot.slane %v3796, 1
          %v3798 = vadd.f32 %v3796, %v3797
          %s3799 = vtos %v3798
          %s3800 = sadd.f32 %s3689, %s3799
          %v3801 = vsel %vm3788, 1, 0
          %v3802 = vsel %vm3678, %v3801, 0
          %v3803 = vand.u32 %v3802, 65535
          %v3804 = vshrl.u32 %v3802, 16
          %v3805 = vcvt.s32.f32 %v3803
          %v3806 = vcvt.s32.f32 %v3804
          %3807 = vadd.xlane.f32.xlu0 %v3805
          %v3808 = vpop.xlane.xlu0 %3807
          %3809 = vadd.xlane.f32.xlu0 %v3806
          %v3810 = vpop.xlane.xlu0 %3809
          %v3811 = vcvt.f32.s32 %v3808
          %v3812 = vcvt.f32.s32 %v3810
          %v3813 = vshll.u32 %v3812, 16
          %v3814 = vadd.s32 %v3813, %v3811
          %v3815 = vrot.slane %v3814, 4
          %v3816 = vadd.s32 %v3814, %v3815
          %v3817 = vrot.slane %v3816, 2
          %v3818 = vadd.s32 %v3816, %v3817
          %v3819 = vrot.slane %v3818, 1
          %v3820 = vadd.s32 %v3818, %v3819
          %s3821 = vtos %v3820
          %s3822 = smul.u32 %s3821, 2
          %s3823 = sadd.s32 %s3711, %s3822
          %3824 = vrot.lane.b32.xlu0 %v2176, 100
          %v3825 = vpop.permute.xlu0 %3824
          %3826 = vrot.lane.b32.xlu0 %v2181, 100
          %v3827 = vpop.permute.xlu0 %3826
          %3830 = vmatprep.subr.mxu0 0.0
          %3831 = vmatpush1.msra.mxu0 %v3825
          %3832 = vmatprep.subr.mxu0 0.0
          %3833 = vmatpush1.msra.mxu0 %v3827
          %3834 = vmatprep.subr.mxu0 0.0
          %3835 = vmatpush1.msra.mxu0 0.0
          %3836 = vmatprep.subr.mxu0 0.0
          %3837 = vmatpush1.msra.mxu0 0.0
          %3838 = vmatprep.subr.mxu0 0.0
          %3839 = vmatpush1.msra.mxu0 0.0
          %3840 = vmatprep.subr.mxu0 0.0
          %3841 = vmatpush1.msra.mxu0 0.0
          %3842 = vmatprep.subr.mxu0 0.0
          %3843 = vmatpush1.msra.mxu0 0.0
          %3844 = vmatprep.subr.mxu0 0.0
          %3845 = vmatpush1.msra.mxu0 0.0
          %3846 = vmatprep.subr.mxu0 0.0
          %3847 = vmatpush1.msra.mxu0 0.0
          %3848 = vmatprep.subr.mxu0 0.0
          %3849 = vmatpush1.msra.mxu0 0.0
          %3850 = vmatprep.subr.mxu0 0.0
          %3851 = vmatpush1.msra.mxu0 0.0
          %3852 = vmatprep.subr.mxu0 0.0
          %3853 = vmatpush1.msra.mxu0 0.0
          %3854 = vmatprep.subr.mxu0 0.0
          %3855 = vmatpush1.msra.mxu0 0.0
          %3856 = vmatprep.subr.mxu0 0.0
          %3857 = vmatpush1.msra.mxu0 0.0
          %3858 = vmatprep.subr.mxu0 0.0
          %3859 = vmatpush1.msra.mxu0 0.0
          %3860 = vmatprep.subr.mxu0 0.0
          %3861 = vmatpush1.msra.mxu0 0.0
          %3862 = vmatprep.subr.mxu0 0.0
          %3863 = vmatpush1.msra.mxu0 0.0
          %3864 = vmatprep.subr.mxu0 0.0
          %3865 = vmatpush1.msra.mxu0 0.0
          %3866 = vmatprep.subr.mxu0 0.0
          %3867 = vmatpush1.msra.mxu0 0.0
          %3868 = vmatprep.subr.mxu0 0.0
          %3869 = vmatpush1.msra.mxu0 0.0
          %3870 = vmatprep.subr.mxu0 0.0
          %3871 = vmatpush1.msra.mxu0 0.0
          %3872 = vmatprep.subr.mxu0 0.0
          %3873 = vmatpush1.msra.mxu0 0.0
          %3874 = vmatprep.subr.mxu0 0.0
          %3875 = vmatpush1.msra.mxu0 0.0
          %3876 = vmatprep.subr.mxu0 0.0
          %3877 = vmatpush1.msra.mxu0 0.0
          %3878 = vmatprep.subr.mxu0 0.0
          %3879 = vmatpush1.msra.mxu0 0.0
          %3880 = vmatprep.subr.mxu0 0.0
          %3881 = vmatpush1.msra.mxu0 0.0
          %3882 = vmatprep.subr.mxu0 0.0
          %3883 = vmatpush1.msra.mxu0 0.0
          %3884 = vmatprep.subr.mxu0 0.0
          %3885 = vmatpush1.msra.mxu0 0.0
          %3886 = vmatprep.subr.mxu0 0.0
          %3887 = vmatpush1.msra.mxu0 0.0
          %3888 = vmatprep.subr.mxu0 0.0
          %3889 = vmatpush1.msra.mxu0 0.0
          %3890 = vmatprep.subr.mxu0 0.0
          %3891 = vmatpush1.msra.mxu0 0.0
          %3892 = vmatprep.subr.mxu0 0.0
          %3893 = vmatpush1.msra.mxu0 0.0
          %3894 = vmatprep.mubr.f32.mxu0 0.0
          %3895 = vmatmul.mubr.f32.gmra.mrb[0].mxu0 %v3604
          %v3896 = vpop.f32.mrb[0].mxu0
          %v3897 = vadd.f32 0.0, %v3896
          %v3898 = vpop.f32.mrb[0].mxu0
          %3899 = vdwg.mxu0
          %vm3900 = vcmp.lt.f32.partialorder %v3897, 0.5
          %v3901 = vsel %vm3900, %v1976, 0.0
          %v3902 = vsel %vm3678, %v3901, 0.0
          %3903 = vadd.xlane.f32.xlu0 %v3902
          %v3904 = vpop.xlane.xlu0 %3903
          %v3905 = vrot.slane %v3904, 4
          %v3906 = vadd.f32 %v3904, %v3905
          %v3907 = vrot.slane %v3906, 2
          %v3908 = vadd.f32 %v3906, %v3907
          %v3909 = vrot.slane %v3908, 1
          %v3910 = vadd.f32 %v3908, %v3909
          %s3911 = vtos %v3910
          %s3912 = sadd.f32 %s3800, %s3911
          %v3913 = vsel %vm3900, 1, 0
          %v3914 = vsel %vm3678, %v3913, 0
          %v3915 = vand.u32 %v3914, 65535
          %v3916 = vshrl.u32 %v3914, 16
          %v3917 = vcvt.s32.f32 %v3915
          %v3918 = vcvt.s32.f32 %v3916
          %3919 = vadd.xlane.f32.xlu0 %v3917
          %v3920 = vpop.xlane.xlu0 %3919
          %3921 = vadd.xlane.f32.xlu0 %v3918
          %v3922 = vpop.xlane.xlu0 %3921
          %v3923 = vcvt.f32.s32 %v3920
          %v3924 = vcvt.f32.s32 %v3922
          %v3925 = vshll.u32 %v3924, 16
          %v3926 = vadd.s32 %v3925, %v3923
          %v3927 = vrot.slane %v3926, 4
          %v3928 = vadd.s32 %v3926, %v3927
          %v3929 = vrot.slane %v3928, 2
          %v3930 = vadd.s32 %v3928, %v3929
          %v3931 = vrot.slane %v3930, 1
          %v3932 = vadd.s32 %v3930, %v3931
          %s3933 = vtos %v3932
          %s3934 = smul.u32 %s3933, 2
          %s3935 = sadd.s32 %s3823, %s3934
          %3936 = vrot.lane.b32.xlu0 %v2186, 100
          %v3937 = vpop.permute.xlu0 %3936
          %3938 = vrot.lane.b32.xlu0 %v2191, 100
          %v3939 = vpop.permute.xlu0 %3938
          %3942 = vmatprep.subr.mxu0 0.0
          %3943 = vmatpush1.msra.mxu0 %v3937
          %3944 = vmatprep.subr.mxu0 0.0
          %3945 = vmatpush1.msra.mxu0 %v3939
          %3946 = vmatprep.subr.mxu0 0.0
          %3947 = vmatpush1.msra.mxu0 0.0
          %3948 = vmatprep.subr.mxu0 0.0
          %3949 = vmatpush1.msra.mxu0 0.0
          %3950 = vmatprep.subr.mxu0 0.0
          %3951 = vmatpush1.msra.mxu0 0.0
          %3952 = vmatprep.subr.mxu0 0.0
          %3953 = vmatpush1.msra.mxu0 0.0
          %3954 = vmatprep.subr.mxu0 0.0
          %3955 = vmatpush1.msra.mxu0 0.0
          %3956 = vmatprep.subr.mxu0 0.0
          %3957 = vmatpush1.msra.mxu0 0.0
          %3958 = vmatprep.subr.mxu0 0.0
          %3959 = vmatpush1.msra.mxu0 0.0
          %3960 = vmatprep.subr.mxu0 0.0
          %3961 = vmatpush1.msra.mxu0 0.0
          %3962 = vmatprep.subr.mxu0 0.0
          %3963 = vmatpush1.msra.mxu0 0.0
          %3964 = vmatprep.subr.mxu0 0.0
          %3965 = vmatpush1.msra.mxu0 0.0
          %3966 = vmatprep.subr.mxu0 0.0
          %3967 = vmatpush1.msra.mxu0 0.0
          %3968 = vmatprep.subr.mxu0 0.0
          %3969 = vmatpush1.msra.mxu0 0.0
          %3970 = vmatprep.subr.mxu0 0.0
          %3971 = vmatpush1.msra.mxu0 0.0
          %3972 = vmatprep.subr.mxu0 0.0
          %3973 = vmatpush1.msra.mxu0 0.0
          %3974 = vmatprep.subr.mxu0 0.0
          %3975 = vmatpush1.msra.mxu0 0.0
          %3976 = vmatprep.subr.mxu0 0.0
          %3977 = vmatpush1.msra.mxu0 0.0
          %3978 = vmatprep.subr.mxu0 0.0
          %3979 = vmatpush1.msra.mxu0 0.0
          %3980 = vmatprep.subr.mxu0 0.0
          %3981 = vmatpush1.msra.mxu0 0.0
          %3982 = vmatprep.subr.mxu0 0.0
          %3983 = vmatpush1.msra.mxu0 0.0
          %3984 = vmatprep.subr.mxu0 0.0
          %3985 = vmatpush1.msra.mxu0 0.0
          %3986 = vmatprep.subr.mxu0 0.0
          %3987 = vmatpush1.msra.mxu0 0.0
          %3988 = vmatprep.subr.mxu0 0.0
          %3989 = vmatpush1.msra.mxu0 0.0
          %3990 = vmatprep.subr.mxu0 0.0
          %3991 = vmatpush1.msra.mxu0 0.0
          %3992 = vmatprep.subr.mxu0 0.0
          %3993 = vmatpush1.msra.mxu0 0.0
          %3994 = vmatprep.subr.mxu0 0.0
          %3995 = vmatpush1.msra.mxu0 0.0
          %3996 = vmatprep.subr.mxu0 0.0
          %3997 = vmatpush1.msra.mxu0 0.0
          %3998 = vmatprep.subr.mxu0 0.0
          %3999 = vmatpush1.msra.mxu0 0.0
          %4000 = vmatprep.subr.mxu0 0.0
          %4001 = vmatpush1.msra.mxu0 0.0
          %4002 = vmatprep.subr.mxu0 0.0
          %4003 = vmatpush1.msra.mxu0 0.0
          %4004 = vmatprep.subr.mxu0 0.0
          %4005 = vmatpush1.msra.mxu0 0.0
          %4006 = vmatprep.mubr.f32.mxu0 0.0
          %4007 = vmatmul.mubr.f32.gmra.mrb[0].mxu0 %v3604
          %v4008 = vpop.f32.mrb[0].mxu0
          %v4009 = vadd.f32 0.0, %v4008
          %v4010 = vpop.f32.mrb[0].mxu0
          %4011 = vdwg.mxu0
          %vm4012 = vcmp.lt.f32.partialorder %v4009, 0.5
          %v4013 = vsel %vm4012, %v2059, 0.0
          %v4014 = vsel %vm3678, %v4013, 0.0
          %4015 = vadd.xlane.f32.xlu0 %v4014
          %v4016 = vpop.xlane.xlu0 %4015
          %v4017 = vrot.slane %v4016, 4
          %v4018 = vadd.f32 %v4016, %v4017
          %v4019 = vrot.slane %v4018, 2
          %v4020 = vadd.f32 %v4018, %v4019
          %v4021 = vrot.slane %v4020, 1
          %v4022 = vadd.f32 %v4020, %v4021
          %s4023 = vtos %v4022
          %s4024 = sadd.f32 %s3912, %s4023
          %v4025 = vsel %vm4012, 1, 0
          %v4026 = vsel %vm3678, %v4025, 0
          %v4027 = vand.u32 %v4026, 65535
          %v4028 = vshrl.u32 %v4026, 16
          %v4029 = vcvt.s32.f32 %v4027
          %v4030 = vcvt.s32.f32 %v4028
          %4031 = vadd.xlane.f32.xlu0 %v4029
          %v4032 = vpop.xlane.xlu0 %4031
          %4033 = vadd.xlane.f32.xlu0 %v4030
          %v4034 = vpop.xlane.xlu0 %4033
          %v4035 = vcvt.f32.s32 %v4032
          %v4036 = vcvt.f32.s32 %v4034
          %v4037 = vshll.u32 %v4036, 16
          %v4038 = vadd.s32 %v4037, %v4035
          %v4039 = vrot.slane %v4038, 4
          %v4040 = vadd.s32 %v4038, %v4039
          %v4041 = vrot.slane %v4040, 2
          %v4042 = vadd.s32 %v4040, %v4041
          %v4043 = vrot.slane %v4042, 1
          %v4044 = vadd.s32 %v4042, %v4043
          %s4045 = vtos %v4044
          %s4046 = smul.u32 %s4045, 2
          %s4047 = sadd.s32 %s3935, %s4046
          %v4048 = vstv %s4024
          %4049 = vst [vmem:[%s390 + $0x3] sm:$0x1] %v4048
          %v4050 = vstv %s4047
          %4051 = vst [vmem:[%s394 + $0x3] sm:$0x1] %v4050
        $region68: #{multi_scale_gradient_loss.1} parent=43 // pred_fallthru
          _
        %p4052 = pneg %p476
        // Predicated region
        $region69: #{multi_scale_gradient_loss.1} parent=43 // pred_check
          _
        $region70: #{multi_scale_gradient_loss.1} parent=43 // pred_check_branch
          %4054 = sbr.rel (%p476) target = $region72
        $region71: #{multi_scale_gradient_loss.1} parent=43 // pred_region
          %v4055 = vsel %vm451, %v725, 0.0
          %v4056 = vsel %vm451, %v726, 0.0
          %v4057 = vadd.f32 %v4055, %v4056
          %4058 = vadd.xlane.f32.xlu0 %v4057
          %v4059 = vpop.xlane.xlu0 %4058
          %v4060 = vrot.slane %v4059, 4
          %v4061 = vadd.f32 %v4059, %v4060
          %v4062 = vrot.slane %v4061, 2
          %v4063 = vadd.f32 %v4061, %v4062
          %v4064 = vrot.slane %v4063, 1
          %v4065 = vadd.f32 %v4063, %v4064
          %s4066 = vtos %v4065
          %s4067 = sadd.f32 %s4066, 0.0
          %v4068 = vsel %vm451, %v824, 0.0
          %v4069 = vsel %vm451, %v825, 0.0
          %v4070 = vadd.f32 %v4068, %v4069
          %4071 = vadd.xlane.f32.xlu0 %v4070
          %v4072 = vpop.xlane.xlu0 %4071
          %v4073 = vrot.slane %v4072, 4
          %v4074 = vadd.f32 %v4072, %v4073
          %v4075 = vrot.slane %v4074, 2
          %v4076 = vadd.f32 %v4074, %v4075
          %v4077 = vrot.slane %v4076, 1
          %v4078 = vadd.f32 %v4076, %v4077
          %s4079 = vtos %v4078
          %s4080 = sadd.f32 %s4067, %s4079
          %v4081 = vsel %vm451, %v923, 0.0
          %v4082 = vsel %vm451, %v924, 0.0
          %v4083 = vadd.f32 %v4081, %v4082
          %4084 = vadd.xlane.f32.xlu0 %v4083
          %v4085 = vpop.xlane.xlu0 %4084
          %v4086 = vrot.slane %v4085, 4
          %v4087 = vadd.f32 %v4085, %v4086
          %v4088 = vrot.slane %v4087, 2
          %v4089 = vadd.f32 %v4087, %v4088
          %v4090 = vrot.slane %v4089, 1
          %v4091 = vadd.f32 %v4089, %v4090
          %s4092 = vtos %v4091
          %s4093 = sadd.f32 %s4080, %s4092
          %v4094 = vsel %vm451, %v1022, 0.0
          %v4095 = vsel %vm451, %v1023, 0.0
          %v4096 = vadd.f32 %v4094, %v4095
          %4097 = vadd.xlane.f32.xlu0 %v4096
          %v4098 = vpop.xlane.xlu0 %4097
          %v4099 = vrot.slane %v4098, 4
          %v4100 = vadd.f32 %v4098, %v4099
          %v4101 = vrot.slane %v4100, 2
          %v4102 = vadd.f32 %v4100, %v4101
          %v4103 = vrot.slane %v4102, 1
          %v4104 = vadd.f32 %v4102, %v4103
          %s4105 = vtos %v4104
          %s4106 = sadd.f32 %s4093, %s4105
          %v4107 = vstv %s4106
          %4108 = vst [vmem:[%s390] sm:$0x1] %v4107
          %4109 = vst [vmem:[%s394] sm:$0x1] 2048
          %vm4110 = vcmask 64512
          %v4111 = vsel %vm4110, %v1119, 0.0
          %4112 = vadd.xlane.f32.xlu0 %v4111
          %v4113 = vpop.xlane.xlu0 %4112
          %v4114 = vrot.slane %v4113, 4
          %v4115 = vadd.f32 %v4113, %v4114
          %v4116 = vrot.slane %v4115, 2
          %v4117 = vadd.f32 %v4115, %v4116
          %v4118 = vrot.slane %v4117, 1
          %v4119 = vadd.f32 %v4117, %v4118
          %s4120 = vtos %v4119
          %s4121 = sadd.f32 %s4120, 0.0
          %v4122 = vsel %vm4110, %v1209, 0.0
          %4123 = vadd.xlane.f32.xlu0 %v4122
          %v4124 = vpop.xlane.xlu0 %4123
          %v4125 = vrot.slane %v4124, 4
          %v4126 = vadd.f32 %v4124, %v4125
          %v4127 = vrot.slane %v4126, 2
          %v4128 = vadd.f32 %v4126, %v4127
          %v4129 = vrot.slane %v4128, 1
          %v4130 = vadd.f32 %v4128, %v4129
          %s4131 = vtos %v4130
          %s4132 = sadd.f32 %s4121, %s4131
          %v4133 = vsel %vm4110, %v1299, 0.0
          %4134 = vadd.xlane.f32.xlu0 %v4133
          %v4135 = vpop.xlane.xlu0 %4134
          %v4136 = vrot.slane %v4135, 4
          %v4137 = vadd.f32 %v4135, %v4136
          %v4138 = vrot.slane %v4137, 2
          %v4139 = vadd.f32 %v4137, %v4138
          %v4140 = vrot.slane %v4139, 1
          %v4141 = vadd.f32 %v4139, %v4140
          %s4142 = vtos %v4141
          %s4143 = sadd.f32 %s4132, %s4142
          %v4144 = vsel %vm4110, %v1389, 0.0
          %4145 = vadd.xlane.f32.xlu0 %v4144
          %v4146 = vpop.xlane.xlu0 %4145
          %v4147 = vrot.slane %v4146, 4
          %v4148 = vadd.f32 %v4146, %v4147
          %v4149 = vrot.slane %v4148, 2
          %v4150 = vadd.f32 %v4148, %v4149
          %v4151 = vrot.slane %v4150, 1
          %v4152 = vadd.f32 %v4150, %v4151
          %s4153 = vtos %v4152
          %s4154 = sadd.f32 %s4143, %s4153
          %v4155 = vstv %s4154
          %4156 = vst [vmem:[%s390 + $0x1] sm:$0x1] %v4155
          %4157 = vst [vmem:[%s394 + $0x1] sm:$0x1] 512
          %vm4158 = vcmask 27648
          %v4159 = vsel %vm4158, %v1475, 0.0
          %4160 = vadd.xlane.f32.xlu0 %v4159
          %v4161 = vpop.xlane.xlu0 %4160
          %v4162 = vrot.slane %v4161, 4
          %v4163 = vadd.f32 %v4161, %v4162
          %v4164 = vrot.slane %v4163, 2
          %v4165 = vadd.f32 %v4163, %v4164
          %v4166 = vrot.slane %v4165, 1
          %v4167 = vadd.f32 %v4165, %v4166
          %s4168 = vtos %v4167
          %s4169 = sadd.f32 %s4168, 0.0
          %v4170 = vsel %vm4158, %v1558, 0.0
          %4171 = vadd.xlane.f32.xlu0 %v4170
          %v4172 = vpop.xlane.xlu0 %4171
          %v4173 = vrot.slane %v4172, 4
          %v4174 = vadd.f32 %v4172, %v4173
          %v4175 = vrot.slane %v4174, 2
          %v4176 = vadd.f32 %v4174, %v4175
          %v4177 = vrot.slane %v4176, 1
          %v4178 = vadd.f32 %v4176, %v4177
          %s4179 = vtos %v4178
          %s4180 = sadd.f32 %s4169, %s4179
          %v4181 = vsel %vm4158, %v1641, 0.0
          %4182 = vadd.xlane.f32.xlu0 %v4181
          %v4183 = vpop.xlane.xlu0 %4182
          %v4184 = vrot.slane %v4183, 4
          %v4185 = vadd.f32 %v4183, %v4184
          %v4186 = vrot.slane %v4185, 2
          %v4187 = vadd.f32 %v4185, %v4186
          %v4188 = vrot.slane %v4187, 1
          %v4189 = vadd.f32 %v4187, %v4188
          %s4190 = vtos %v4189
          %s4191 = sadd.f32 %s4180, %s4190
          %v4192 = vsel %vm4158, %v1724, 0.0
          %4193 = vadd.xlane.f32.xlu0 %v4192
          %v4194 = vpop.xlane.xlu0 %4193
          %v4195 = vrot.slane %v4194, 4
          %v4196 = vadd.f32 %v4194, %v4195
          %v4197 = vrot.slane %v4196, 2
          %v4198 = vadd.f32 %v4196, %v4197
          %v4199 = vrot.slane %v4198, 1
          %v4200 = vadd.f32 %v4198, %v4199
          %s4201 = vtos %v4200
          %s4202 = sadd.f32 %s4191, %s4201
          %v4203 = vstv %s4202
          %4204 = vst [vmem:[%s390 + $0x2] sm:$0x1] %v4203
          %4205 = vst [vmem:[%s394 + $0x2] sm:$0x1] 128
          %vm4206 = vcmask 9216
          %v4207 = vsel %vm4206, %v1810, 0.0
          %4208 = vadd.xlane.f32.xlu0 %v4207
          %v4209 = vpop.xlane.xlu0 %4208
          %v4210 = vrot.slane %v4209, 4
          %v4211 = vadd.f32 %v4209, %v4210
          %v4212 = vrot.slane %v4211, 2
          %v4213 = vadd.f32 %v4211, %v4212
          %v4214 = vrot.slane %v4213, 1
          %v4215 = vadd.f32 %v4213, %v4214
          %s4216 = vtos %v4215
          %s4217 = sadd.f32 %s4216, 0.0
          %v4218 = vsel %vm4206, %v1893, 0.0
          %4219 = vadd.xlane.f32.xlu0 %v4218
          %v4220 = vpop.xlane.xlu0 %4219
          %v4221 = vrot.slane %v4220, 4
          %v4222 = vadd.f32 %v4220, %v4221
          %v4223 = vrot.slane %v4222, 2
          %v4224 = vadd.f32 %v4222, %v4223
          %v4225 = vrot.slane %v4224, 1
          %v4226 = vadd.f32 %v4224, %v4225
          %s4227 = vtos %v4226
          %s4228 = sadd.f32 %s4217, %s4227
          %v4229 = vsel %vm4206, %v1976, 0.0
          %4230 = vadd.xlane.f32.xlu0 %v4229
          %v4231 = vpop.xlane.xlu0 %4230
          %v4232 = vrot.slane %v4231, 4
          %v4233 = vadd.f32 %v4231, %v4232
          %v4234 = vrot.slane %v4233, 2
          %v4235 = vadd.f32 %v4233, %v4234
          %v4236 = vrot.slane %v4235, 1
          %v4237 = vadd.f32 %v4235, %v4236
          %s4238 = vtos %v4237
          %s4239 = sadd.f32 %s4228, %s4238
          %v4240 = vsel %vm4206, %v2059, 0.0
          %4241 = vadd.xlane.f32.xlu0 %v4240
          %v4242 = vpop.xlane.xlu0 %4241
          %v4243 = vrot.slane %v4242, 4
          %v4244 = vadd.f32 %v4242, %v4243
          %v4245 = vrot.slane %v4244, 2
          %v4246 = vadd.f32 %v4244, %v4245
          %v4247 = vrot.slane %v4246, 1
          %v4248 = vadd.f32 %v4246, %v4247
          %s4249 = vtos %v4248
          %s4250 = sadd.f32 %s4239, %s4249
          %v4251 = vstv %s4250
          %4252 = vst [vmem:[%s390 + $0x3] sm:$0x1] %v4251
          %4253 = vst [vmem:[%s394 + $0x3] sm:$0x1] 32
        $region72: #{multi_scale_gradient_loss.1} parent=43 // pred_fallthru
          _
        %p4254 = scmp.lt.s32.totalorder %s26, 1
        %s4255 = scalar_select %p4254, %s26, 1
        %s4256 = smul.addr %s4255, 8
        %s4257 = scalar_lea.vmem %s6, %s4256
        %p4258 = scmp.lt.s32.totalorder %s26, 1
        %s4259 = scalar_select %p4258, %s26, 1
        %s4260 = smul.addr %s4259, 8
        %s4261 = scalar_lea.vmem %s7, %s4260
        // Predicated region
        $region73: #{multi_scale_gradient_loss.1} parent=43 // pred_check
          %p4262 = pneg %p180
        $region74: #{multi_scale_gradient_loss.1} parent=43 // pred_check_branch
          %4264 = sbr.rel (%p4262) target = $region76
        $region75: #{multi_scale_gradient_loss.1} parent=43 // pred_region
          _
        $region76: #{multi_scale_gradient_loss.1} parent=43 // pred_fallthru
          _
        // Predicated region
        $region77: #{multi_scale_gradient_loss.1} parent=43 // pred_check
          %p4265 = pneg %p206
        $region78: #{multi_scale_gradient_loss.1} parent=43 // pred_check_branch
          %4267 = sbr.rel (%p4265) target = $region80
        $region79: #{multi_scale_gradient_loss.1} parent=43 // pred_region
          _
        $region80: #{multi_scale_gradient_loss.1} parent=43 // pred_fallthru
          _
      $region44: #{multi_scale_gradient_loss.1} parent=5 // pred_fallthru
        _
      %p4268 = scmp.le.s32.totalorder 2, %s21
      // Predicated region
      $region81: #{multi_scale_gradient_loss.1} parent=5 // pred_check
        %p4269 = pneg %p4268
      $region82: #{multi_scale_gradient_loss.1} parent=5 // pred_check_branch
        %4271 = sbr.rel (%p4269) target = $region84
      $region83: #{multi_scale_gradient_loss.1} parent=5 // pred_region
        %s4272 = ssub.s32 %s21, 2
        // Predicated region
        $region85: #{multi_scale_gradient_loss.1} parent=83 // pred_check
          %p4273 = pneg %p186
        $region86: #{multi_scale_gradient_loss.1} parent=83 // pred_check_branch
          %4275 = sbr.rel (%p4273) target = $region88
        $region87: #{multi_scale_gradient_loss.1} parent=83 // pred_region
          %p4276 = scmp.lt.s32.totalorder %s27, 1
          %s4277 = scalar_select %p4276, %s27, 1
          %s4278 = smul.addr %s4277, 8
          %s4279 = scalar_lea.vmem %s6, %s4278
        $region88: #{multi_scale_gradient_loss.1} parent=83 // pred_fallthru
          _
        // Predicated region
        $region89: #{multi_scale_gradient_loss.1} parent=83 // pred_check
          %p4280 = pneg %p212
        $region90: #{multi_scale_gradient_loss.1} parent=83 // pred_check_branch
          %4282 = sbr.rel (%p4280) target = $region92
        $region91: #{multi_scale_gradient_loss.1} parent=83 // pred_region
          %p4283 = scmp.lt.s32.totalorder %s27, 1
          %s4284 = scalar_select %p4283, %s27, 1
          %s4285 = smul.addr %s4284, 8
          %s4286 = scalar_lea.vmem %s7, %s4285
        $region92: #{multi_scale_gradient_loss.1} parent=83 // pred_fallthru
          _
      $region84: #{multi_scale_gradient_loss.1} parent=5 // pred_fallthru
        _
    $region6: #{multi_scale_gradient_loss.1} parent=1 // loop_footer
      %s25 = sadd.s32 1, %s21
    $region7: #{multi_scale_gradient_loss.1} parent=1 // loop_footer_branch
      %20 = sbr.rel target = $region3
    $region8: #{multi_scale_gradient_loss.1} parent=1 // loop_exit
      _
    %4287 = vsyncpa [#allocation3], 1
    %s4288 = scalar_lea.sflag [#allocation3], 1
    %4289 = vsyncpa %s4288, 1
    %4290 = vsyncpa [#allocation5], 1
    %s4291 = scalar_lea.sflag [#allocation5], 1
    %4292 = vsyncpa %s4291, 1
    %4293 = vsyncpa [#allocation8], 1

</llo_original>
